<compile_context>
chip_gen: v7x
topology: tpu7x:2x2x1
jax: 0.10.0
libtpu: 0.0.40
codegen_flags: <defaults>
</compile_context>

<pallas_src>
import functools
import numpy as np
import jax
import jax.numpy as jnp
from jax.experimental import pallas as pl
from jax.experimental.pallas import tpu as pltpu


tag_to_ix = {'O': 0, 'B': 1, 'I': 2, 'E': 3, 'S': 4, '<PAD>': 5, '<CLS>': 6, '<SEP>': 7}


# ------------------- fused FC + Viterbi (forward + backtrack) kernel -------------------
def _crf_decode_kernel(start_id, embeds_ref, w_ref, b_ref, trans_ref,
                       score_ref, path_ref, psi_ref):
    # embeds_ref: [T, tb, H] f32 (time-major batch block)
    # w_ref: [H, K] f32, b_ref: [1, K] f32, trans_ref: [K, K] f32
    # score_ref: [tb, 1] f32, path_ref: [tb, T] i32
    # psi_ref: VMEM scratch [T, tb, K] i32 (backpointers, never written to HBM)
    T, TB, _ = embeds_ref.shape
    K = trans_ref.shape[0]

    trans = trans_ref[...]
    w = w_ref[...]
    bias = b_ref[...]

    # Hoisted loop invariants (not re-materialized per iteration).
    iota3 = jax.lax.broadcasted_iota(jnp.int32, (TB, K, K), 2)   # prev-tag index
    iota2 = jax.lax.broadcasted_iota(jnp.int32, (TB, K), 1)      # tag index
    iotaT = jax.lax.broadcasted_iota(jnp.int32, (TB, T), 1)      # time index

    init = jnp.where(iota2 == start_id, 0.0, -10000.0).astype(jnp.float32)

    def fwd_body(t, log_delta):
        # scores[b, j, i] = transitions[j, i] + log_delta[b, i]
        scores = trans[None, :, :] + log_delta[:, None, :]                    # [tb, K, K]
        max_val = jnp.max(scores, axis=-1)                                    # [tb, K]
        hit = scores == max_val[:, :, None]
        arg = jnp.min(jnp.where(hit, iota3, K), axis=-1).astype(jnp.int32)    # first argmax
        psi_ref[t] = arg
        # Fused FC: feats_t = x_t @ W + b computed on the fly for this timestep.
        feats_t = jnp.dot(embeds_ref[t], w,
                          preferred_element_type=jnp.float32) + bias          # [tb, K]
        return max_val + feats_t

    log_delta = jax.lax.fori_loop(1, T, fwd_body, init, unroll=True)

    # Epilogue: score, last tag, and in-kernel backtracking (one-hot gather over K).
    best = jnp.max(log_delta, axis=-1, keepdims=True)                          # [tb, 1]
    last = jnp.min(jnp.where(log_delta == best, iota2, K),
                   axis=-1, keepdims=True).astype(jnp.int32)                   # [tb, 1]
    score_ref[...] = best

    path0 = jnp.where(iotaT == (T - 1), last, 0).astype(jnp.int32)             # [tb, T]

    def back_body(i, carry):
        nxt, path_acc = carry                                                  # [tb,1],[tb,T]
        t = T - 2 - i
        psi_t1 = psi_ref[t + 1]                                                # [tb, K]
        cur = jnp.sum(jnp.where(iota2 == nxt, psi_t1, 0),
                      axis=-1, keepdims=True).astype(jnp.int32)                # [tb, 1]
        path_acc = jnp.where(iotaT == t, cur, path_acc)
        return (cur, path_acc)

    _, path_final = jax.lax.fori_loop(0, T - 1, back_body, (last, path0),
                                      unroll=True)
    path_ref[...] = path_final


def crf_decode_pallas(embeds_tbh, fc_w, fc_b, transitions, start_id, batch_block=None):
    """embeds_tbh: [T, B, H] -> (score [B], path [B, T])."""
    T, B, H = embeds_tbh.shape
    K = transitions.shape[0]
    if batch_block is None:
        tb = 8 if (B % 8 == 0) else B     # sublane-aligned batch blocks when possible
    else:
        tb = batch_block
    assert B % tb == 0, "batch must be divisible by the batch block"
    grid = (B // tb,)

    kernel = functools.partial(_crf_decode_kernel, start_id)
    score, path = pl.pallas_call(
        kernel,
        out_shape=(jax.ShapeDtypeStruct((B, 1), jnp.float32),
                   jax.ShapeDtypeStruct((B, T), jnp.int32)),
        grid_spec=pltpu.PrefetchScalarGridSpec(
            num_scalar_prefetch=0,
            grid=grid,
            in_specs=[
                pl.BlockSpec((T, tb, H), lambda b: (0, b, 0)),   # embeds (time-major)
                pl.BlockSpec((H, K), lambda b: (0, 0)),          # fc weight
                pl.BlockSpec((1, K), lambda b: (0, 0)),          # fc bias
                pl.BlockSpec((K, K), lambda b: (0, 0)),          # transitions
            ],
            out_specs=(
                pl.BlockSpec((tb, 1), lambda b: (b, 0)),         # score
                pl.BlockSpec((tb, T), lambda b: (b, 0)),         # path (T on lanes)
            ),
            scratch_shapes=[pltpu.VMEM((T, tb, K), jnp.int32)],  # psi stays on-chip
        ),
        compiler_params=pltpu.CompilerParams(
            dimension_semantics=("parallel",)),
    )(embeds_tbh, fc_w, fc_b, transitions)
    return score[:, 0], path


# -------------------------------------- model port -------------------------------------
class BoBertBiLstmCrf:
    """JAX/Pallas port of bo_Bert_BiLSTM_CRF.forward (train_type='PLM_crf')."""

    def __init__(self, tag_to_ix, hidden_dim=32, vocab_size=100, key=None):
        self.tag_to_ix = tag_to_ix
        self.K = len(tag_to_ix)
        self.H = hidden_dim
        self.start_id = tag_to_ix['<CLS>']
        self.end_id = tag_to_ix['<SEP>']
        if key is None:
            key = jax.random.PRNGKey(0)
        k_emb, k_t, k_w, k_b = jax.random.split(key, 4)
        # TODO(synk): the pretrained BERT/CINO/Roberta encoder has no in-script equivalent
        # (no checkpoint load); replaced by a deterministic embedding table producing
        # [T, B, H] features (the 'PLM_crf' path then applies fc + CRF decode).
        self.embedding = jax.random.normal(k_emb, (vocab_size, self.H), jnp.float32)
        trans = jax.random.normal(k_t, (self.K, self.K), jnp.float32)
        trans = trans.at[self.start_id, :].set(-10000.0)
        trans = trans.at[:, self.end_id].set(-10000.0)
        self.transitions = trans
        self.fc_w = jax.random.normal(k_w, (self.H, self.K), jnp.float32) / np.sqrt(self.H)
        self.fc_b = jax.random.normal(k_b, (1, self.K), jnp.float32) * 0.01

    def forward(self, sentence):
        # sentence: [B, T] int token ids.
        # Gather directly into time-major layout [T, B, H] (no extra transpose copy).
        embeds_tbh = self.embedding[sentence.T]
        score, path = crf_decode_pallas(embeds_tbh, self.fc_w, self.fc_b,
                                        self.transitions, self.start_id)
        return score, path                                          # ([B], [B, T])


# --------------------------------- pure-numpy reference ---------------------------------
def viterbi_reference(feats, trans, start_id):
    feats = np.asarray(feats, np.float32)
    trans = np.asarray(trans, np.float32)
    B, T, K = feats.shape
    log_delta = np.full((B, K), -10000.0, np.float32)
    log_delta[:, start_id] = 0.0
    psi = np.zeros((B, T, K), np.int64)
    for t in range(1, T):
        scores = trans[None] + log_delta[:, None, :]
        psi[:, t] = scores.argmax(-1)
        log_delta = scores.max(-1) + feats[:, t]
    score = log_delta.max(-1)
    path = np.zeros((B, T), np.int64)
    path[:, -1] = log_delta.argmax(-1)
    for t in range(T - 2, -1, -1):
        path[:, t] = psi[np.arange(B), t + 1, path[:, t + 1]]
    return score, path


if __name__ == "__main__":
    B, T, H, VOCAB = 16, 8, 32, 100   # B=16 exercises the batch-block grid (tb=8, grid=2)
    model = BoBertBiLstmCrf(tag_to_ix, hidden_dim=H, vocab_size=VOCAB,
                            key=jax.random.PRNGKey(0))
    sentence = jax.random.randint(jax.random.PRNGKey(1), (B, T), 0, VOCAB, dtype=jnp.int32)

    score, path = model.forward(sentence)
    score = jax.block_until_ready(score)
    path = jax.block_until_ready(path)

    # Cross-check against a plain numpy reference of the same forward pass.
    embeds = np.asarray(model.embedding)[np.asarray(sentence)]          # [B, T, H]
    feats_ref = embeds.reshape(B * T, H) @ np.asarray(model.fc_w) + np.asarray(model.fc_b)
    feats_ref = feats_ref.reshape(B, T, model.K)
    score_ref, path_ref = viterbi_reference(feats_ref, model.transitions, model.start_id)

    np.testing.assert_allclose(np.asarray(score), score_ref, rtol=1e-4, atol=1e-2)
    assert np.array_equal(np.asarray(path, np.int64), path_ref), "viterbi path mismatch"
    print("KERNEL_OK")
</pallas_src>

<mosaic_0001>
module attributes {stable_mosaic.version = 11 : i64} {
  func.func @_crf_decode_kernel(%arg0: i32, %arg1: memref<8x8x32xf32, #tpu.memory_space<vmem>>, %arg2: memref<32x8xf32, #tpu.memory_space<vmem>>, %arg3: memref<1x8xf32, #tpu.memory_space<vmem>>, %arg4: memref<8x8xf32, #tpu.memory_space<vmem>>, %arg5: memref<8x1xf32, #tpu.memory_space<vmem>>, %arg6: memref<8x8xi32, #tpu.memory_space<vmem>>, %arg7: memref<8x8x8xi32, #tpu.memory_space<vmem>>) attributes {dimension_semantics = [#tpu.dimension_semantics<parallel>], iteration_bounds = array<i64: 2>, scalar_prefetch = 0 : i64, scratch_operands = 1 : i64, tpu.core_type = #tpu.core_type<tc>, window_params = [{transform_indices = @transform_0, window_bounds = array<i64: 8, 8, 32>}, {pipeline_mode = #tpu.pipeline_mode<synchronous>, transform_indices = @transform_1, window_bounds = array<i64: 32, 8>}, {pipeline_mode = #tpu.pipeline_mode<synchronous>, transform_indices = @transform_2, window_bounds = array<i64: 1, 8>}, {pipeline_mode = #tpu.pipeline_mode<synchronous>, transform_indices = @transform_3, window_bounds = array<i64: 8, 8>}, {transform_indices = @transform_4, window_bounds = array<i64: 8, 1>}, {transform_indices = @transform_5, window_bounds = array<i64: 8, 8>}]} {
    %c0 = arith.constant 0 : index
    %c0_0 = arith.constant 0 : index
    %0 = vector.load %arg4[%c0, %c0_0] : memref<8x8xf32, #tpu.memory_space<vmem>>, vector<8x8xf32>
    %c0_1 = arith.constant 0 : index
    %c0_2 = arith.constant 0 : index
    %1 = vector.load %arg2[%c0_1, %c0_2] : memref<32x8xf32, #tpu.memory_space<vmem>>, vector<32x8xf32>
    %c0_3 = arith.constant 0 : index
    %c0_4 = arith.constant 0 : index
    %2 = vector.load %arg3[%c0_3, %c0_4] : memref<1x8xf32, #tpu.memory_space<vmem>>, vector<1x8xf32>
    %3 = tpu.iota {dimensions = array<i32: 2>} : vector<8x8x8xi32>
    %4 = tpu.iota {dimensions = array<i32: 1>} : vector<8x8xi32>
    %5 = tpu.iota {dimensions = array<i32: 1>} : vector<8x8xi32>
    %c6_i32 = arith.constant 6 : i32
    %6 = vector.broadcast %c6_i32 : i32 to vector<8x8xi32>
    %7 = arith.cmpi eq, %4, %6 : vector<8x8xi32>
    %cst = arith.constant 0.000000e+00 : f32
    %cst_5 = arith.constant -1.000000e+04 : f32
    %8 = vector.broadcast %cst : f32 to vector<8x8xf32>
    %9 = vector.broadcast %cst_5 : f32 to vector<8x8xf32>
    %10 = arith.select %7, %8, %9 : vector<8x8xi1>, vector<8x8xf32>
    %c1_i32 = arith.constant 1 : i32
    %11 = vector.shape_cast %0 : vector<8x8xf32> to vector<1x8x8xf32>
    %12 = vector.shape_cast %10 : vector<8x8xf32> to vector<8x1x8xf32>
    %13 = vector.broadcast %11 : vector<1x8x8xf32> to vector<8x8x8xf32>
    %14 = vector.broadcast %12 : vector<8x1x8xf32> to vector<8x8x8xf32>
    %15 = arith.addf %13, %14 : vector<8x8x8xf32>
    %cst_6 = arith.constant dense<0xFF800000> : vector<8x8xf32>
    %16 = vector.multi_reduction <maximumf>, %15, %cst_6 [2] : vector<8x8x8xf32> to vector<8x8xf32>
    %17 = vector.shape_cast %16 : vector<8x8xf32> to vector<8x8x1xf32>
    %18 = vector.broadcast %17 : vector<8x8x1xf32> to vector<8x8x8xf32>
    %19 = arith.cmpf oeq, %15, %18 : vector<8x8x8xf32>
    %c8_i32 = arith.constant 8 : i32
    %20 = vector.broadcast %c8_i32 : i32 to vector<8x8x8xi32>
    %21 = arith.select %19, %3, %20 : vector<8x8x8xi1>, vector<8x8x8xi32>
    %cst_7 = arith.constant dense<2147483647> : vector<8x8xi32>
    %22 = vector.multi_reduction <minsi>, %21, %cst_7 [2] : vector<8x8x8xi32> to vector<8x8xi32>
    %23 = arith.index_cast %c1_i32 : i32 to index
    %c0_8 = arith.constant 0 : index
    %c0_9 = arith.constant 0 : index
    %24 = vector.load %arg7[%23, %c0_8, %c0_9] : memref<8x8x8xi32, #tpu.memory_space<vmem>>, vector<1x8x8xi32>
    %25 = vector.shape_cast %24 : vector<1x8x8xi32> to vector<8x8xi32>
    %26 = vector.shape_cast %22 : vector<8x8xi32> to vector<1x8x8xi32>
    tpu.vector_store %arg7[%23, %c0_8, %c0_9], %26 {strides = array<i32>} : memref<8x8x8xi32, #tpu.memory_space<vmem>>, vector<1x8x8xi32>,
    %27 = arith.index_cast %c1_i32 : i32 to index
    %c0_10 = arith.constant 0 : index
    %c0_11 = arith.constant 0 : index
    %28 = vector.load %arg1[%27, %c0_10, %c0_11] : memref<8x8x32xf32, #tpu.memory_space<vmem>>, vector<1x8x32xf32>
    %29 = vector.shape_cast %28 : vector<1x8x32xf32> to vector<8x32xf32>
    %cst_12 = arith.constant dense<0.000000e+00> : vector<8x8xf32>
    %30 = tpu.matmul %29, %1, %cst_12 {dimension_numbers = #tpu.dot_dimension_numbers<[1], [0], [0], [1], [0, 0, 1, 1], [], []>} : vector<8x32xf32>, vector<32x8xf32>, vector<8x8xf32> -> vector<8x8xf32>
    %31 = vector.broadcast %2 : vector<1x8xf32> to vector<8x8xf32>
    %32 = arith.addf %30, %31 : vector<8x8xf32>
    %33 = arith.addf %16, %32 : vector<8x8xf32>
    %c2_i32 = arith.constant 2 : i32
    %34 = vector.shape_cast %0 : vector<8x8xf32> to vector<1x8x8xf32>
    %35 = vector.shape_cast %33 : vector<8x8xf32> to vector<8x1x8xf32>
    %36 = vector.broadcast %34 : vector<1x8x8xf32> to vector<8x8x8xf32>
    %37 = vector.broadcast %35 : vector<8x1x8xf32> to vector<8x8x8xf32>
    %38 = arith.addf %36, %37 : vector<8x8x8xf32>
    %cst_13 = arith.constant dense<0xFF800000> : vector<8x8xf32>
    %39 = vector.multi_reduction <maximumf>, %38, %cst_13 [2] : vector<8x8x8xf32> to vector<8x8xf32>
    %40 = vector.shape_cast %39 : vector<8x8xf32> to vector<8x8x1xf32>
    %41 = vector.broadcast %40 : vector<8x8x1xf32> to vector<8x8x8xf32>
    %42 = arith.cmpf oeq, %38, %41 : vector<8x8x8xf32>
    %c8_i32_14 = arith.constant 8 : i32
    %43 = vector.broadcast %c8_i32_14 : i32 to vector<8x8x8xi32>
    %44 = arith.select %42, %3, %43 : vector<8x8x8xi1>, vector<8x8x8xi32>
    %cst_15 = arith.constant dense<2147483647> : vector<8x8xi32>
    %45 = vector.multi_reduction <minsi>, %44, %cst_15 [2] : vector<8x8x8xi32> to vector<8x8xi32>
    %46 = arith.index_cast %c2_i32 : i32 to index
    %c0_16 = arith.constant 0 : index
    %c0_17 = arith.constant 0 : index
    %47 = vector.load %arg7[%46, %c0_16, %c0_17] : memref<8x8x8xi32, #tpu.memory_space<vmem>>, vector<1x8x8xi32>
    %48 = vector.shape_cast %47 : vector<1x8x8xi32> to vector<8x8xi32>
    %49 = vector.shape_cast %45 : vector<8x8xi32> to vector<1x8x8xi32>
    tpu.vector_store %arg7[%46, %c0_16, %c0_17], %49 {strides = array<i32>} : memref<8x8x8xi32, #tpu.memory_space<vmem>>, vector<1x8x8xi32>,
    %50 = arith.index_cast %c2_i32 : i32 to index
    %c0_18 = arith.constant 0 : index
    %c0_19 = arith.constant 0 : index
    %51 = vector.load %arg1[%50, %c0_18, %c0_19] : memref<8x8x32xf32, #tpu.memory_space<vmem>>, vector<1x8x32xf32>
    %52 = vector.shape_cast %51 : vector<1x8x32xf32> to vector<8x32xf32>
    %cst_20 = arith.constant dense<0.000000e+00> : vector<8x8xf32>
    %53 = tpu.matmul %52, %1, %cst_20 {dimension_numbers = #tpu.dot_dimension_numbers<[1], [0], [0], [1], [0, 0, 1, 1], [], []>} : vector<8x32xf32>, vector<32x8xf32>, vector<8x8xf32> -> vector<8x8xf32>
    %54 = vector.broadcast %2 : vector<1x8xf32> to vector<8x8xf32>
    %55 = arith.addf %53, %54 : vector<8x8xf32>
    %56 = arith.addf %39, %55 : vector<8x8xf32>
    %c3_i32 = arith.constant 3 : i32
    %57 = vector.shape_cast %0 : vector<8x8xf32> to vector<1x8x8xf32>
    %58 = vector.shape_cast %56 : vector<8x8xf32> to vector<8x1x8xf32>
    %59 = vector.broadcast %57 : vector<1x8x8xf32> to vector<8x8x8xf32>
    %60 = vector.broadcast %58 : vector<8x1x8xf32> to vector<8x8x8xf32>
    %61 = arith.addf %59, %60 : vector<8x8x8xf32>
    %cst_21 = arith.constant dense<0xFF800000> : vector<8x8xf32>
    %62 = vector.multi_reduction <maximumf>, %61, %cst_21 [2] : vector<8x8x8xf32> to vector<8x8xf32>
    %63 = vector.shape_cast %62 : vector<8x8xf32> to vector<8x8x1xf32>
    %64 = vector.broadcast %63 : vector<8x8x1xf32> to vector<8x8x8xf32>
    %65 = arith.cmpf oeq, %61, %64 : vector<8x8x8xf32>
    %c8_i32_22 = arith.constant 8 : i32
    %66 = vector.broadcast %c8_i32_22 : i32 to vector<8x8x8xi32>
    %67 = arith.select %65, %3, %66 : vector<8x8x8xi1>, vector<8x8x8xi32>
    %cst_23 = arith.constant dense<2147483647> : vector<8x8xi32>
    %68 = vector.multi_reduction <minsi>, %67, %cst_23 [2] : vector<8x8x8xi32> to vector<8x8xi32>
    %69 = arith.index_cast %c3_i32 : i32 to index
    %c0_24 = arith.constant 0 : index
    %c0_25 = arith.constant 0 : index
    %70 = vector.load %arg7[%69, %c0_24, %c0_25] : memref<8x8x8xi32, #tpu.memory_space<vmem>>, vector<1x8x8xi32>
    %71 = vector.shape_cast %70 : vector<1x8x8xi32> to vector<8x8xi32>
    %72 = vector.shape_cast %68 : vector<8x8xi32> to vector<1x8x8xi32>
    tpu.vector_store %arg7[%69, %c0_24, %c0_25], %72 {strides = array<i32>} : memref<8x8x8xi32, #tpu.memory_space<vmem>>, vector<1x8x8xi32>,
    %73 = arith.index_cast %c3_i32 : i32 to index
    %c0_26 = arith.constant 0 : index
    %c0_27 = arith.constant 0 : index
    %74 = vector.load %arg1[%73, %c0_26, %c0_27] : memref<8x8x32xf32, #tpu.memory_space<vmem>>, vector<1x8x32xf32>
    %75 = vector.shape_cast %74 : vector<1x8x32xf32> to vector<8x32xf32>
    %cst_28 = arith.constant dense<0.000000e+00> : vector<8x8xf32>
    %76 = tpu.matmul %75, %1, %cst_28 {dimension_numbers = #tpu.dot_dimension_numbers<[1], [0], [0], [1], [0, 0, 1, 1], [], []>} : vector<8x32xf32>, vector<32x8xf32>, vector<8x8xf32> -> vector<8x8xf32>
    %77 = vector.broadcast %2 : vector<1x8xf32> to vector<8x8xf32>
    %78 = arith.addf %76, %77 : vector<8x8xf32>
    %79 = arith.addf %62, %78 : vector<8x8xf32>
    %c4_i32 = arith.constant 4 : i32
    %80 = vector.shape_cast %0 : vector<8x8xf32> to vector<1x8x8xf32>
    %81 = vector.shape_cast %79 : vector<8x8xf32> to vector<8x1x8xf32>
    %82 = vector.broadcast %80 : vector<1x8x8xf32> to vector<8x8x8xf32>
    %83 = vector.broadcast %81 : vector<8x1x8xf32> to vector<8x8x8xf32>
    %84 = arith.addf %82, %83 : vector<8x8x8xf32>
    %cst_29 = arith.constant dense<0xFF800000> : vector<8x8xf32>
    %85 = vector.multi_reduction <maximumf>, %84, %cst_29 [2] : vector<8x8x8xf32> to vector<8x8xf32>
    %86 = vector.shape_cast %85 : vector<8x8xf32> to vector<8x8x1xf32>
    %87 = vector.broadcast %86 : vector<8x8x1xf32> to vector<8x8x8xf32>
    %88 = arith.cmpf oeq, %84, %87 : vector<8x8x8xf32>
    %c8_i32_30 = arith.constant 8 : i32
    %89 = vector.broadcast %c8_i32_30 : i32 to vector<8x8x8xi32>
    %90 = arith.select %88, %3, %89 : vector<8x8x8xi1>, vector<8x8x8xi32>
    %cst_31 = arith.constant dense<2147483647> : vector<8x8xi32>
    %91 = vector.multi_reduction <minsi>, %90, %cst_31 [2] : vector<8x8x8xi32> to vector<8x8xi32>
    %92 = arith.index_cast %c4_i32 : i32 to index
    %c0_32 = arith.constant 0 : index
    %c0_33 = arith.constant 0 : index
    %93 = vector.load %arg7[%92, %c0_32, %c0_33] : memref<8x8x8xi32, #tpu.memory_space<vmem>>, vector<1x8x8xi32>
    %94 = vector.shape_cast %93 : vector<1x8x8xi32> to vector<8x8xi32>
    %95 = vector.shape_cast %91 : vector<8x8xi32> to vector<1x8x8xi32>
    tpu.vector_store %arg7[%92, %c0_32, %c0_33], %95 {strides = array<i32>} : memref<8x8x8xi32, #tpu.memory_space<vmem>>, vector<1x8x8xi32>,
    %96 = arith.index_cast %c4_i32 : i32 to index
    %c0_34 = arith.constant 0 : index
    %c0_35 = arith.constant 0 : index
    %97 = vector.load %arg1[%96, %c0_34, %c0_35] : memref<8x8x32xf32, #tpu.memory_space<vmem>>, vector<1x8x32xf32>
    %98 = vector.shape_cast %97 : vector<1x8x32xf32> to vector<8x32xf32>
    %cst_36 = arith.constant dense<0.000000e+00> : vector<8x8xf32>
    %99 = tpu.matmul %98, %1, %cst_36 {dimension_numbers = #tpu.dot_dimension_numbers<[1], [0], [0], [1], [0, 0, 1, 1], [], []>} : vector<8x32xf32>, vector<32x8xf32>, vector<8x8xf32> -> vector<8x8xf32>
    %100 = vector.broadcast %2 : vector<1x8xf32> to vector<8x8xf32>
    %101 = arith.addf %99, %100 : vector<8x8xf32>
    %102 = arith.addf %85, %101 : vector<8x8xf32>
    %c5_i32 = arith.constant 5 : i32
    %103 = vector.shape_cast %0 : vector<8x8xf32> to vector<1x8x8xf32>
    %104 = vector.shape_cast %102 : vector<8x8xf32> to vector<8x1x8xf32>
    %105 = vector.broadcast %103 : vector<1x8x8xf32> to vector<8x8x8xf32>
    %106 = vector.broadcast %104 : vector<8x1x8xf32> to vector<8x8x8xf32>
    %107 = arith.addf %105, %106 : vector<8x8x8xf32>
    %cst_37 = arith.constant dense<0xFF800000> : vector<8x8xf32>
    %108 = vector.multi_reduction <maximumf>, %107, %cst_37 [2] : vector<8x8x8xf32> to vector<8x8xf32>
    %109 = vector.shape_cast %108 : vector<8x8xf32> to vector<8x8x1xf32>
    %110 = vector.broadcast %109 : vector<8x8x1xf32> to vector<8x8x8xf32>
    %111 = arith.cmpf oeq, %107, %110 : vector<8x8x8xf32>
    %c8_i32_38 = arith.constant 8 : i32
    %112 = vector.broadcast %c8_i32_38 : i32 to vector<8x8x8xi32>
    %113 = arith.select %111, %3, %112 : vector<8x8x8xi1>, vector<8x8x8xi32>
    %cst_39 = arith.constant dense<2147483647> : vector<8x8xi32>
    %114 = vector.multi_reduction <minsi>, %113, %cst_39 [2] : vector<8x8x8xi32> to vector<8x8xi32>
    %115 = arith.index_cast %c5_i32 : i32 to index
    %c0_40 = arith.constant 0 : index
    %c0_41 = arith.constant 0 : index
    %116 = vector.load %arg7[%115, %c0_40, %c0_41] : memref<8x8x8xi32, #tpu.memory_space<vmem>>, vector<1x8x8xi32>
    %117 = vector.shape_cast %116 : vector<1x8x8xi32> to vector<8x8xi32>
    %118 = vector.shape_cast %114 : vector<8x8xi32> to vector<1x8x8xi32>
    tpu.vector_store %arg7[%115, %c0_40, %c0_41], %118 {strides = array<i32>} : memref<8x8x8xi32, #tpu.memory_space<vmem>>, vector<1x8x8xi32>,
    %119 = arith.index_cast %c5_i32 : i32 to index
    %c0_42 = arith.constant 0 : index
    %c0_43 = arith.constant 0 : index
    %120 = vector.load %arg1[%119, %c0_42, %c0_43] : memref<8x8x32xf32, #tpu.memory_space<vmem>>, vector<1x8x32xf32>
    %121 = vector.shape_cast %120 : vector<1x8x32xf32> to vector<8x32xf32>
    %cst_44 = arith.constant dense<0.000000e+00> : vector<8x8xf32>
    %122 = tpu.matmul %121, %1, %cst_44 {dimension_numbers = #tpu.dot_dimension_numbers<[1], [0], [0], [1], [0, 0, 1, 1], [], []>} : vector<8x32xf32>, vector<32x8xf32>, vector<8x8xf32> -> vector<8x8xf32>
    %123 = vector.broadcast %2 : vector<1x8xf32> to vector<8x8xf32>
    %124 = arith.addf %122, %123 : vector<8x8xf32>
    %125 = arith.addf %108, %124 : vector<8x8xf32>
    %c6_i32_45 = arith.constant 6 : i32
    %126 = vector.shape_cast %0 : vector<8x8xf32> to vector<1x8x8xf32>
    %127 = vector.shape_cast %125 : vector<8x8xf32> to vector<8x1x8xf32>
    %128 = vector.broadcast %126 : vector<1x8x8xf32> to vector<8x8x8xf32>
    %129 = vector.broadcast %127 : vector<8x1x8xf32> to vector<8x8x8xf32>
    %130 = arith.addf %128, %129 : vector<8x8x8xf32>
    %cst_46 = arith.constant dense<0xFF800000> : vector<8x8xf32>
    %131 = vector.multi_reduction <maximumf>, %130, %cst_46 [2] : vector<8x8x8xf32> to vector<8x8xf32>
    %132 = vector.shape_cast %131 : vector<8x8xf32> to vector<8x8x1xf32>
    %133 = vector.broadcast %132 : vector<8x8x1xf32> to vector<8x8x8xf32>
    %134 = arith.cmpf oeq, %130, %133 : vector<8x8x8xf32>
    %c8_i32_47 = arith.constant 8 : i32
    %135 = vector.broadcast %c8_i32_47 : i32 to vector<8x8x8xi32>
    %136 = arith.select %134, %3, %135 : vector<8x8x8xi1>, vector<8x8x8xi32>
    %cst_48 = arith.constant dense<2147483647> : vector<8x8xi32>
    %137 = vector.multi_reduction <minsi>, %136, %cst_48 [2] : vector<8x8x8xi32> to vector<8x8xi32>
    %138 = arith.index_cast %c6_i32_45 : i32 to index
    %c0_49 = arith.constant 0 : index
    %c0_50 = arith.constant 0 : index
    %139 = vector.load %arg7[%138, %c0_49, %c0_50] : memref<8x8x8xi32, #tpu.memory_space<vmem>>, vector<1x8x8xi32>
    %140 = vector.shape_cast %139 : vector<1x8x8xi32> to vector<8x8xi32>
    %141 = vector.shape_cast %137 : vector<8x8xi32> to vector<1x8x8xi32>
    tpu.vector_store %arg7[%138, %c0_49, %c0_50], %141 {strides = array<i32>} : memref<8x8x8xi32, #tpu.memory_space<vmem>>, vector<1x8x8xi32>,
    %142 = arith.index_cast %c6_i32_45 : i32 to index
    %c0_51 = arith.constant 0 : index
    %c0_52 = arith.constant 0 : index
    %143 = vector.load %arg1[%142, %c0_51, %c0_52] : memref<8x8x32xf32, #tpu.memory_space<vmem>>, vector<1x8x32xf32>
    %144 = vector.shape_cast %143 : vector<1x8x32xf32> to vector<8x32xf32>
    %cst_53 = arith.constant dense<0.000000e+00> : vector<8x8xf32>
    %145 = tpu.matmul %144, %1, %cst_53 {dimension_numbers = #tpu.dot_dimension_numbers<[1], [0], [0], [1], [0, 0, 1, 1], [], []>} : vector<8x32xf32>, vector<32x8xf32>, vector<8x8xf32> -> vector<8x8xf32>
    %146 = vector.broadcast %2 : vector<1x8xf32> to vector<8x8xf32>
    %147 = arith.addf %145, %146 : vector<8x8xf32>
    %148 = arith.addf %131, %147 : vector<8x8xf32>
    %c7_i32 = arith.constant 7 : i32
    %149 = vector.shape_cast %0 : vector<8x8xf32> to vector<1x8x8xf32>
    %150 = vector.shape_cast %148 : vector<8x8xf32> to vector<8x1x8xf32>
    %151 = vector.broadcast %149 : vector<1x8x8xf32> to vector<8x8x8xf32>
    %152 = vector.broadcast %150 : vector<8x1x8xf32> to vector<8x8x8xf32>
    %153 = arith.addf %151, %152 : vector<8x8x8xf32>
    %cst_54 = arith.constant dense<0xFF800000> : vector<8x8xf32>
    %154 = vector.multi_reduction <maximumf>, %153, %cst_54 [2] : vector<8x8x8xf32> to vector<8x8xf32>
    %155 = vector.shape_cast %154 : vector<8x8xf32> to vector<8x8x1xf32>
    %156 = vector.broadcast %155 : vector<8x8x1xf32> to vector<8x8x8xf32>
    %157 = arith.cmpf oeq, %153, %156 : vector<8x8x8xf32>
    %c8_i32_55 = arith.constant 8 : i32
    %158 = vector.broadcast %c8_i32_55 : i32 to vector<8x8x8xi32>
    %159 = arith.select %157, %3, %158 : vector<8x8x8xi1>, vector<8x8x8xi32>
    %cst_56 = arith.constant dense<2147483647> : vector<8x8xi32>
    %160 = vector.multi_reduction <minsi>, %159, %cst_56 [2] : vector<8x8x8xi32> to vector<8x8xi32>
    %161 = arith.index_cast %c7_i32 : i32 to index
    %c0_57 = arith.constant 0 : index
    %c0_58 = arith.constant 0 : index
    %162 = vector.load %arg7[%161, %c0_57, %c0_58] : memref<8x8x8xi32, #tpu.memory_space<vmem>>, vector<1x8x8xi32>
    %163 = vector.shape_cast %162 : vector<1x8x8xi32> to vector<8x8xi32>
    %164 = vector.shape_cast %160 : vector<8x8xi32> to vector<1x8x8xi32>
    tpu.vector_store %arg7[%161, %c0_57, %c0_58], %164 {strides = array<i32>} : memref<8x8x8xi32, #tpu.memory_space<vmem>>, vector<1x8x8xi32>,
    %165 = arith.index_cast %c7_i32 : i32 to index
    %c0_59 = arith.constant 0 : index
    %c0_60 = arith.constant 0 : index
    %166 = vector.load %arg1[%165, %c0_59, %c0_60] : memref<8x8x32xf32, #tpu.memory_space<vmem>>, vector<1x8x32xf32>
    %167 = vector.shape_cast %166 : vector<1x8x32xf32> to vector<8x32xf32>
    %cst_61 = arith.constant dense<0.000000e+00> : vector<8x8xf32>
    %168 = tpu.matmul %167, %1, %cst_61 {dimension_numbers = #tpu.dot_dimension_numbers<[1], [0], [0], [1], [0, 0, 1, 1], [], []>} : vector<8x32xf32>, vector<32x8xf32>, vector<8x8xf32> -> vector<8x8xf32>
    %169 = vector.broadcast %2 : vector<1x8xf32> to vector<8x8xf32>
    %170 = arith.addf %168, %169 : vector<8x8xf32>
    %171 = arith.addf %154, %170 : vector<8x8xf32>
    %c7_i32_62 = arith.constant 7 : i32
    %cst_63 = arith.constant dense<0xFF800000> : vector<8xf32>
    %172 = vector.multi_reduction <maximumf>, %171, %cst_63 [1] : vector<8x8xf32> to vector<8xf32>
    %173 = vector.shape_cast %172 : vector<8xf32> to vector<8x1xf32>
    %174 = vector.broadcast %173 : vector<8x1xf32> to vector<8x8xf32>
    %175 = arith.cmpf oeq, %171, %174 : vector<8x8xf32>
    %c8_i32_64 = arith.constant 8 : i32
    %176 = vector.broadcast %c8_i32_64 : i32 to vector<8x8xi32>
    %177 = arith.select %175, %4, %176 : vector<8x8xi1>, vector<8x8xi32>
    %cst_65 = arith.constant dense<2147483647> : vector<8xi32>
    %178 = vector.multi_reduction <minsi>, %177, %cst_65 [1] : vector<8x8xi32> to vector<8xi32>
    %179 = vector.shape_cast %178 : vector<8xi32> to vector<8x1xi32>
    %c0_66 = arith.constant 0 : index
    %c0_67 = arith.constant 0 : index
    %180 = vector.load %arg5[%c0_66, %c0_67] : memref<8x1xf32, #tpu.memory_space<vmem>>, vector<8x1xf32>
    tpu.vector_store %arg5[%c0_66, %c0_67], %173 {strides = array<i32>} : memref<8x1xf32, #tpu.memory_space<vmem>>, vector<8x1xf32>,
    %c7_i32_68 = arith.constant 7 : i32
    %181 = vector.broadcast %c7_i32_68 : i32 to vector<8x8xi32>
    %182 = arith.cmpi eq, %5, %181 : vector<8x8xi32>
    %c0_i32 = arith.constant 0 : i32
    %183 = vector.shape_cast %179 : vector<8x1xi32> to vector<8x1xi32>
    %184 = vector.broadcast %183 : vector<8x1xi32> to vector<8x8xi32>
    %185 = vector.broadcast %c0_i32 : i32 to vector<8x8xi32>
    %186 = arith.select %182, %184, %185 : vector<8x8xi1>, vector<8x8xi32>
    %c0_i32_69 = arith.constant 0 : i32
    %c6_i32_70 = arith.constant 6 : i32
    %187 = arith.subi %c6_i32_70, %c0_i32_69 : i32
    %c1_i32_71 = arith.constant 1 : i32
    %188 = arith.addi %187, %c1_i32_71 : i32
    %189 = arith.index_cast %188 : i32 to index
    %c0_72 = arith.constant 0 : index
    %c0_73 = arith.constant 0 : index
    %190 = vector.load %arg7[%189, %c0_72, %c0_73] : memref<8x8x8xi32, #tpu.memory_space<vmem>>, vector<1x8x8xi32>
    %191 = vector.shape_cast %190 : vector<1x8x8xi32> to vector<8x8xi32>
    %192 = vector.broadcast %179 : vector<8x1xi32> to vector<8x8xi32>
    %193 = arith.cmpi eq, %4, %192 : vector<8x8xi32>
    %c0_i32_74 = arith.constant 0 : i32
    %194 = vector.broadcast %c0_i32_74 : i32 to vector<8x8xi32>
    %195 = arith.select %193, %191, %194 : vector<8x8xi1>, vector<8x8xi32>
    %cst_75 = arith.constant dense<0> : vector<8xi32>
    %196 = vector.multi_reduction <add>, %195, %cst_75 [1] : vector<8x8xi32> to vector<8xi32>
    %197 = vector.shape_cast %196 : vector<8xi32> to vector<8x1xi32>
    %198 = vector.broadcast %187 : i32 to vector<8x8xi32>
    %199 = arith.cmpi eq, %5, %198 : vector<8x8xi32>
    %200 = vector.shape_cast %197 : vector<8x1xi32> to vector<8x1xi32>
    %201 = vector.broadcast %200 : vector<8x1xi32> to vector<8x8xi32>
    %202 = arith.select %199, %201, %186 : vector<8x8xi1>, vector<8x8xi32>
    %c1_i32_76 = arith.constant 1 : i32
    %c6_i32_77 = arith.constant 6 : i32
    %203 = arith.subi %c6_i32_77, %c1_i32_76 : i32
    %c1_i32_78 = arith.constant 1 : i32
    %204 = arith.addi %203, %c1_i32_78 : i32
    %205 = arith.index_cast %204 : i32 to index
    %c0_79 = arith.constant 0 : index
    %c0_80 = arith.constant 0 : index
    %206 = vector.load %arg7[%205, %c0_79, %c0_80] : memref<8x8x8xi32, #tpu.memory_space<vmem>>, vector<1x8x8xi32>
    %207 = vector.shape_cast %206 : vector<1x8x8xi32> to vector<8x8xi32>
    %208 = vector.broadcast %197 : vector<8x1xi32> to vector<8x8xi32>
    %209 = arith.cmpi eq, %4, %208 : vector<8x8xi32>
    %c0_i32_81 = arith.constant 0 : i32
    %210 = vector.broadcast %c0_i32_81 : i32 to vector<8x8xi32>
    %211 = arith.select %209, %207, %210 : vector<8x8xi1>, vector<8x8xi32>
    %cst_82 = arith.constant dense<0> : vector<8xi32>
    %212 = vector.multi_reduction <add>, %211, %cst_82 [1] : vector<8x8xi32> to vector<8xi32>
    %213 = vector.shape_cast %212 : vector<8xi32> to vector<8x1xi32>
    %214 = vector.broadcast %203 : i32 to vector<8x8xi32>
    %215 = arith.cmpi eq, %5, %214 : vector<8x8xi32>
    %216 = vector.shape_cast %213 : vector<8x1xi32> to vector<8x1xi32>
    %217 = vector.broadcast %216 : vector<8x1xi32> to vector<8x8xi32>
    %218 = arith.select %215, %217, %202 : vector<8x8xi1>, vector<8x8xi32>
    %c2_i32_83 = arith.constant 2 : i32
    %c6_i32_84 = arith.constant 6 : i32
    %219 = arith.subi %c6_i32_84, %c2_i32_83 : i32
    %c1_i32_85 = arith.constant 1 : i32
    %220 = arith.addi %219, %c1_i32_85 : i32
    %221 = arith.index_cast %220 : i32 to index
    %c0_86 = arith.constant 0 : index
    %c0_87 = arith.constant 0 : index
    %222 = vector.load %arg7[%221, %c0_86, %c0_87] : memref<8x8x8xi32, #tpu.memory_space<vmem>>, vector<1x8x8xi32>
    %223 = vector.shape_cast %222 : vector<1x8x8xi32> to vector<8x8xi32>
    %224 = vector.broadcast %213 : vector<8x1xi32> to vector<8x8xi32>
    %225 = arith.cmpi eq, %4, %224 : vector<8x8xi32>
    %c0_i32_88 = arith.constant 0 : i32
    %226 = vector.broadcast %c0_i32_88 : i32 to vector<8x8xi32>
    %227 = arith.select %225, %223, %226 : vector<8x8xi1>, vector<8x8xi32>
    %cst_89 = arith.constant dense<0> : vector<8xi32>
    %228 = vector.multi_reduction <add>, %227, %cst_89 [1] : vector<8x8xi32> to vector<8xi32>
    %229 = vector.shape_cast %228 : vector<8xi32> to vector<8x1xi32>
    %230 = vector.broadcast %219 : i32 to vector<8x8xi32>
    %231 = arith.cmpi eq, %5, %230 : vector<8x8xi32>
    %232 = vector.shape_cast %229 : vector<8x1xi32> to vector<8x1xi32>
    %233 = vector.broadcast %232 : vector<8x1xi32> to vector<8x8xi32>
    %234 = arith.select %231, %233, %218 : vector<8x8xi1>, vector<8x8xi32>
    %c3_i32_90 = arith.constant 3 : i32
    %c6_i32_91 = arith.constant 6 : i32
    %235 = arith.subi %c6_i32_91, %c3_i32_90 : i32
    %c1_i32_92 = arith.constant 1 : i32
    %236 = arith.addi %235, %c1_i32_92 : i32
    %237 = arith.index_cast %236 : i32 to index
    %c0_93 = arith.constant 0 : index
    %c0_94 = arith.constant 0 : index
    %238 = vector.load %arg7[%237, %c0_93, %c0_94] : memref<8x8x8xi32, #tpu.memory_space<vmem>>, vector<1x8x8xi32>
    %239 = vector.shape_cast %238 : vector<1x8x8xi32> to vector<8x8xi32>
    %240 = vector.broadcast %229 : vector<8x1xi32> to vector<8x8xi32>
    %241 = arith.cmpi eq, %4, %240 : vector<8x8xi32>
    %c0_i32_95 = arith.constant 0 : i32
    %242 = vector.broadcast %c0_i32_95 : i32 to vector<8x8xi32>
    %243 = arith.select %241, %239, %242 : vector<8x8xi1>, vector<8x8xi32>
    %cst_96 = arith.constant dense<0> : vector<8xi32>
    %244 = vector.multi_reduction <add>, %243, %cst_96 [1] : vector<8x8xi32> to vector<8xi32>
    %245 = vector.shape_cast %244 : vector<8xi32> to vector<8x1xi32>
    %246 = vector.broadcast %235 : i32 to vector<8x8xi32>
    %247 = arith.cmpi eq, %5, %246 : vector<8x8xi32>
    %248 = vector.shape_cast %245 : vector<8x1xi32> to vector<8x1xi32>
    %249 = vector.broadcast %248 : vector<8x1xi32> to vector<8x8xi32>
    %250 = arith.select %247, %249, %234 : vector<8x8xi1>, vector<8x8xi32>
    %c4_i32_97 = arith.constant 4 : i32
    %c6_i32_98 = arith.constant 6 : i32
    %251 = arith.subi %c6_i32_98, %c4_i32_97 : i32
    %c1_i32_99 = arith.constant 1 : i32
    %252 = arith.addi %251, %c1_i32_99 : i32
    %253 = arith.index_cast %252 : i32 to index
    %c0_100 = arith.constant 0 : index
    %c0_101 = arith.constant 0 : index
    %254 = vector.load %arg7[%253, %c0_100, %c0_101] : memref<8x8x8xi32, #tpu.memory_space<vmem>>, vector<1x8x8xi32>
    %255 = vector.shape_cast %254 : vector<1x8x8xi32> to vector<8x8xi32>
    %256 = vector.broadcast %245 : vector<8x1xi32> to vector<8x8xi32>
    %257 = arith.cmpi eq, %4, %256 : vector<8x8xi32>
    %c0_i32_102 = arith.constant 0 : i32
    %258 = vector.broadcast %c0_i32_102 : i32 to vector<8x8xi32>
    %259 = arith.select %257, %255, %258 : vector<8x8xi1>, vector<8x8xi32>
    %cst_103 = arith.constant dense<0> : vector<8xi32>
    %260 = vector.multi_reduction <add>, %259, %cst_103 [1] : vector<8x8xi32> to vector<8xi32>
    %261 = vector.shape_cast %260 : vector<8xi32> to vector<8x1xi32>
    %262 = vector.broadcast %251 : i32 to vector<8x8xi32>
    %263 = arith.cmpi eq, %5, %262 : vector<8x8xi32>
    %264 = vector.shape_cast %261 : vector<8x1xi32> to vector<8x1xi32>
    %265 = vector.broadcast %264 : vector<8x1xi32> to vector<8x8xi32>
    %266 = arith.select %263, %265, %250 : vector<8x8xi1>, vector<8x8xi32>
    %c5_i32_104 = arith.constant 5 : i32
    %c6_i32_105 = arith.constant 6 : i32
    %267 = arith.subi %c6_i32_105, %c5_i32_104 : i32
    %c1_i32_106 = arith.constant 1 : i32
    %268 = arith.addi %267, %c1_i32_106 : i32
    %269 = arith.index_cast %268 : i32 to index
    %c0_107 = arith.constant 0 : index
    %c0_108 = arith.constant 0 : index
    %270 = vector.load %arg7[%269, %c0_107, %c0_108] : memref<8x8x8xi32, #tpu.memory_space<vmem>>, vector<1x8x8xi32>
    %271 = vector.shape_cast %270 : vector<1x8x8xi32> to vector<8x8xi32>
    %272 = vector.broadcast %261 : vector<8x1xi32> to vector<8x8xi32>
    %273 = arith.cmpi eq, %4, %272 : vector<8x8xi32>
    %c0_i32_109 = arith.constant 0 : i32
    %274 = vector.broadcast %c0_i32_109 : i32 to vector<8x8xi32>
    %275 = arith.select %273, %271, %274 : vector<8x8xi1>, vector<8x8xi32>
    %cst_110 = arith.constant dense<0> : vector<8xi32>
    %276 = vector.multi_reduction <add>, %275, %cst_110 [1] : vector<8x8xi32> to vector<8xi32>
    %277 = vector.shape_cast %276 : vector<8xi32> to vector<8x1xi32>
    %278 = vector.broadcast %267 : i32 to vector<8x8xi32>
    %279 = arith.cmpi eq, %5, %278 : vector<8x8xi32>
    %280 = vector.shape_cast %277 : vector<8x1xi32> to vector<8x1xi32>
    %281 = vector.broadcast %280 : vector<8x1xi32> to vector<8x8xi32>
    %282 = arith.select %279, %281, %266 : vector<8x8xi1>, vector<8x8xi32>
    %c6_i32_111 = arith.constant 6 : i32
    %c6_i32_112 = arith.constant 6 : i32
    %283 = arith.subi %c6_i32_112, %c6_i32_111 : i32
    %c1_i32_113 = arith.constant 1 : i32
    %284 = arith.addi %283, %c1_i32_113 : i32
    %285 = arith.index_cast %284 : i32 to index
    %c0_114 = arith.constant 0 : index
    %c0_115 = arith.constant 0 : index
    %286 = vector.load %arg7[%285, %c0_114, %c0_115] : memref<8x8x8xi32, #tpu.memory_space<vmem>>, vector<1x8x8xi32>
    %287 = vector.shape_cast %286 : vector<1x8x8xi32> to vector<8x8xi32>
    %288 = vector.broadcast %277 : vector<8x1xi32> to vector<8x8xi32>
    %289 = arith.cmpi eq, %4, %288 : vector<8x8xi32>
    %c0_i32_116 = arith.constant 0 : i32
    %290 = vector.broadcast %c0_i32_116 : i32 to vector<8x8xi32>
    %291 = arith.select %289, %287, %290 : vector<8x8xi1>, vector<8x8xi32>
    %cst_117 = arith.constant dense<0> : vector<8xi32>
    %292 = vector.multi_reduction <add>, %291, %cst_117 [1] : vector<8x8xi32> to vector<8xi32>
    %293 = vector.shape_cast %292 : vector<8xi32> to vector<8x1xi32>
    %294 = vector.broadcast %283 : i32 to vector<8x8xi32>
    %295 = arith.cmpi eq, %5, %294 : vector<8x8xi32>
    %296 = vector.shape_cast %293 : vector<8x1xi32> to vector<8x1xi32>
    %297 = vector.broadcast %296 : vector<8x1xi32> to vector<8x8xi32>
    %298 = arith.select %295, %297, %282 : vector<8x8xi1>, vector<8x8xi32>
    %c7_i32_118 = arith.constant 7 : i32
    %c0_119 = arith.constant 0 : index
    %c0_120 = arith.constant 0 : index
    %299 = vector.load %arg6[%c0_119, %c0_120] : memref<8x8xi32, #tpu.memory_space<vmem>>, vector<8x8xi32>
    tpu.vector_store %arg6[%c0_119, %c0_120], %298 {strides = array<i32>} : memref<8x8xi32, #tpu.memory_space<vmem>>, vector<8x8xi32>,
    return
  }
  func.func @transform_0(%arg0: i32) -> (i32, i32, i32) {
    %c0_i32 = arith.constant 0 : i32
    %c0_i32_0 = arith.constant 0 : i32
    %c0_i32_1 = arith.constant 0 : i32
    return %c0_i32, %arg0, %c0_i32_0 : i32, i32, i32
  }
  func.func @transform_1(%arg0: i32) -> (i32, i32) {
    %c0_i32 = arith.constant 0 : i32
    %c0_i32_0 = arith.constant 0 : i32
    %c0_i32_1 = arith.constant 0 : i32
    return %c0_i32, %c0_i32_0 : i32, i32
  }
  func.func @transform_2(%arg0: i32) -> (i32, i32) {
    %c0_i32 = arith.constant 0 : i32
    %c0_i32_0 = arith.constant 0 : i32
    %c0_i32_1 = arith.constant 0 : i32
    return %c0_i32, %c0_i32_0 : i32, i32
  }
  func.func @transform_3(%arg0: i32) -> (i32, i32) {
    %c0_i32 = arith.constant 0 : i32
    %c0_i32_0 = arith.constant 0 : i32
    %c0_i32_1 = arith.constant 0 : i32
    return %c0_i32, %c0_i32_0 : i32, i32
  }
  func.func @transform_4(%arg0: i32) -> (i32, i32) {
    %c0_i32 = arith.constant 0 : i32
    %c0_i32_0 = arith.constant 0 : i32
    return %arg0, %c0_i32 : i32, i32
  }
  func.func @transform_5(%arg0: i32) -> (i32, i32) {
    %c0_i32 = arith.constant 0 : i32
    %c0_i32_0 = arith.constant 0 : i32
    return %arg0, %c0_i32 : i32, i32
  }
}

</mosaic_0001>

<llo_original>
// kernel: tpu_custom_call.1
$region0: #{tpu_custom_call.1}
  #allocation0 [shape = 'u32[]', space=smem, size = 0x4, offset = 0x4, fixed_abs, tag = 'smem constant byte address 0x4 - core index']
  #allocation1 [shape = 'u32[144,128]{1,0:T(1,128)}', space=vmem, size = 0x12000, scoped, tag = 'internal scratch']
  #allocation2 [shape = 's32[8,8,8]{2,1,0:T(8,128)}', space=vmem, size = 0x8000, scoped, tag = 'scratch operand']
  %s0 = inlined_call_operand.hbm [shape: f32[8,16,32], index: 0, kind: input, shape index: {}]
  %s1 = inlined_call_operand.vmem [shape: f32[32,8], index: 1, kind: input, shape index: {}]
  %s2 = inlined_call_operand.vmem [shape: f32[1,8], index: 2, kind: input, shape index: {}]
  %s3 = inlined_call_operand.vmem [shape: f32[8,8], index: 3, kind: input, shape index: {}]
  %s4 = inlined_call_operand.vmem [shape: f32[16,1], index: 4, kind: output, shape index: {0}]
  %s5 = inlined_call_operand.vmem [shape: s32[16,8], index: 5, kind: output, shape index: {1}]
  %6 = xla_tuple %s4, %s5
  %s7 = sld [smem:[#allocation0]]
  $region61: #{tpu_custom_call.1} parent=0
    _
  %s9 = ssub.s32 1, %s7
  %s10 = scalar_select 0, %s9, %s7
  $region1: #{tpu_custom_call.1} parent=0
    #allocation3 [shape = 'u8[65536]{0}', space=vmem, size = 0x10000, scoped, tag = 'input window, operand 0']
    #allocation4 [shape = 's32[2]{0}', space=sflag, size = 0x8, scoped, tag = 'scoped memory for tpu_custom_call.1']
    %11 = vsyncpa [#allocation4], 0
    %s12 = scalar_lea.sflag [#allocation4], 1
    %13 = vsyncpa %s12, 0
    loop: start=0, step=1, limit=4
    $region2: #{tpu_custom_call.1} parent=1 // loop_pre_header
      _
    $region3: #{tpu_custom_call.1} parent=1 // loop_header
      %s15 = sphi 0, %s19
      %p16 = scmp.ge.s32.totalorder %s15, 4
      %s25 = sphi 0, %s27
      %s28 = sphi 0, %s25
      %s29 = sphi 0, %s28
      %s45 = sphi 0, %s29
      %s49 = sphi 0, %s49
      %s51 = sphi 0, %s49
      %s52 = sphi 0, %s51
      %s66 = sphi 0, %s52
      %s70 = sphi 0, %s70
      %s72 = sphi 0, %s70
      %s73 = sphi 0, %s72
      %s87 = sphi 0, %s73
      %s91 = sphi 0, %s91
      %s93 = sphi 0, %s91
      %s94 = sphi 0, %s93
      %s108 = sphi 0, %s94
      %s114 = sphi 0, %s116
      %s117 = sphi 0, %s114
      %s118 = sphi 0, %s117
      %s134 = sphi 0, %s118
      %s140 = sphi 0, %s142
      %s143 = sphi 0, %s140
      %s144 = sphi 0, %s143
      %s160 = sphi 0, %s144
    $region4: #{tpu_custom_call.1} parent=1 // loop_header_branch
      %18 = sbr.rel (%p16) target = $region8
    $region5: #{tpu_custom_call.1} parent=1 // loop_body
      %s20 = ssub.s32 %s15, 1
      %s21 = ssub.s32 %s15, 2
      %s22 = sadd.s32 %s15, 1
      %s23 = ssub.s32 %s15, %s22
      %p24 = scmp.eq.s32.totalorder %s23, 0
      %s26 = sadd.s32 %s25, 1
      %s27 = scalar_select %p24, %s25, %s26
      %p30 = pneg %p24
      %p31 = scmp.eq.s32.totalorder %s15, 1
      %p32 = por %p30, %p31
      %p33 = scmp.ne.s32.totalorder %s25, %s28
      %p34 = scmp.eq.s32.totalorder %s15, 0
      %p35 = por %p33, %p34
      %p36 = scmp.ne.s32.totalorder %s25, %s28
      %p37 = scmp.eq.s32.totalorder %s20, 1
      %p38 = por %p36, %p37
      %p39 = scmp.ne.s32.totalorder %s28, %s29
      %p40 = scmp.eq.s32.totalorder %s20, 0
      %p41 = por %p39, %p40
      %p42 = scmp.ne.s32.totalorder %s28, %s29
      %p43 = scmp.eq.s32.totalorder %s21, 1
      %p44 = por %p42, %p43
      %p46 = scmp.ne.s32.totalorder %s29, %s45
      %p47 = scmp.eq.s32.totalorder %s21, 0
      %p48 = por %p46, %p47
      %s50 = sadd.s32 %s49, 1
      %p53 = scmp.eq.s32.totalorder %s15, 1
      %p54 = scmp.ne.s32.totalorder %s49, %s51
      %p55 = scmp.eq.s32.totalorder %s15, 0
      %p56 = por %p54, %p55
      %p57 = scmp.ne.s32.totalorder %s49, %s51
      %p58 = scmp.eq.s32.totalorder %s20, 1
      %p59 = por %p57, %p58
      %p60 = scmp.ne.s32.totalorder %s51, %s52
      %p61 = scmp.eq.s32.totalorder %s20, 0
      %p62 = por %p60, %p61
      %p63 = scmp.ne.s32.totalorder %s51, %s52
      %p64 = scmp.eq.s32.totalorder %s21, 1
      %p65 = por %p63, %p64
      %p67 = scmp.ne.s32.totalorder %s52, %s66
      %p68 = scmp.eq.s32.totalorder %s21, 0
      %p69 = por %p67, %p68
      %s71 = sadd.s32 %s70, 1
      %p74 = scmp.eq.s32.totalorder %s15, 1
      %p75 = scmp.ne.s32.totalorder %s70, %s72
      %p76 = scmp.eq.s32.totalorder %s15, 0
      %p77 = por %p75, %p76
      %p78 = scmp.ne.s32.totalorder %s70, %s72
      %p79 = scmp.eq.s32.totalorder %s20, 1
      %p80 = por %p78, %p79
      %p81 = scmp.ne.s32.totalorder %s72, %s73
      %p82 = scmp.eq.s32.totalorder %s20, 0
      %p83 = por %p81, %p82
      %p84 = scmp.ne.s32.totalorder %s72, %s73
      %p85 = scmp.eq.s32.totalorder %s21, 1
      %p86 = por %p84, %p85
      %p88 = scmp.ne.s32.totalorder %s73, %s87
      %p89 = scmp.eq.s32.totalorder %s21, 0
      %p90 = por %p88, %p89
      %s92 = sadd.s32 %s91, 1
      %p95 = scmp.eq.s32.totalorder %s15, 1
      %p96 = scmp.ne.s32.totalorder %s91, %s93
      %p97 = scmp.eq.s32.totalorder %s15, 0
      %p98 = por %p96, %p97
      %p99 = scmp.ne.s32.totalorder %s91, %s93
      %p100 = scmp.eq.s32.totalorder %s20, 1
      %p101 = por %p99, %p100
      %p102 = scmp.ne.s32.totalorder %s93, %s94
      %p103 = scmp.eq.s32.totalorder %s20, 0
      %p104 = por %p102, %p103
      %p105 = scmp.ne.s32.totalorder %s93, %s94
      %p106 = scmp.eq.s32.totalorder %s21, 1
      %p107 = por %p105, %p106
      %p109 = scmp.ne.s32.totalorder %s94, %s108
      %p110 = scmp.eq.s32.totalorder %s21, 0
      %p111 = por %p109, %p110
      %s112 = ssub.s32 %s15, %s22
      %p113 = scmp.eq.s32.totalorder %s112, 0
      %s115 = sadd.s32 %s114, 1
      %s116 = scalar_select %p113, %s114, %s115
      %p119 = pneg %p113
      %p120 = scmp.eq.s32.totalorder %s15, 1
      %p121 = por %p119, %p120
      %p122 = scmp.ne.s32.totalorder %s114, %s117
      %p123 = scmp.eq.s32.totalorder %s15, 0
      %p124 = por %p122, %p123
      %p125 = scmp.ne.s32.totalorder %s114, %s117
      %p126 = scmp.eq.s32.totalorder %s20, 1
      %p127 = por %p125, %p126
      %p128 = scmp.ne.s32.totalorder %s117, %s118
      %p129 = scmp.eq.s32.totalorder %s20, 0
      %p130 = por %p128, %p129
      %p131 = scmp.ne.s32.totalorder %s117, %s118
      %p132 = scmp.eq.s32.totalorder %s21, 1
      %p133 = por %p131, %p132
      %p135 = scmp.ne.s32.totalorder %s118, %s134
      %p136 = scmp.eq.s32.totalorder %s21, 0
      %p137 = por %p135, %p136
      %s138 = ssub.s32 %s15, %s22
      %p139 = scmp.eq.s32.totalorder %s138, 0
      %s141 = sadd.s32 %s140, 1
      %s142 = scalar_select %p139, %s140, %s141
      %p145 = pneg %p139
      %p146 = scmp.eq.s32.totalorder %s15, 1
      %p147 = por %p145, %p146
      %p148 = scmp.ne.s32.totalorder %s140, %s143
      %p149 = scmp.eq.s32.totalorder %s15, 0
      %p150 = por %p148, %p149
      %p151 = scmp.ne.s32.totalorder %s140, %s143
      %p152 = scmp.eq.s32.totalorder %s20, 1
      %p153 = por %p151, %p152
      %p154 = scmp.ne.s32.totalorder %s143, %s144
      %p155 = scmp.eq.s32.totalorder %s20, 0
      %p156 = por %p154, %p155
      %p157 = scmp.ne.s32.totalorder %s143, %s144
      %p158 = scmp.eq.s32.totalorder %s21, 1
      %p159 = por %p157, %p158
      %p161 = scmp.ne.s32.totalorder %s144, %s160
      %p162 = scmp.eq.s32.totalorder %s21, 0
      %p163 = por %p161, %p162
      %p164 = scmp.le.s32.totalorder 1, %s15
      %p165 = scmp.lt.s32.totalorder %s15, 3
      %p166 = pnand %p164, %p165
      %p167 = pneg %p166
      // Predicated region
      $region9: #{tpu_custom_call.1} parent=5 // pred_check
        _
      $region10: #{tpu_custom_call.1} parent=5 // pred_check_branch
        %169 = sbr.rel (%p166) target = $region12
      $region11: #{tpu_custom_call.1} parent=5 // pred_region
        %s170 = ssub.s32 %s15, 1
        // Predicated region
        $region13: #{tpu_custom_call.1} parent=11 // pred_check
          %p171 = pneg %p62
        $region14: #{tpu_custom_call.1} parent=11 // pred_check_branch
          %173 = sbr.rel (%p171) target = $region16
        $region15: #{tpu_custom_call.1} parent=11 // pred_region
          _
        $region16: #{tpu_custom_call.1} parent=11 // pred_fallthru
          _
        // Predicated region
        $region17: #{tpu_custom_call.1} parent=11 // pred_check
          %p174 = pneg %p83
        $region18: #{tpu_custom_call.1} parent=11 // pred_check_branch
          %176 = sbr.rel (%p174) target = $region20
        $region19: #{tpu_custom_call.1} parent=11 // pred_region
          _
        $region20: #{tpu_custom_call.1} parent=11 // pred_fallthru
          _
        // Predicated region
        $region21: #{tpu_custom_call.1} parent=11 // pred_check
          %p177 = pneg %p104
        $region22: #{tpu_custom_call.1} parent=11 // pred_check_branch
          %179 = sbr.rel (%p177) target = $region24
        $region23: #{tpu_custom_call.1} parent=11 // pred_region
          _
        $region24: #{tpu_custom_call.1} parent=11 // pred_fallthru
          _
      $region12: #{tpu_custom_call.1} parent=5 // pred_fallthru
        _
      %p180 = scmp.lt.s32.totalorder %s15, 2
      // Predicated region
      $region25: #{tpu_custom_call.1} parent=5 // pred_check
        %p181 = pneg %p180
      $region26: #{tpu_custom_call.1} parent=5 // pred_check_branch
        %183 = sbr.rel (%p181) target = $region28
      $region27: #{tpu_custom_call.1} parent=5 // pred_region
        // Predicated region
        $region29: #{tpu_custom_call.1} parent=27 // pred_check
          %p184 = pneg %p35
        $region30: #{tpu_custom_call.1} parent=27 // pred_check_branch
          %186 = sbr.rel (%p184) target = $region32
        $region31: #{tpu_custom_call.1} parent=27 // pred_region
          %s187 = sand.u32 %s25, 1
          %s188 = scalar_lea.sflag [#allocation4], %s187
          %s189 = sand.u32 %s25, 1
          %s190 = smul.addr %s189, 64
          %s191 = scalar_lea.vmem [#allocation3], %s190
          %s193 = ssub.s32 1024, 1024
          %194 = vsyncadd %s188, %s193
          %s195 = smul.addr %s15, 128
          %s196 = scalar_lea.hbm %s0, %s195
          %s197 = sshll.u32 %s191, 4
          %s198 = int_to_ptr.vmem [resolvable:$true] %s197
          %203 = dma.hbm_to_vmem [thread:$0]  %s196, 1024, %s198, %s188, 256, 128, 8
        $region32: #{tpu_custom_call.1} parent=27 // pred_fallthru
          _
      $region28: #{tpu_custom_call.1} parent=5 // pred_fallthru
        _
      %p204 = scmp.le.s32.totalorder 1, %s15
      %p205 = scmp.lt.s32.totalorder %s15, 3
      %p206 = pnand %p204, %p205
      %p207 = pneg %p206
      // Predicated region
      $region33: #{tpu_custom_call.1} parent=5 // pred_check
        _
      $region34: #{tpu_custom_call.1} parent=5 // pred_check_branch
        %209 = sbr.rel (%p206) target = $region36
      $region35: #{tpu_custom_call.1} parent=5 // pred_region
        %s210 = ssub.s32 %s15, 1
        %s211 = sand.u32 %s28, 1
        %s212 = scalar_lea.sflag [#allocation4], %s211
        %s213 = sand.u32 %s28, 1
        %s214 = smul.addr %s213, 64
        %s215 = scalar_lea.vmem [#allocation3], %s214
        // Predicated region
        $region37: #{tpu_custom_call.1} parent=35 // pred_check
          %p216 = pneg %p41
        $region38: #{tpu_custom_call.1} parent=35 // pred_check_branch
          %218 = sbr.rel (%p216) target = $region40
        $region39: #{tpu_custom_call.1} parent=35 // pred_region
          %219 = dma.done %s212, 1024
        $region40: #{tpu_custom_call.1} parent=35 // pred_fallthru
          _
        %s220 = sand.u32 %s28, 1
        %s221 = scalar_lea.sflag [#allocation4], %s220
        %s222 = sand.u32 %s28, 1
        %s223 = smul.addr %s222, 64
        %s224 = scalar_lea.vmem [#allocation3], %s223
        %p225 = pneg %p41
        %p226 = pneg %p38
        %p227 = pneg %p62
        %p228 = pneg %p59
        %p229 = pneg %p83
        %p230 = pneg %p80
        %p231 = pneg %p104
        %p232 = pneg %p101
        %p233 = pneg %p130
        %p234 = pneg %p127
        %p235 = scmp.lt.s32.totalorder %s20, 1
        %s236 = scalar_select %p235, %s20, 1
        %s237 = smul.addr %s236, 8
        %s238 = scalar_lea.vmem %s4, %s237
        %p239 = pneg %p156
        %p240 = pneg %p153
        %p241 = scmp.lt.s32.totalorder %s20, 1
        %s242 = scalar_select %p241, %s20, 1
        %s243 = smul.addr %s242, 8
        %s244 = scalar_lea.vmem %s5, %s243
        %p245 = scmp.lt.s32.totalorder %s20, 1
        %s246 = scalar_select %p245, %s20, 1
        %s247 = smul.addr %s246, 8
        %s248 = scalar_lea.vmem %s4, %s247
        %p249 = scmp.lt.s32.totalorder %s20, 1
        %s250 = scalar_select %p249, %s20, 1
        %s251 = smul.addr %s250, 8
        %s252 = scalar_lea.vmem %s5, %s251
        %v253 = vld [vmem:[%s3] sm:$0xff]
        %v254 = vld [vmem:[%s1] sm:$0xff]
        %v255 = vld [vmem:[%s1 + $0x8] sm:$0xff]
        %v256 = vld [vmem:[%s1 + $0x10] sm:$0xff]
        %v257 = vld [vmem:[%s1 + $0x18] sm:$0xff]
        %v258 = vld [vmem:[%s2] sm:$0x1]
        %v259 = vlaneseq
        %v260 = vand.u32 %v259, 127
        %vm261 = vcmp.eq.s32.totalorder %v260, 6
        %v262 = vsel %vm261, 0.0, -10000.0
        %v264 = vcombine.high %v262, %v262
        %v266 = vunpack.c.l.s4 1966171168
        %v267 = vunpack.c.0.s8 %v266
        %v268 = vlaneseq
        %v269 = vshrl.u32 %v268, 7
        %v270 = vsub.s32 %v267, %v269
        %v271 = vrot.slane %v262, %v270
        %v273 = vunpack.c.l.s4 1966171168
        %v274 = vunpack.c.0.s8 %v273
        %v275 = vlaneseq
        %v276 = vshrl.u32 %v275, 7
        %v277 = vsub.s32 %v274, %v276
        %v278 = vrot.slane %v264, %v277
        %v279 = vcombine.high %v271, %v271
        %v280 = vcombine.high %v278, %v278
        %v282 = vunpack.c.l.s4 1966171168
        %v283 = vunpack.c.0.s8 %v282
        %v284 = vlaneseq
        %v285 = vshrl.u32 %v284, 7
        %v286 = vsub.s32 %v283, %v285
        %v287 = vrot.slane %v271, %v286
        %v289 = vunpack.c.l.s4 1966171168
        %v290 = vunpack.c.0.s8 %v289
        %v291 = vlaneseq
        %v292 = vshrl.u32 %v291, 7
        %v293 = vsub.s32 %v290, %v292
        %v294 = vrot.slane %v278, %v293
        %v296 = vunpack.c.l.s4 1966171168
        %v297 = vunpack.c.0.s8 %v296
        %v298 = vlaneseq
        %v299 = vshrl.u32 %v298, 7
        %v300 = vsub.s32 %v297, %v299
        %v301 = vrot.slane %v279, %v300
        %v303 = vunpack.c.l.s4 1966171168
        %v304 = vunpack.c.0.s8 %v303
        %v305 = vlaneseq
        %v306 = vshrl.u32 %v305, 7
        %v307 = vsub.s32 %v304, %v306
        %v308 = vrot.slane %v280, %v307
        %v309 = vcombine.high %v287, %v287
        %v310 = vcombine.high %v294, %v294
        %v311 = vcombine.high %v301, %v301
        %v312 = vcombine.high %v308, %v308
        %v313 = vlaneseq
        %v314 = vshrl.u32 %v313, 7
        %v315 = vsub.s32 0, %v314
        %v316 = vrot.slane %v287, %v315
        %v317 = vlaneseq
        %v318 = vshrl.u32 %v317, 7
        %v319 = vsub.s32 0, %v318
        %v320 = vrot.slane %v301, %v319
        %v321 = vlaneseq
        %v322 = vshrl.u32 %v321, 7
        %v323 = vsub.s32 0, %v322
        %v324 = vrot.slane %v309, %v323
        %v325 = vlaneseq
        %v326 = vshrl.u32 %v325, 7
        %v327 = vsub.s32 0, %v326
        %v328 = vrot.slane %v311, %v327
        %v329 = vlaneseq
        %v330 = vshrl.u32 %v329, 7
        %v331 = vsub.s32 0, %v330
        %v332 = vrot.slane %v294, %v331
        %v333 = vlaneseq
        %v334 = vshrl.u32 %v333, 7
        %v335 = vsub.s32 0, %v334
        %v336 = vrot.slane %v308, %v335
        %v337 = vlaneseq
        %v338 = vshrl.u32 %v337, 7
        %v339 = vsub.s32 0, %v338
        %v340 = vrot.slane %v310, %v339
        %v341 = vlaneseq
        %v342 = vshrl.u32 %v341, 7
        %v343 = vsub.s32 0, %v342
        %v344 = vrot.slane %v312, %v343
        %v353 = vadd.f32 %v253, %v316
        %v354 = vadd.f32 %v253, %v320
        %v355 = vadd.f32 %v253, %v324
        %v356 = vadd.f32 %v253, %v328
        %v357 = vadd.f32 %v253, %v332
        %v358 = vadd.f32 %v253, %v336
        %v359 = vadd.f32 %v253, %v340
        %v360 = vadd.f32 %v253, %v344
        %vm361 = vcmask 64512
        %v362 = vsel %vm361, %v353, -inf
        %363 = vmax.xlane.f32.xlu0 %v362
        %v364 = vpop.xlane.xlu0 %363
        %v365 = vsel %vm361, %v354, -inf
        %366 = vmax.xlane.f32.xlu0 %v365
        %v367 = vpop.xlane.xlu0 %366
        %v368 = vsel %vm361, %v355, -inf
        %369 = vmax.xlane.f32.xlu0 %v368
        %v370 = vpop.xlane.xlu0 %369
        %v371 = vsel %vm361, %v356, -inf
        %372 = vmax.xlane.f32.xlu0 %v371
        %v373 = vpop.xlane.xlu0 %372
        %v374 = vsel %vm361, %v357, -inf
        %375 = vmax.xlane.f32.xlu0 %v374
        %v376 = vpop.xlane.xlu0 %375
        %v377 = vsel %vm361, %v358, -inf
        %378 = vmax.xlane.f32.xlu0 %v377
        %v379 = vpop.xlane.xlu0 %378
        %v380 = vsel %vm361, %v359, -inf
        %381 = vmax.xlane.f32.xlu0 %v380
        %v382 = vpop.xlane.xlu0 %381
        %v383 = vsel %vm361, %v360, -inf
        %384 = vmax.xlane.f32.xlu0 %v383
        %v385 = vpop.xlane.xlu0 %384
        %vm386 = vcmp.eq.f32.partialorder %v353, %v364
        %vm387 = vcmp.eq.f32.partialorder %v354, %v367
        %vm388 = vcmp.eq.f32.partialorder %v355, %v370
        %vm389 = vcmp.eq.f32.partialorder %v356, %v373
        %vm390 = vcmp.eq.f32.partialorder %v357, %v376
        %vm391 = vcmp.eq.f32.partialorder %v358, %v379
        %vm392 = vcmp.eq.f32.partialorder %v359, %v382
        %vm393 = vcmp.eq.f32.partialorder %v360, %v385
        %v394 = vsel %vm386, %v260, 8
        %v395 = vsel %vm387, %v260, 8
        %v396 = vsel %vm388, %v260, 8
        %v397 = vsel %vm389, %v260, 8
        %v398 = vsel %vm390, %v260, 8
        %v399 = vsel %vm391, %v260, 8
        %v400 = vsel %vm392, %v260, 8
        %v401 = vsel %vm393, %v260, 8
        %v402 = vsel %vm361, %v394, 2147483647
        %v403 = vand.u32 %v402, 65535
        %v404 = vshra.s32 %v402, 16
        %v405 = vcvt.s32.f32 %v403
        %v406 = vcvt.s32.f32 %v404
        %407 = vmin.xlane.f32.xlu0 %v406
        %v408 = vpop.xlane.xlu0 %407
        %vm409 = vcmp.eq.f32.partialorder %v406, %v408
        %v410 = vsel %vm409, %v405, inf
        %411 = vmin.xlane.f32.xlu0 %v410
        %v412 = vpop.xlane.xlu0 %411
        %v413 = vcvt.f32.s32 %v412
        %v414 = vcvt.f32.s32 %v408
        %v415 = vshll.u32 %v414, 16
        %v416 = vadd.s32 %v415, %v413
        %v417 = vsel %vm361, %v395, 2147483647
        %v418 = vand.u32 %v417, 65535
        %v419 = vshra.s32 %v417, 16
        %v420 = vcvt.s32.f32 %v418
        %v421 = vcvt.s32.f32 %v419
        %422 = vmin.xlane.f32.xlu0 %v421
        %v423 = vpop.xlane.xlu0 %422
        %vm424 = vcmp.eq.f32.partialorder %v421, %v423
        %v425 = vsel %vm424, %v420, inf
        %426 = vmin.xlane.f32.xlu0 %v425
        %v427 = vpop.xlane.xlu0 %426
        %v428 = vcvt.f32.s32 %v427
        %v429 = vcvt.f32.s32 %v423
        %v430 = vshll.u32 %v429, 16
        %v431 = vadd.s32 %v430, %v428
        %v432 = vsel %vm361, %v396, 2147483647
        %v433 = vand.u32 %v432, 65535
        %v434 = vshra.s32 %v432, 16
        %v435 = vcvt.s32.f32 %v433
        %v436 = vcvt.s32.f32 %v434
        %437 = vmin.xlane.f32.xlu0 %v436
        %v438 = vpop.xlane.xlu0 %437
        %vm439 = vcmp.eq.f32.partialorder %v436, %v438
        %v440 = vsel %vm439, %v435, inf
        %441 = vmin.xlane.f32.xlu0 %v440
        %v442 = vpop.xlane.xlu0 %441
        %v443 = vcvt.f32.s32 %v442
        %v444 = vcvt.f32.s32 %v438
        %v445 = vshll.u32 %v444, 16
        %v446 = vadd.s32 %v445, %v443
        %v447 = vsel %vm361, %v397, 2147483647
        %v448 = vand.u32 %v447, 65535
        %v449 = vshra.s32 %v447, 16
        %v450 = vcvt.s32.f32 %v448
        %v451 = vcvt.s32.f32 %v449
        %452 = vmin.xlane.f32.xlu0 %v451
        %v453 = vpop.xlane.xlu0 %452
        %vm454 = vcmp.eq.f32.partialorder %v451, %v453
        %v455 = vsel %vm454, %v450, inf
        %456 = vmin.xlane.f32.xlu0 %v455
        %v457 = vpop.xlane.xlu0 %456
        %v458 = vcvt.f32.s32 %v457
        %v459 = vcvt.f32.s32 %v453
        %v460 = vshll.u32 %v459, 16
        %v461 = vadd.s32 %v460, %v458
        %v462 = vsel %vm361, %v398, 2147483647
        %v463 = vand.u32 %v462, 65535
        %v464 = vshra.s32 %v462, 16
        %v465 = vcvt.s32.f32 %v463
        %v466 = vcvt.s32.f32 %v464
        %467 = vmin.xlane.f32.xlu0 %v466
        %v468 = vpop.xlane.xlu0 %467
        %vm469 = vcmp.eq.f32.partialorder %v466, %v468
        %v470 = vsel %vm469, %v465, inf
        %471 = vmin.xlane.f32.xlu0 %v470
        %v472 = vpop.xlane.xlu0 %471
        %v473 = vcvt.f32.s32 %v472
        %v474 = vcvt.f32.s32 %v468
        %v475 = vshll.u32 %v474, 16
        %v476 = vadd.s32 %v475, %v473
        %v477 = vsel %vm361, %v399, 2147483647
        %v478 = vand.u32 %v477, 65535
        %v479 = vshra.s32 %v477, 16
        %v480 = vcvt.s32.f32 %v478
        %v481 = vcvt.s32.f32 %v479
        %482 = vmin.xlane.f32.xlu0 %v481
        %v483 = vpop.xlane.xlu0 %482
        %vm484 = vcmp.eq.f32.partialorder %v481, %v483
        %v485 = vsel %vm484, %v480, inf
        %486 = vmin.xlane.f32.xlu0 %v485
        %v487 = vpop.xlane.xlu0 %486
        %v488 = vcvt.f32.s32 %v487
        %v489 = vcvt.f32.s32 %v483
        %v490 = vshll.u32 %v489, 16
        %v491 = vadd.s32 %v490, %v488
        %v492 = vsel %vm361, %v400, 2147483647
        %v493 = vand.u32 %v492, 65535
        %v494 = vshra.s32 %v492, 16
        %v495 = vcvt.s32.f32 %v493
        %v496 = vcvt.s32.f32 %v494
        %497 = vmin.xlane.f32.xlu0 %v496
        %v498 = vpop.xlane.xlu0 %497
        %vm499 = vcmp.eq.f32.partialorder %v496, %v498
        %v500 = vsel %vm499, %v495, inf
        %501 = vmin.xlane.f32.xlu0 %v500
        %v502 = vpop.xlane.xlu0 %501
        %v503 = vcvt.f32.s32 %v502
        %v504 = vcvt.f32.s32 %v498
        %v505 = vshll.u32 %v504, 16
        %v506 = vadd.s32 %v505, %v503
        %v507 = vsel %vm361, %v401, 2147483647
        %v508 = vand.u32 %v507, 65535
        %v509 = vshra.s32 %v507, 16
        %v510 = vcvt.s32.f32 %v508
        %v511 = vcvt.s32.f32 %v509
        %512 = vmin.xlane.f32.xlu0 %v511
        %v513 = vpop.xlane.xlu0 %512
        %vm514 = vcmp.eq.f32.partialorder %v511, %v513
        %v515 = vsel %vm514, %v510, inf
        %516 = vmin.xlane.f32.xlu0 %v515
        %v517 = vpop.xlane.xlu0 %516
        %v518 = vcvt.f32.s32 %v517
        %v519 = vcvt.f32.s32 %v513
        %v520 = vshll.u32 %v519, 16
        %v521 = vadd.s32 %v520, %v518
        %v522 = vlaneseq
        %v523 = vshrl.u32 %v522, 7
        %v524 = vsub.s32 %v260, %v523
        %v525 = vrot.slane %v416, %v524
        %v526 = vlaneseq
        %v527 = vshrl.u32 %v526, 7
        %v528 = vsub.s32 %v260, %v527
        %v529 = vrot.slane %v431, %v528
        %v530 = vlaneseq
        %v531 = vshrl.u32 %v530, 7
        %v532 = vsub.s32 %v260, %v531
        %v533 = vrot.slane %v446, %v532
        %v534 = vlaneseq
        %v535 = vshrl.u32 %v534, 7
        %v536 = vsub.s32 %v260, %v535
        %v537 = vrot.slane %v461, %v536
        %v538 = vlaneseq
        %v539 = vshrl.u32 %v538, 7
        %v540 = vsub.s32 %v260, %v539
        %v541 = vrot.slane %v476, %v540
        %v542 = vlaneseq
        %v543 = vshrl.u32 %v542, 7
        %v544 = vsub.s32 %v260, %v543
        %v545 = vrot.slane %v491, %v544
        %v546 = vlaneseq
        %v547 = vshrl.u32 %v546, 7
        %v548 = vsub.s32 %v260, %v547
        %v549 = vrot.slane %v506, %v548
        %v550 = vlaneseq
        %v551 = vshrl.u32 %v550, 7
        %v552 = vsub.s32 %v260, %v551
        %v553 = vrot.slane %v521, %v552
        %vm554 = vcmask 1041409
        %v555 = vsel %vm554, %v529, %v525
        %vm556 = vcmask 1042434
        %v557 = vsel %vm556, %v533, %v555
        %vm558 = vcmask 1043459
        %v559 = vsel %vm558, %v537, %v557
        %vm560 = vcmask 1044484
        %v561 = vsel %vm560, %v541, %v559
        %vm562 = vcmask 1045509
        %v563 = vsel %vm562, %v545, %v561
        %vm564 = vcmask 1046534
        %v565 = vsel %vm564, %v549, %v563
        %vm566 = vcmask 1047559
        %v567 = vsel %vm566, %v553, %v565
        %s568 = scalar_lea.vmem [#allocation2], 8
        %569 = vst.msk [vmem:[%s568] sm:$0xff] %vm361, %v567
        %s570 = scalar_lea.vmem %s215, 8 [#allocation3]
        %v571 = vld [vmem:[%s570] sm:$0xff]
        %v573 = vlaneseq
        %v574 = vshrl.u32 %v573, 7
        %v575 = vsub.s32 0, %v574
        %v576 = vrot.slane %v258, %v575
        %vm578 = vcmask 261120
        %v580 = vsel %vm578, %v571, 0
        %582 = vmatprep.subr.mxu0 0.0
        %583 = vmatpush1.msra.mxu0 %v254
        %584 = vmatprep.subr.mxu0 0.0
        %585 = vmatpush1.msra.mxu0 %v255
        %586 = vmatprep.subr.mxu0 0.0
        %587 = vmatpush1.msra.mxu0 %v256
        %588 = vmatprep.subr.mxu0 0.0
        %589 = vmatpush1.msra.mxu0 %v257
        %590 = vmatprep.subr.mxu0 0.0
        %591 = vmatpush1.msra.mxu0 0.0
        %592 = vmatprep.subr.mxu0 0.0
        %593 = vmatpush1.msra.mxu0 0.0
        %594 = vmatprep.subr.mxu0 0.0
        %595 = vmatpush1.msra.mxu0 0.0
        %596 = vmatprep.subr.mxu0 0.0
        %597 = vmatpush1.msra.mxu0 0.0
        %598 = vmatprep.subr.mxu0 0.0
        %599 = vmatpush1.msra.mxu0 0.0
        %600 = vmatprep.subr.mxu0 0.0
        %601 = vmatpush1.msra.mxu0 0.0
        %602 = vmatprep.subr.mxu0 0.0
        %603 = vmatpush1.msra.mxu0 0.0
        %604 = vmatprep.subr.mxu0 0.0
        %605 = vmatpush1.msra.mxu0 0.0
        %606 = vmatprep.subr.mxu0 0.0
        %607 = vmatpush1.msra.mxu0 0.0
        %608 = vmatprep.subr.mxu0 0.0
        %609 = vmatpush1.msra.mxu0 0.0
        %610 = vmatprep.subr.mxu0 0.0
        %611 = vmatpush1.msra.mxu0 0.0
        %612 = vmatprep.subr.mxu0 0.0
        %613 = vmatpush1.msra.mxu0 0.0
        %614 = vmatprep.subr.mxu0 0.0
        %615 = vmatpush1.msra.mxu0 0.0
        %616 = vmatprep.subr.mxu0 0.0
        %617 = vmatpush1.msra.mxu0 0.0
        %618 = vmatprep.subr.mxu0 0.0
        %619 = vmatpush1.msra.mxu0 0.0
        %620 = vmatprep.subr.mxu0 0.0
        %621 = vmatpush1.msra.mxu0 0.0
        %622 = vmatprep.subr.mxu0 0.0
        %623 = vmatpush1.msra.mxu0 0.0
        %624 = vmatprep.subr.mxu0 0.0
        %625 = vmatpush1.msra.mxu0 0.0
        %626 = vmatprep.subr.mxu0 0.0
        %627 = vmatpush1.msra.mxu0 0.0
        %628 = vmatprep.subr.mxu0 0.0
        %629 = vmatpush1.msra.mxu0 0.0
        %630 = vmatprep.subr.mxu0 0.0
        %631 = vmatpush1.msra.mxu0 0.0
        %632 = vmatprep.subr.mxu0 0.0
        %633 = vmatpush1.msra.mxu0 0.0
        %634 = vmatprep.subr.mxu0 0.0
        %635 = vmatpush1.msra.mxu0 0.0
        %636 = vmatprep.subr.mxu0 0.0
        %637 = vmatpush1.msra.mxu0 0.0
        %638 = vmatprep.subr.mxu0 0.0
        %639 = vmatpush1.msra.mxu0 0.0
        %640 = vmatprep.subr.mxu0 0.0
        %641 = vmatpush1.msra.mxu0 0.0
        %642 = vmatprep.subr.mxu0 0.0
        %643 = vmatpush1.msra.mxu0 0.0
        %644 = vmatprep.subr.mxu0 0.0
        %645 = vmatpush1.msra.mxu0 0.0
        %646 = vmatprep.mubr.f32.mxu0 0.0
        %647 = vmatmul.mubr.f32.gmra.mrb[0].mxu0 %v580
        %v648 = vpop.f32.mrb[0].mxu0
        %v649 = vadd.f32 %v576, %v648
        %v650 = vpop.f32.mrb[0].mxu0
        %651 = vdwg.mxu0
        %v653 = vlaneseq
        %v654 = vshrl.u32 %v653, 7
        %v655 = vsub.s32 0, %v654
        %v656 = vrot.slane %v649, %v655
        %658 = vbcast.lane.b32.xlu0 %v656, 256
        %v659 = vpop.permute.xlu0 %658
        %v660 = vlaneseq
        %v661 = vshrl.u32 %v660, 7
        %v662 = vsub.s32 1, %v661
        %v663 = vrot.slane %v649, %v662
        %665 = vbcast.lane.b32.xlu0 %v663, 256
        %v666 = vpop.permute.xlu0 %665
        %v667 = vlaneseq
        %v668 = vshrl.u32 %v667, 7
        %v669 = vsub.s32 2, %v668
        %v670 = vrot.slane %v649, %v669
        %672 = vbcast.lane.b32.xlu0 %v670, 256
        %v673 = vpop.permute.xlu0 %672
        %v674 = vlaneseq
        %v675 = vshrl.u32 %v674, 7
        %v676 = vsub.s32 3, %v675
        %v677 = vrot.slane %v649, %v676
        %679 = vbcast.lane.b32.xlu0 %v677, 256
        %v680 = vpop.permute.xlu0 %679
        %v681 = vlaneseq
        %v682 = vshrl.u32 %v681, 7
        %v683 = vsub.s32 4, %v682
        %v684 = vrot.slane %v649, %v683
        %686 = vbcast.lane.b32.xlu0 %v684, 256
        %v687 = vpop.permute.xlu0 %686
        %v688 = vlaneseq
        %v689 = vshrl.u32 %v688, 7
        %v690 = vsub.s32 5, %v689
        %v691 = vrot.slane %v649, %v690
        %693 = vbcast.lane.b32.xlu0 %v691, 256
        %v694 = vpop.permute.xlu0 %693
        %v695 = vlaneseq
        %v696 = vshrl.u32 %v695, 7
        %v697 = vsub.s32 6, %v696
        %v698 = vrot.slane %v649, %v697
        %700 = vbcast.lane.b32.xlu0 %v698, 256
        %v701 = vpop.permute.xlu0 %700
        %v702 = vlaneseq
        %v703 = vshrl.u32 %v702, 7
        %v704 = vsub.s32 7, %v703
        %v705 = vrot.slane %v649, %v704
        %707 = vbcast.lane.b32.xlu0 %v705, 256
        %v708 = vpop.permute.xlu0 %707
        %v717 = vadd.f32 %v364, %v659
        %v718 = vadd.f32 %v367, %v666
        %v719 = vadd.f32 %v370, %v673
        %v720 = vadd.f32 %v373, %v680
        %v721 = vadd.f32 %v376, %v687
        %v722 = vadd.f32 %v379, %v694
        %v723 = vadd.f32 %v382, %v701
        %v724 = vadd.f32 %v385, %v708
        %733 = vset.pattern.permute.xlu0 0
        %734 = vperm.xlu0 %733, %v717
        %v735 = vpop.permute.xlu0 %734
        %736 = vset.pattern.permute.xlu0 0
        %737 = vperm.xlu0 %736, %v718
        %v738 = vpop.permute.xlu0 %737
        %739 = vset.pattern.permute.xlu0 0
        %740 = vperm.xlu0 %739, %v719
        %v741 = vpop.permute.xlu0 %740
        %742 = vset.pattern.permute.xlu0 0
        %743 = vperm.xlu0 %742, %v720
        %v744 = vpop.permute.xlu0 %743
        %745 = vset.pattern.permute.xlu0 0
        %746 = vperm.xlu0 %745, %v721
        %v747 = vpop.permute.xlu0 %746
        %748 = vset.pattern.permute.xlu0 0
        %749 = vperm.xlu0 %748, %v722
        %v750 = vpop.permute.xlu0 %749
        %751 = vset.pattern.permute.xlu0 0
        %752 = vperm.xlu0 %751, %v723
        %v753 = vpop.permute.xlu0 %752
        %754 = vset.pattern.permute.xlu0 0
        %755 = vperm.xlu0 %754, %v724
        %v756 = vpop.permute.xlu0 %755
        %v757 = vlaneseq
        %v758 = vshrl.u32 %v757, 7
        %v759 = vsub.s32 %v260, %v758
        %v760 = vrot.slane %v735, %v759
        %v761 = vlaneseq
        %v762 = vshrl.u32 %v761, 7
        %v763 = vsub.s32 %v260, %v762
        %v764 = vrot.slane %v738, %v763
        %v765 = vlaneseq
        %v766 = vshrl.u32 %v765, 7
        %v767 = vsub.s32 %v260, %v766
        %v768 = vrot.slane %v741, %v767
        %v769 = vlaneseq
        %v770 = vshrl.u32 %v769, 7
        %v771 = vsub.s32 %v260, %v770
        %v772 = vrot.slane %v744, %v771
        %v773 = vlaneseq
        %v774 = vshrl.u32 %v773, 7
        %v775 = vsub.s32 %v260, %v774
        %v776 = vrot.slane %v747, %v775
        %v777 = vlaneseq
        %v778 = vshrl.u32 %v777, 7
        %v779 = vsub.s32 %v260, %v778
        %v780 = vrot.slane %v750, %v779
        %v781 = vlaneseq
        %v782 = vshrl.u32 %v781, 7
        %v783 = vsub.s32 %v260, %v782
        %v784 = vrot.slane %v753, %v783
        %v785 = vlaneseq
        %v786 = vshrl.u32 %v785, 7
        %v787 = vsub.s32 %v260, %v786
        %v788 = vrot.slane %v756, %v787
        %v789 = vsel %vm556, %v760, %v760
        %v790 = vsel %vm558, %v760, %v789
        %v791 = vsel %vm560, %v760, %v790
        %v792 = vsel %vm562, %v760, %v791
        %v793 = vsel %vm564, %v760, %v792
        %v794 = vsel %vm566, %v760, %v793
        %v795 = vsel %vm556, %v764, %v764
        %v796 = vsel %vm558, %v764, %v795
        %v797 = vsel %vm560, %v764, %v796
        %v798 = vsel %vm562, %v764, %v797
        %v799 = vsel %vm564, %v764, %v798
        %v800 = vsel %vm566, %v764, %v799
        %v801 = vsel %vm556, %v768, %v768
        %v802 = vsel %vm558, %v768, %v801
        %v803 = vsel %vm560, %v768, %v802
        %v804 = vsel %vm562, %v768, %v803
        %v805 = vsel %vm564, %v768, %v804
        %v806 = vsel %vm566, %v768, %v805
        %v807 = vsel %vm556, %v772, %v772
        %v808 = vsel %vm558, %v772, %v807
        %v809 = vsel %vm560, %v772, %v808
        %v810 = vsel %vm562, %v772, %v809
        %v811 = vsel %vm564, %v772, %v810
        %v812 = vsel %vm566, %v772, %v811
        %v813 = vsel %vm556, %v776, %v776
        %v814 = vsel %vm558, %v776, %v813
        %v815 = vsel %vm560, %v776, %v814
        %v816 = vsel %vm562, %v776, %v815
        %v817 = vsel %vm564, %v776, %v816
        %v818 = vsel %vm566, %v776, %v817
        %v819 = vsel %vm556, %v780, %v780
        %v820 = vsel %vm558, %v780, %v819
        %v821 = vsel %vm560, %v780, %v820
        %v822 = vsel %vm562, %v780, %v821
        %v823 = vsel %vm564, %v780, %v822
        %v824 = vsel %vm566, %v780, %v823
        %v825 = vsel %vm556, %v784, %v784
        %v826 = vsel %vm558, %v784, %v825
        %v827 = vsel %vm560, %v784, %v826
        %v828 = vsel %vm562, %v784, %v827
        %v829 = vsel %vm564, %v784, %v828
        %v830 = vsel %vm566, %v784, %v829
        %v831 = vsel %vm556, %v788, %v788
        %v832 = vsel %vm558, %v788, %v831
        %v833 = vsel %vm560, %v788, %v832
        %v834 = vsel %vm562, %v788, %v833
        %v835 = vsel %vm564, %v788, %v834
        %v836 = vsel %vm566, %v788, %v835
        %v845 = vadd.f32 %v253, %v794
        %v846 = vadd.f32 %v253, %v800
        %v847 = vadd.f32 %v253, %v806
        %v848 = vadd.f32 %v253, %v812
        %v849 = vadd.f32 %v253, %v818
        %v850 = vadd.f32 %v253, %v824
        %v851 = vadd.f32 %v253, %v830
        %v852 = vadd.f32 %v253, %v836
        %v853 = vsel %vm361, %v845, -inf
        %854 = vmax.xlane.f32.xlu0 %v853
        %v855 = vpop.xlane.xlu0 %854
        %v856 = vsel %vm361, %v846, -inf
        %857 = vmax.xlane.f32.xlu0 %v856
        %v858 = vpop.xlane.xlu0 %857
        %v859 = vsel %vm361, %v847, -inf
        %860 = vmax.xlane.f32.xlu0 %v859
        %v861 = vpop.xlane.xlu0 %860
        %v862 = vsel %vm361, %v848, -inf
        %863 = vmax.xlane.f32.xlu0 %v862
        %v864 = vpop.xlane.xlu0 %863
        %v865 = vsel %vm361, %v849, -inf
        %866 = vmax.xlane.f32.xlu0 %v865
        %v867 = vpop.xlane.xlu0 %866
        %v868 = vsel %vm361, %v850, -inf
        %869 = vmax.xlane.f32.xlu0 %v868
        %v870 = vpop.xlane.xlu0 %869
        %v871 = vsel %vm361, %v851, -inf
        %872 = vmax.xlane.f32.xlu0 %v871
        %v873 = vpop.xlane.xlu0 %872
        %v874 = vsel %vm361, %v852, -inf
        %875 = vmax.xlane.f32.xlu0 %v874
        %v876 = vpop.xlane.xlu0 %875
        %vm877 = vcmp.eq.f32.partialorder %v845, %v855
        %vm878 = vcmp.eq.f32.partialorder %v846, %v858
        %vm879 = vcmp.eq.f32.partialorder %v847, %v861
        %vm880 = vcmp.eq.f32.partialorder %v848, %v864
        %vm881 = vcmp.eq.f32.partialorder %v849, %v867
        %vm882 = vcmp.eq.f32.partialorder %v850, %v870
        %vm883 = vcmp.eq.f32.partialorder %v851, %v873
        %vm884 = vcmp.eq.f32.partialorder %v852, %v876
        %v885 = vsel %vm877, %v260, 8
        %v886 = vsel %vm878, %v260, 8
        %v887 = vsel %vm879, %v260, 8
        %v888 = vsel %vm880, %v260, 8
        %v889 = vsel %vm881, %v260, 8
        %v890 = vsel %vm882, %v260, 8
        %v891 = vsel %vm883, %v260, 8
        %v892 = vsel %vm884, %v260, 8
        %v893 = vsel %vm361, %v885, 2147483647
        %v894 = vand.u32 %v893, 65535
        %v895 = vshra.s32 %v893, 16
        %v896 = vcvt.s32.f32 %v894
        %v897 = vcvt.s32.f32 %v895
        %898 = vmin.xlane.f32.xlu0 %v897
        %v899 = vpop.xlane.xlu0 %898
        %vm900 = vcmp.eq.f32.partialorder %v897, %v899
        %v901 = vsel %vm900, %v896, inf
        %902 = vmin.xlane.f32.xlu0 %v901
        %v903 = vpop.xlane.xlu0 %902
        %v904 = vcvt.f32.s32 %v903
        %v905 = vcvt.f32.s32 %v899
        %v906 = vshll.u32 %v905, 16
        %v907 = vadd.s32 %v906, %v904
        %v908 = vsel %vm361, %v886, 2147483647
        %v909 = vand.u32 %v908, 65535
        %v910 = vshra.s32 %v908, 16
        %v911 = vcvt.s32.f32 %v909
        %v912 = vcvt.s32.f32 %v910
        %913 = vmin.xlane.f32.xlu0 %v912
        %v914 = vpop.xlane.xlu0 %913
        %vm915 = vcmp.eq.f32.partialorder %v912, %v914
        %v916 = vsel %vm915, %v911, inf
        %917 = vmin.xlane.f32.xlu0 %v916
        %v918 = vpop.xlane.xlu0 %917
        %v919 = vcvt.f32.s32 %v918
        %v920 = vcvt.f32.s32 %v914
        %v921 = vshll.u32 %v920, 16
        %v922 = vadd.s32 %v921, %v919
        %v923 = vsel %vm361, %v887, 2147483647
        %v924 = vand.u32 %v923, 65535
        %v925 = vshra.s32 %v923, 16
        %v926 = vcvt.s32.f32 %v924
        %v927 = vcvt.s32.f32 %v925
        %928 = vmin.xlane.f32.xlu0 %v927
        %v929 = vpop.xlane.xlu0 %928
        %vm930 = vcmp.eq.f32.partialorder %v927, %v929
        %v931 = vsel %vm930, %v926, inf
        %932 = vmin.xlane.f32.xlu0 %v931
        %v933 = vpop.xlane.xlu0 %932
        %v934 = vcvt.f32.s32 %v933
        %v935 = vcvt.f32.s32 %v929
        %v936 = vshll.u32 %v935, 16
        %v937 = vadd.s32 %v936, %v934
        %v938 = vsel %vm361, %v888, 2147483647
        %v939 = vand.u32 %v938, 65535
        %v940 = vshra.s32 %v938, 16
        %v941 = vcvt.s32.f32 %v939
        %v942 = vcvt.s32.f32 %v940
        %943 = vmin.xlane.f32.xlu0 %v942
        %v944 = vpop.xlane.xlu0 %943
        %vm945 = vcmp.eq.f32.partialorder %v942, %v944
        %v946 = vsel %vm945, %v941, inf
        %947 = vmin.xlane.f32.xlu0 %v946
        %v948 = vpop.xlane.xlu0 %947
        %v949 = vcvt.f32.s32 %v948
        %v950 = vcvt.f32.s32 %v944
        %v951 = vshll.u32 %v950, 16
        %v952 = vadd.s32 %v951, %v949
        %v953 = vsel %vm361, %v889, 2147483647
        %v954 = vand.u32 %v953, 65535
        %v955 = vshra.s32 %v953, 16
        %v956 = vcvt.s32.f32 %v954
        %v957 = vcvt.s32.f32 %v955
        %958 = vmin.xlane.f32.xlu0 %v957
        %v959 = vpop.xlane.xlu0 %958
        %vm960 = vcmp.eq.f32.partialorder %v957, %v959
        %v961 = vsel %vm960, %v956, inf
        %962 = vmin.xlane.f32.xlu0 %v961
        %v963 = vpop.xlane.xlu0 %962
        %v964 = vcvt.f32.s32 %v963
        %v965 = vcvt.f32.s32 %v959
        %v966 = vshll.u32 %v965, 16
        %v967 = vadd.s32 %v966, %v964
        %v968 = vsel %vm361, %v890, 2147483647
        %v969 = vand.u32 %v968, 65535
        %v970 = vshra.s32 %v968, 16
        %v971 = vcvt.s32.f32 %v969
        %v972 = vcvt.s32.f32 %v970
        %973 = vmin.xlane.f32.xlu0 %v972
        %v974 = vpop.xlane.xlu0 %973
        %vm975 = vcmp.eq.f32.partialorder %v972, %v974
        %v976 = vsel %vm975, %v971, inf
        %977 = vmin.xlane.f32.xlu0 %v976
        %v978 = vpop.xlane.xlu0 %977
        %v979 = vcvt.f32.s32 %v978
        %v980 = vcvt.f32.s32 %v974
        %v981 = vshll.u32 %v980, 16
        %v982 = vadd.s32 %v981, %v979
        %v983 = vsel %vm361, %v891, 2147483647
        %v984 = vand.u32 %v983, 65535
        %v985 = vshra.s32 %v983, 16
        %v986 = vcvt.s32.f32 %v984
        %v987 = vcvt.s32.f32 %v985
        %988 = vmin.xlane.f32.xlu0 %v987
        %v989 = vpop.xlane.xlu0 %988
        %vm990 = vcmp.eq.f32.partialorder %v987, %v989
        %v991 = vsel %vm990, %v986, inf
        %992 = vmin.xlane.f32.xlu0 %v991
        %v993 = vpop.xlane.xlu0 %992
        %v994 = vcvt.f32.s32 %v993
        %v995 = vcvt.f32.s32 %v989
        %v996 = vshll.u32 %v995, 16
        %v997 = vadd.s32 %v996, %v994
        %v998 = vsel %vm361, %v892, 2147483647
        %v999 = vand.u32 %v998, 65535
        %v1000 = vshra.s32 %v998, 16
        %v1001 = vcvt.s32.f32 %v999
        %v1002 = vcvt.s32.f32 %v1000
        %1003 = vmin.xlane.f32.xlu0 %v1002
        %v1004 = vpop.xlane.xlu0 %1003
        %vm1005 = vcmp.eq.f32.partialorder %v1002, %v1004
        %v1006 = vsel %vm1005, %v1001, inf
        %1007 = vmin.xlane.f32.xlu0 %v1006
        %v1008 = vpop.xlane.xlu0 %1007
        %v1009 = vcvt.f32.s32 %v1008
        %v1010 = vcvt.f32.s32 %v1004
        %v1011 = vshll.u32 %v1010, 16
        %v1012 = vadd.s32 %v1011, %v1009
        %v1013 = vlaneseq
        %v1014 = vshrl.u32 %v1013, 7
        %v1015 = vsub.s32 %v260, %v1014
        %v1016 = vrot.slane %v907, %v1015
        %v1017 = vlaneseq
        %v1018 = vshrl.u32 %v1017, 7
        %v1019 = vsub.s32 %v260, %v1018
        %v1020 = vrot.slane %v922, %v1019
        %v1021 = vlaneseq
        %v1022 = vshrl.u32 %v1021, 7
        %v1023 = vsub.s32 %v260, %v1022
        %v1024 = vrot.slane %v937, %v1023
        %v1025 = vlaneseq
        %v1026 = vshrl.u32 %v1025, 7
        %v1027 = vsub.s32 %v260, %v1026
        %v1028 = vrot.slane %v952, %v1027
        %v1029 = vlaneseq
        %v1030 = vshrl.u32 %v1029, 7
        %v1031 = vsub.s32 %v260, %v1030
        %v1032 = vrot.slane %v967, %v1031
        %v1033 = vlaneseq
        %v1034 = vshrl.u32 %v1033, 7
        %v1035 = vsub.s32 %v260, %v1034
        %v1036 = vrot.slane %v982, %v1035
        %v1037 = vlaneseq
        %v1038 = vshrl.u32 %v1037, 7
        %v1039 = vsub.s32 %v260, %v1038
        %v1040 = vrot.slane %v997, %v1039
        %v1041 = vlaneseq
        %v1042 = vshrl.u32 %v1041, 7
        %v1043 = vsub.s32 %v260, %v1042
        %v1044 = vrot.slane %v1012, %v1043
        %v1045 = vsel %vm554, %v1020, %v1016
        %v1046 = vsel %vm556, %v1024, %v1045
        %v1047 = vsel %vm558, %v1028, %v1046
        %v1048 = vsel %vm560, %v1032, %v1047
        %v1049 = vsel %vm562, %v1036, %v1048
        %v1050 = vsel %vm564, %v1040, %v1049
        %v1051 = vsel %vm566, %v1044, %v1050
        %s1052 = scalar_lea.vmem [#allocation2], 16
        %1053 = vst.msk [vmem:[%s1052] sm:$0xff] %vm361, %v1051
        %s1054 = scalar_lea.vmem %s215, 16 [#allocation3]
        %v1055 = vld [vmem:[%s1054] sm:$0xff]
        %v1057 = vsel %vm578, %v1055, 0
        %1059 = vmatprep.subr.mxu0 0.0
        %1060 = vmatpush1.msra.mxu0 %v254
        %1061 = vmatprep.subr.mxu0 0.0
        %1062 = vmatpush1.msra.mxu0 %v255
        %1063 = vmatprep.subr.mxu0 0.0
        %1064 = vmatpush1.msra.mxu0 %v256
        %1065 = vmatprep.subr.mxu0 0.0
        %1066 = vmatpush1.msra.mxu0 %v257
        %1067 = vmatprep.subr.mxu0 0.0
        %1068 = vmatpush1.msra.mxu0 0.0
        %1069 = vmatprep.subr.mxu0 0.0
        %1070 = vmatpush1.msra.mxu0 0.0
        %1071 = vmatprep.subr.mxu0 0.0
        %1072 = vmatpush1.msra.mxu0 0.0
        %1073 = vmatprep.subr.mxu0 0.0
        %1074 = vmatpush1.msra.mxu0 0.0
        %1075 = vmatprep.subr.mxu0 0.0
        %1076 = vmatpush1.msra.mxu0 0.0
        %1077 = vmatprep.subr.mxu0 0.0
        %1078 = vmatpush1.msra.mxu0 0.0
        %1079 = vmatprep.subr.mxu0 0.0
        %1080 = vmatpush1.msra.mxu0 0.0
        %1081 = vmatprep.subr.mxu0 0.0
        %1082 = vmatpush1.msra.mxu0 0.0
        %1083 = vmatprep.subr.mxu0 0.0
        %1084 = vmatpush1.msra.mxu0 0.0
        %1085 = vmatprep.subr.mxu0 0.0
        %1086 = vmatpush1.msra.mxu0 0.0
        %1087 = vmatprep.subr.mxu0 0.0
        %1088 = vmatpush1.msra.mxu0 0.0
        %1089 = vmatprep.subr.mxu0 0.0
        %1090 = vmatpush1.msra.mxu0 0.0
        %1091 = vmatprep.subr.mxu0 0.0
        %1092 = vmatpush1.msra.mxu0 0.0
        %1093 = vmatprep.subr.mxu0 0.0
        %1094 = vmatpush1.msra.mxu0 0.0
        %1095 = vmatprep.subr.mxu0 0.0
        %1096 = vmatpush1.msra.mxu0 0.0
        %1097 = vmatprep.subr.mxu0 0.0
        %1098 = vmatpush1.msra.mxu0 0.0
        %1099 = vmatprep.subr.mxu0 0.0
        %1100 = vmatpush1.msra.mxu0 0.0
        %1101 = vmatprep.subr.mxu0 0.0
        %1102 = vmatpush1.msra.mxu0 0.0
        %1103 = vmatprep.subr.mxu0 0.0
        %1104 = vmatpush1.msra.mxu0 0.0
        %1105 = vmatprep.subr.mxu0 0.0
        %1106 = vmatpush1.msra.mxu0 0.0
        %1107 = vmatprep.subr.mxu0 0.0
        %1108 = vmatpush1.msra.mxu0 0.0
        %1109 = vmatprep.subr.mxu0 0.0
        %1110 = vmatpush1.msra.mxu0 0.0
        %1111 = vmatprep.subr.mxu0 0.0
        %1112 = vmatpush1.msra.mxu0 0.0
        %1113 = vmatprep.subr.mxu0 0.0
        %1114 = vmatpush1.msra.mxu0 0.0
        %1115 = vmatprep.subr.mxu0 0.0
        %1116 = vmatpush1.msra.mxu0 0.0
        %1117 = vmatprep.subr.mxu0 0.0
        %1118 = vmatpush1.msra.mxu0 0.0
        %1119 = vmatprep.subr.mxu0 0.0
        %1120 = vmatpush1.msra.mxu0 0.0
        %1121 = vmatprep.subr.mxu0 0.0
        %1122 = vmatpush1.msra.mxu0 0.0
        %1123 = vmatprep.mubr.f32.mxu0 0.0
        %1124 = vmatmul.mubr.f32.gmra.mrb[0].mxu0 %v1057
        %v1125 = vpop.f32.mrb[0].mxu0
        %v1126 = vadd.f32 %v576, %v1125
        %v1127 = vpop.f32.mrb[0].mxu0
        %1128 = vdwg.mxu0
        %v1130 = vlaneseq
        %v1131 = vshrl.u32 %v1130, 7
        %v1132 = vsub.s32 0, %v1131
        %v1133 = vrot.slane %v1126, %v1132
        %1135 = vbcast.lane.b32.xlu0 %v1133, 256
        %v1136 = vpop.permute.xlu0 %1135
        %v1137 = vlaneseq
        %v1138 = vshrl.u32 %v1137, 7
        %v1139 = vsub.s32 1, %v1138
        %v1140 = vrot.slane %v1126, %v1139
        %1142 = vbcast.lane.b32.xlu0 %v1140, 256
        %v1143 = vpop.permute.xlu0 %1142
        %v1144 = vlaneseq
        %v1145 = vshrl.u32 %v1144, 7
        %v1146 = vsub.s32 2, %v1145
        %v1147 = vrot.slane %v1126, %v1146
        %1149 = vbcast.lane.b32.xlu0 %v1147, 256
        %v1150 = vpop.permute.xlu0 %1149
        %v1151 = vlaneseq
        %v1152 = vshrl.u32 %v1151, 7
        %v1153 = vsub.s32 3, %v1152
        %v1154 = vrot.slane %v1126, %v1153
        %1156 = vbcast.lane.b32.xlu0 %v1154, 256
        %v1157 = vpop.permute.xlu0 %1156
        %v1158 = vlaneseq
        %v1159 = vshrl.u32 %v1158, 7
        %v1160 = vsub.s32 4, %v1159
        %v1161 = vrot.slane %v1126, %v1160
        %1163 = vbcast.lane.b32.xlu0 %v1161, 256
        %v1164 = vpop.permute.xlu0 %1163
        %v1165 = vlaneseq
        %v1166 = vshrl.u32 %v1165, 7
        %v1167 = vsub.s32 5, %v1166
        %v1168 = vrot.slane %v1126, %v1167
        %1170 = vbcast.lane.b32.xlu0 %v1168, 256
        %v1171 = vpop.permute.xlu0 %1170
        %v1172 = vlaneseq
        %v1173 = vshrl.u32 %v1172, 7
        %v1174 = vsub.s32 6, %v1173
        %v1175 = vrot.slane %v1126, %v1174
        %1177 = vbcast.lane.b32.xlu0 %v1175, 256
        %v1178 = vpop.permute.xlu0 %1177
        %v1179 = vlaneseq
        %v1180 = vshrl.u32 %v1179, 7
        %v1181 = vsub.s32 7, %v1180
        %v1182 = vrot.slane %v1126, %v1181
        %1184 = vbcast.lane.b32.xlu0 %v1182, 256
        %v1185 = vpop.permute.xlu0 %1184
        %v1194 = vadd.f32 %v855, %v1136
        %v1195 = vadd.f32 %v858, %v1143
        %v1196 = vadd.f32 %v861, %v1150
        %v1197 = vadd.f32 %v864, %v1157
        %v1198 = vadd.f32 %v867, %v1164
        %v1199 = vadd.f32 %v870, %v1171
        %v1200 = vadd.f32 %v873, %v1178
        %v1201 = vadd.f32 %v876, %v1185
        %1210 = vset.pattern.permute.xlu0 0
        %1211 = vperm.xlu0 %1210, %v1194
        %v1212 = vpop.permute.xlu0 %1211
        %1213 = vset.pattern.permute.xlu0 0
        %1214 = vperm.xlu0 %1213, %v1195
        %v1215 = vpop.permute.xlu0 %1214
        %1216 = vset.pattern.permute.xlu0 0
        %1217 = vperm.xlu0 %1216, %v1196
        %v1218 = vpop.permute.xlu0 %1217
        %1219 = vset.pattern.permute.xlu0 0
        %1220 = vperm.xlu0 %1219, %v1197
        %v1221 = vpop.permute.xlu0 %1220
        %1222 = vset.pattern.permute.xlu0 0
        %1223 = vperm.xlu0 %1222, %v1198
        %v1224 = vpop.permute.xlu0 %1223
        %1225 = vset.pattern.permute.xlu0 0
        %1226 = vperm.xlu0 %1225, %v1199
        %v1227 = vpop.permute.xlu0 %1226
        %1228 = vset.pattern.permute.xlu0 0
        %1229 = vperm.xlu0 %1228, %v1200
        %v1230 = vpop.permute.xlu0 %1229
        %1231 = vset.pattern.permute.xlu0 0
        %1232 = vperm.xlu0 %1231, %v1201
        %v1233 = vpop.permute.xlu0 %1232
        %v1234 = vlaneseq
        %v1235 = vshrl.u32 %v1234, 7
        %v1236 = vsub.s32 %v260, %v1235
        %v1237 = vrot.slane %v1212, %v1236
        %v1238 = vlaneseq
        %v1239 = vshrl.u32 %v1238, 7
        %v1240 = vsub.s32 %v260, %v1239
        %v1241 = vrot.slane %v1215, %v1240
        %v1242 = vlaneseq
        %v1243 = vshrl.u32 %v1242, 7
        %v1244 = vsub.s32 %v260, %v1243
        %v1245 = vrot.slane %v1218, %v1244
        %v1246 = vlaneseq
        %v1247 = vshrl.u32 %v1246, 7
        %v1248 = vsub.s32 %v260, %v1247
        %v1249 = vrot.slane %v1221, %v1248
        %v1250 = vlaneseq
        %v1251 = vshrl.u32 %v1250, 7
        %v1252 = vsub.s32 %v260, %v1251
        %v1253 = vrot.slane %v1224, %v1252
        %v1254 = vlaneseq
        %v1255 = vshrl.u32 %v1254, 7
        %v1256 = vsub.s32 %v260, %v1255
        %v1257 = vrot.slane %v1227, %v1256
        %v1258 = vlaneseq
        %v1259 = vshrl.u32 %v1258, 7
        %v1260 = vsub.s32 %v260, %v1259
        %v1261 = vrot.slane %v1230, %v1260
        %v1262 = vlaneseq
        %v1263 = vshrl.u32 %v1262, 7
        %v1264 = vsub.s32 %v260, %v1263
        %v1265 = vrot.slane %v1233, %v1264
        %v1266 = vsel %vm556, %v1237, %v1237
        %v1267 = vsel %vm558, %v1237, %v1266
        %v1268 = vsel %vm560, %v1237, %v1267
        %v1269 = vsel %vm562, %v1237, %v1268
        %v1270 = vsel %vm564, %v1237, %v1269
        %v1271 = vsel %vm566, %v1237, %v1270
        %v1272 = vsel %vm556, %v1241, %v1241
        %v1273 = vsel %vm558, %v1241, %v1272
        %v1274 = vsel %vm560, %v1241, %v1273
        %v1275 = vsel %vm562, %v1241, %v1274
        %v1276 = vsel %vm564, %v1241, %v1275
        %v1277 = vsel %vm566, %v1241, %v1276
        %v1278 = vsel %vm556, %v1245, %v1245
        %v1279 = vsel %vm558, %v1245, %v1278
        %v1280 = vsel %vm560, %v1245, %v1279
        %v1281 = vsel %vm562, %v1245, %v1280
        %v1282 = vsel %vm564, %v1245, %v1281
        %v1283 = vsel %vm566, %v1245, %v1282
        %v1284 = vsel %vm556, %v1249, %v1249
        %v1285 = vsel %vm558, %v1249, %v1284
        %v1286 = vsel %vm560, %v1249, %v1285
        %v1287 = vsel %vm562, %v1249, %v1286
        %v1288 = vsel %vm564, %v1249, %v1287
        %v1289 = vsel %vm566, %v1249, %v1288
        %v1290 = vsel %vm556, %v1253, %v1253
        %v1291 = vsel %vm558, %v1253, %v1290
        %v1292 = vsel %vm560, %v1253, %v1291
        %v1293 = vsel %vm562, %v1253, %v1292
        %v1294 = vsel %vm564, %v1253, %v1293
        %v1295 = vsel %vm566, %v1253, %v1294
        %v1296 = vsel %vm556, %v1257, %v1257
        %v1297 = vsel %vm558, %v1257, %v1296
        %v1298 = vsel %vm560, %v1257, %v1297
        %v1299 = vsel %vm562, %v1257, %v1298
        %v1300 = vsel %vm564, %v1257, %v1299
        %v1301 = vsel %vm566, %v1257, %v1300
        %v1302 = vsel %vm556, %v1261, %v1261
        %v1303 = vsel %vm558, %v1261, %v1302
        %v1304 = vsel %vm560, %v1261, %v1303
        %v1305 = vsel %vm562, %v1261, %v1304
        %v1306 = vsel %vm564, %v1261, %v1305
        %v1307 = vsel %vm566, %v1261, %v1306
        %v1308 = vsel %vm556, %v1265, %v1265
        %v1309 = vsel %vm558, %v1265, %v1308
        %v1310 = vsel %vm560, %v1265, %v1309
        %v1311 = vsel %vm562, %v1265, %v1310
        %v1312 = vsel %vm564, %v1265, %v1311
        %v1313 = vsel %vm566, %v1265, %v1312
        %v1322 = vadd.f32 %v253, %v1271
        %v1323 = vadd.f32 %v253, %v1277
        %v1324 = vadd.f32 %v253, %v1283
        %v1325 = vadd.f32 %v253, %v1289
        %v1326 = vadd.f32 %v253, %v1295
        %v1327 = vadd.f32 %v253, %v1301
        %v1328 = vadd.f32 %v253, %v1307
        %v1329 = vadd.f32 %v253, %v1313
        %v1330 = vsel %vm361, %v1322, -inf
        %1331 = vmax.xlane.f32.xlu0 %v1330
        %v1332 = vpop.xlane.xlu0 %1331
        %v1333 = vsel %vm361, %v1323, -inf
        %1334 = vmax.xlane.f32.xlu0 %v1333
        %v1335 = vpop.xlane.xlu0 %1334
        %v1336 = vsel %vm361, %v1324, -inf
        %1337 = vmax.xlane.f32.xlu0 %v1336
        %v1338 = vpop.xlane.xlu0 %1337
        %v1339 = vsel %vm361, %v1325, -inf
        %1340 = vmax.xlane.f32.xlu0 %v1339
        %v1341 = vpop.xlane.xlu0 %1340
        %v1342 = vsel %vm361, %v1326, -inf
        %1343 = vmax.xlane.f32.xlu0 %v1342
        %v1344 = vpop.xlane.xlu0 %1343
        %v1345 = vsel %vm361, %v1327, -inf
        %1346 = vmax.xlane.f32.xlu0 %v1345
        %v1347 = vpop.xlane.xlu0 %1346
        %v1348 = vsel %vm361, %v1328, -inf
        %1349 = vmax.xlane.f32.xlu0 %v1348
        %v1350 = vpop.xlane.xlu0 %1349
        %v1351 = vsel %vm361, %v1329, -inf
        %1352 = vmax.xlane.f32.xlu0 %v1351
        %v1353 = vpop.xlane.xlu0 %1352
        %vm1354 = vcmp.eq.f32.partialorder %v1322, %v1332
        %vm1355 = vcmp.eq.f32.partialorder %v1323, %v1335
        %vm1356 = vcmp.eq.f32.partialorder %v1324, %v1338
        %vm1357 = vcmp.eq.f32.partialorder %v1325, %v1341
        %vm1358 = vcmp.eq.f32.partialorder %v1326, %v1344
        %vm1359 = vcmp.eq.f32.partialorder %v1327, %v1347
        %vm1360 = vcmp.eq.f32.partialorder %v1328, %v1350
        %vm1361 = vcmp.eq.f32.partialorder %v1329, %v1353
        %v1362 = vsel %vm1354, %v260, 8
        %v1363 = vsel %vm1355, %v260, 8
        %v1364 = vsel %vm1356, %v260, 8
        %v1365 = vsel %vm1357, %v260, 8
        %v1366 = vsel %vm1358, %v260, 8
        %v1367 = vsel %vm1359, %v260, 8
        %v1368 = vsel %vm1360, %v260, 8
        %v1369 = vsel %vm1361, %v260, 8
        %v1370 = vsel %vm361, %v1362, 2147483647
        %v1371 = vand.u32 %v1370, 65535
        %v1372 = vshra.s32 %v1370, 16
        %v1373 = vcvt.s32.f32 %v1371
        %v1374 = vcvt.s32.f32 %v1372
        %1375 = vmin.xlane.f32.xlu0 %v1374
        %v1376 = vpop.xlane.xlu0 %1375
        %vm1377 = vcmp.eq.f32.partialorder %v1374, %v1376
        %v1378 = vsel %vm1377, %v1373, inf
        %1379 = vmin.xlane.f32.xlu0 %v1378
        %v1380 = vpop.xlane.xlu0 %1379
        %v1381 = vcvt.f32.s32 %v1380
        %v1382 = vcvt.f32.s32 %v1376
        %v1383 = vshll.u32 %v1382, 16
        %v1384 = vadd.s32 %v1383, %v1381
        %v1385 = vsel %vm361, %v1363, 2147483647
        %v1386 = vand.u32 %v1385, 65535
        %v1387 = vshra.s32 %v1385, 16
        %v1388 = vcvt.s32.f32 %v1386
        %v1389 = vcvt.s32.f32 %v1387
        %1390 = vmin.xlane.f32.xlu0 %v1389
        %v1391 = vpop.xlane.xlu0 %1390
        %vm1392 = vcmp.eq.f32.partialorder %v1389, %v1391
        %v1393 = vsel %vm1392, %v1388, inf
        %1394 = vmin.xlane.f32.xlu0 %v1393
        %v1395 = vpop.xlane.xlu0 %1394
        %v1396 = vcvt.f32.s32 %v1395
        %v1397 = vcvt.f32.s32 %v1391
        %v1398 = vshll.u32 %v1397, 16
        %v1399 = vadd.s32 %v1398, %v1396
        %v1400 = vsel %vm361, %v1364, 2147483647
        %v1401 = vand.u32 %v1400, 65535
        %v1402 = vshra.s32 %v1400, 16
        %v1403 = vcvt.s32.f32 %v1401
        %v1404 = vcvt.s32.f32 %v1402
        %1405 = vmin.xlane.f32.xlu0 %v1404
        %v1406 = vpop.xlane.xlu0 %1405
        %vm1407 = vcmp.eq.f32.partialorder %v1404, %v1406
        %v1408 = vsel %vm1407, %v1403, inf
        %1409 = vmin.xlane.f32.xlu0 %v1408
        %v1410 = vpop.xlane.xlu0 %1409
        %v1411 = vcvt.f32.s32 %v1410
        %v1412 = vcvt.f32.s32 %v1406
        %v1413 = vshll.u32 %v1412, 16
        %v1414 = vadd.s32 %v1413, %v1411
        %v1415 = vsel %vm361, %v1365, 2147483647
        %v1416 = vand.u32 %v1415, 65535
        %v1417 = vshra.s32 %v1415, 16
        %v1418 = vcvt.s32.f32 %v1416
        %v1419 = vcvt.s32.f32 %v1417
        %1420 = vmin.xlane.f32.xlu0 %v1419
        %v1421 = vpop.xlane.xlu0 %1420
        %vm1422 = vcmp.eq.f32.partialorder %v1419, %v1421
        %v1423 = vsel %vm1422, %v1418, inf
        %1424 = vmin.xlane.f32.xlu0 %v1423
        %v1425 = vpop.xlane.xlu0 %1424
        %v1426 = vcvt.f32.s32 %v1425
        %v1427 = vcvt.f32.s32 %v1421
        %v1428 = vshll.u32 %v1427, 16
        %v1429 = vadd.s32 %v1428, %v1426
        %v1430 = vsel %vm361, %v1366, 2147483647
        %v1431 = vand.u32 %v1430, 65535
        %v1432 = vshra.s32 %v1430, 16
        %v1433 = vcvt.s32.f32 %v1431
        %v1434 = vcvt.s32.f32 %v1432
        %1435 = vmin.xlane.f32.xlu0 %v1434
        %v1436 = vpop.xlane.xlu0 %1435
        %vm1437 = vcmp.eq.f32.partialorder %v1434, %v1436
        %v1438 = vsel %vm1437, %v1433, inf
        %1439 = vmin.xlane.f32.xlu0 %v1438
        %v1440 = vpop.xlane.xlu0 %1439
        %v1441 = vcvt.f32.s32 %v1440
        %v1442 = vcvt.f32.s32 %v1436
        %v1443 = vshll.u32 %v1442, 16
        %v1444 = vadd.s32 %v1443, %v1441
        %v1445 = vsel %vm361, %v1367, 2147483647
        %v1446 = vand.u32 %v1445, 65535
        %v1447 = vshra.s32 %v1445, 16
        %v1448 = vcvt.s32.f32 %v1446
        %v1449 = vcvt.s32.f32 %v1447
        %1450 = vmin.xlane.f32.xlu0 %v1449
        %v1451 = vpop.xlane.xlu0 %1450
        %vm1452 = vcmp.eq.f32.partialorder %v1449, %v1451
        %v1453 = vsel %vm1452, %v1448, inf
        %1454 = vmin.xlane.f32.xlu0 %v1453
        %v1455 = vpop.xlane.xlu0 %1454
        %v1456 = vcvt.f32.s32 %v1455
        %v1457 = vcvt.f32.s32 %v1451
        %v1458 = vshll.u32 %v1457, 16
        %v1459 = vadd.s32 %v1458, %v1456
        %v1460 = vsel %vm361, %v1368, 2147483647
        %v1461 = vand.u32 %v1460, 65535
        %v1462 = vshra.s32 %v1460, 16
        %v1463 = vcvt.s32.f32 %v1461
        %v1464 = vcvt.s32.f32 %v1462
        %1465 = vmin.xlane.f32.xlu0 %v1464
        %v1466 = vpop.xlane.xlu0 %1465
        %vm1467 = vcmp.eq.f32.partialorder %v1464, %v1466
        %v1468 = vsel %vm1467, %v1463, inf
        %1469 = vmin.xlane.f32.xlu0 %v1468
        %v1470 = vpop.xlane.xlu0 %1469
        %v1471 = vcvt.f32.s32 %v1470
        %v1472 = vcvt.f32.s32 %v1466
        %v1473 = vshll.u32 %v1472, 16
        %v1474 = vadd.s32 %v1473, %v1471
        %v1475 = vsel %vm361, %v1369, 2147483647
        %v1476 = vand.u32 %v1475, 65535
        %v1477 = vshra.s32 %v1475, 16
        %v1478 = vcvt.s32.f32 %v1476
        %v1479 = vcvt.s32.f32 %v1477
        %1480 = vmin.xlane.f32.xlu0 %v1479
        %v1481 = vpop.xlane.xlu0 %1480
        %vm1482 = vcmp.eq.f32.partialorder %v1479, %v1481
        %v1483 = vsel %vm1482, %v1478, inf
        %1484 = vmin.xlane.f32.xlu0 %v1483
        %v1485 = vpop.xlane.xlu0 %1484
        %v1486 = vcvt.f32.s32 %v1485
        %v1487 = vcvt.f32.s32 %v1481
        %v1488 = vshll.u32 %v1487, 16
        %v1489 = vadd.s32 %v1488, %v1486
        %v1490 = vlaneseq
        %v1491 = vshrl.u32 %v1490, 7
        %v1492 = vsub.s32 %v260, %v1491
        %v1493 = vrot.slane %v1384, %v1492
        %v1494 = vlaneseq
        %v1495 = vshrl.u32 %v1494, 7
        %v1496 = vsub.s32 %v260, %v1495
        %v1497 = vrot.slane %v1399, %v1496
        %v1498 = vlaneseq
        %v1499 = vshrl.u32 %v1498, 7
        %v1500 = vsub.s32 %v260, %v1499
        %v1501 = vrot.slane %v1414, %v1500
        %v1502 = vlaneseq
        %v1503 = vshrl.u32 %v1502, 7
        %v1504 = vsub.s32 %v260, %v1503
        %v1505 = vrot.slane %v1429, %v1504
        %v1506 = vlaneseq
        %v1507 = vshrl.u32 %v1506, 7
        %v1508 = vsub.s32 %v260, %v1507
        %v1509 = vrot.slane %v1444, %v1508
        %v1510 = vlaneseq
        %v1511 = vshrl.u32 %v1510, 7
        %v1512 = vsub.s32 %v260, %v1511
        %v1513 = vrot.slane %v1459, %v1512
        %v1514 = vlaneseq
        %v1515 = vshrl.u32 %v1514, 7
        %v1516 = vsub.s32 %v260, %v1515
        %v1517 = vrot.slane %v1474, %v1516
        %v1518 = vlaneseq
        %v1519 = vshrl.u32 %v1518, 7
        %v1520 = vsub.s32 %v260, %v1519
        %v1521 = vrot.slane %v1489, %v1520
        %v1522 = vsel %vm554, %v1497, %v1493
        %v1523 = vsel %vm556, %v1501, %v1522
        %v1524 = vsel %vm558, %v1505, %v1523
        %v1525 = vsel %vm560, %v1509, %v1524
        %v1526 = vsel %vm562, %v1513, %v1525
        %v1527 = vsel %vm564, %v1517, %v1526
        %v1528 = vsel %vm566, %v1521, %v1527
        %s1529 = scalar_lea.vmem [#allocation2], 24
        %1530 = vst.msk [vmem:[%s1529] sm:$0xff] %vm361, %v1528
        %s1531 = scalar_lea.vmem %s215, 24 [#allocation3]
        %v1532 = vld [vmem:[%s1531] sm:$0xff]
        %v1534 = vsel %vm578, %v1532, 0
        %1536 = vmatprep.subr.mxu0 0.0
        %1537 = vmatpush1.msra.mxu0 %v254
        %1538 = vmatprep.subr.mxu0 0.0
        %1539 = vmatpush1.msra.mxu0 %v255
        %1540 = vmatprep.subr.mxu0 0.0
        %1541 = vmatpush1.msra.mxu0 %v256
        %1542 = vmatprep.subr.mxu0 0.0
        %1543 = vmatpush1.msra.mxu0 %v257
        %1544 = vmatprep.subr.mxu0 0.0
        %1545 = vmatpush1.msra.mxu0 0.0
        %1546 = vmatprep.subr.mxu0 0.0
        %1547 = vmatpush1.msra.mxu0 0.0
        %1548 = vmatprep.subr.mxu0 0.0
        %1549 = vmatpush1.msra.mxu0 0.0
        %1550 = vmatprep.subr.mxu0 0.0
        %1551 = vmatpush1.msra.mxu0 0.0
        %1552 = vmatprep.subr.mxu0 0.0
        %1553 = vmatpush1.msra.mxu0 0.0
        %1554 = vmatprep.subr.mxu0 0.0
        %1555 = vmatpush1.msra.mxu0 0.0
        %1556 = vmatprep.subr.mxu0 0.0
        %1557 = vmatpush1.msra.mxu0 0.0
        %1558 = vmatprep.subr.mxu0 0.0
        %1559 = vmatpush1.msra.mxu0 0.0
        %1560 = vmatprep.subr.mxu0 0.0
        %1561 = vmatpush1.msra.mxu0 0.0
        %1562 = vmatprep.subr.mxu0 0.0
        %1563 = vmatpush1.msra.mxu0 0.0
        %1564 = vmatprep.subr.mxu0 0.0
        %1565 = vmatpush1.msra.mxu0 0.0
        %1566 = vmatprep.subr.mxu0 0.0
        %1567 = vmatpush1.msra.mxu0 0.0
        %1568 = vmatprep.subr.mxu0 0.0
        %1569 = vmatpush1.msra.mxu0 0.0
        %1570 = vmatprep.subr.mxu0 0.0
        %1571 = vmatpush1.msra.mxu0 0.0
        %1572 = vmatprep.subr.mxu0 0.0
        %1573 = vmatpush1.msra.mxu0 0.0
        %1574 = vmatprep.subr.mxu0 0.0
        %1575 = vmatpush1.msra.mxu0 0.0
        %1576 = vmatprep.subr.mxu0 0.0
        %1577 = vmatpush1.msra.mxu0 0.0
        %1578 = vmatprep.subr.mxu0 0.0
        %1579 = vmatpush1.msra.mxu0 0.0
        %1580 = vmatprep.subr.mxu0 0.0
        %1581 = vmatpush1.msra.mxu0 0.0
        %1582 = vmatprep.subr.mxu0 0.0
        %1583 = vmatpush1.msra.mxu0 0.0
        %1584 = vmatprep.subr.mxu0 0.0
        %1585 = vmatpush1.msra.mxu0 0.0
        %1586 = vmatprep.subr.mxu0 0.0
        %1587 = vmatpush1.msra.mxu0 0.0
        %1588 = vmatprep.subr.mxu0 0.0
        %1589 = vmatpush1.msra.mxu0 0.0
        %1590 = vmatprep.subr.mxu0 0.0
        %1591 = vmatpush1.msra.mxu0 0.0
        %1592 = vmatprep.subr.mxu0 0.0
        %1593 = vmatpush1.msra.mxu0 0.0
        %1594 = vmatprep.subr.mxu0 0.0
        %1595 = vmatpush1.msra.mxu0 0.0
        %1596 = vmatprep.subr.mxu0 0.0
        %1597 = vmatpush1.msra.mxu0 0.0
        %1598 = vmatprep.subr.mxu0 0.0
        %1599 = vmatpush1.msra.mxu0 0.0
        %1600 = vmatprep.mubr.f32.mxu0 0.0
        %1601 = vmatmul.mubr.f32.gmra.mrb[0].mxu0 %v1534
        %v1602 = vpop.f32.mrb[0].mxu0
        %v1603 = vadd.f32 %v576, %v1602
        %v1604 = vpop.f32.mrb[0].mxu0
        %1605 = vdwg.mxu0
        %v1607 = vlaneseq
        %v1608 = vshrl.u32 %v1607, 7
        %v1609 = vsub.s32 0, %v1608
        %v1610 = vrot.slane %v1603, %v1609
        %1612 = vbcast.lane.b32.xlu0 %v1610, 256
        %v1613 = vpop.permute.xlu0 %1612
        %v1614 = vlaneseq
        %v1615 = vshrl.u32 %v1614, 7
        %v1616 = vsub.s32 1, %v1615
        %v1617 = vrot.slane %v1603, %v1616
        %1619 = vbcast.lane.b32.xlu0 %v1617, 256
        %v1620 = vpop.permute.xlu0 %1619
        %v1621 = vlaneseq
        %v1622 = vshrl.u32 %v1621, 7
        %v1623 = vsub.s32 2, %v1622
        %v1624 = vrot.slane %v1603, %v1623
        %1626 = vbcast.lane.b32.xlu0 %v1624, 256
        %v1627 = vpop.permute.xlu0 %1626
        %v1628 = vlaneseq
        %v1629 = vshrl.u32 %v1628, 7
        %v1630 = vsub.s32 3, %v1629
        %v1631 = vrot.slane %v1603, %v1630
        %1633 = vbcast.lane.b32.xlu0 %v1631, 256
        %v1634 = vpop.permute.xlu0 %1633
        %v1635 = vlaneseq
        %v1636 = vshrl.u32 %v1635, 7
        %v1637 = vsub.s32 4, %v1636
        %v1638 = vrot.slane %v1603, %v1637
        %1640 = vbcast.lane.b32.xlu0 %v1638, 256
        %v1641 = vpop.permute.xlu0 %1640
        %v1642 = vlaneseq
        %v1643 = vshrl.u32 %v1642, 7
        %v1644 = vsub.s32 5, %v1643
        %v1645 = vrot.slane %v1603, %v1644
        %1647 = vbcast.lane.b32.xlu0 %v1645, 256
        %v1648 = vpop.permute.xlu0 %1647
        %v1649 = vlaneseq
        %v1650 = vshrl.u32 %v1649, 7
        %v1651 = vsub.s32 6, %v1650
        %v1652 = vrot.slane %v1603, %v1651
        %1654 = vbcast.lane.b32.xlu0 %v1652, 256
        %v1655 = vpop.permute.xlu0 %1654
        %v1656 = vlaneseq
        %v1657 = vshrl.u32 %v1656, 7
        %v1658 = vsub.s32 7, %v1657
        %v1659 = vrot.slane %v1603, %v1658
        %1661 = vbcast.lane.b32.xlu0 %v1659, 256
        %v1662 = vpop.permute.xlu0 %1661
        %v1671 = vadd.f32 %v1332, %v1613
        %v1672 = vadd.f32 %v1335, %v1620
        %v1673 = vadd.f32 %v1338, %v1627
        %v1674 = vadd.f32 %v1341, %v1634
        %v1675 = vadd.f32 %v1344, %v1641
        %v1676 = vadd.f32 %v1347, %v1648
        %v1677 = vadd.f32 %v1350, %v1655
        %v1678 = vadd.f32 %v1353, %v1662
        %1687 = vset.pattern.permute.xlu0 0
        %1688 = vperm.xlu0 %1687, %v1671
        %v1689 = vpop.permute.xlu0 %1688
        %1690 = vset.pattern.permute.xlu0 0
        %1691 = vperm.xlu0 %1690, %v1672
        %v1692 = vpop.permute.xlu0 %1691
        %1693 = vset.pattern.permute.xlu0 0
        %1694 = vperm.xlu0 %1693, %v1673
        %v1695 = vpop.permute.xlu0 %1694
        %1696 = vset.pattern.permute.xlu0 0
        %1697 = vperm.xlu0 %1696, %v1674
        %v1698 = vpop.permute.xlu0 %1697
        %1699 = vset.pattern.permute.xlu0 0
        %1700 = vperm.xlu0 %1699, %v1675
        %v1701 = vpop.permute.xlu0 %1700
        %1702 = vset.pattern.permute.xlu0 0
        %1703 = vperm.xlu0 %1702, %v1676
        %v1704 = vpop.permute.xlu0 %1703
        %1705 = vset.pattern.permute.xlu0 0
        %1706 = vperm.xlu0 %1705, %v1677
        %v1707 = vpop.permute.xlu0 %1706
        %1708 = vset.pattern.permute.xlu0 0
        %1709 = vperm.xlu0 %1708, %v1678
        %v1710 = vpop.permute.xlu0 %1709
        %v1711 = vlaneseq
        %v1712 = vshrl.u32 %v1711, 7
        %v1713 = vsub.s32 %v260, %v1712
        %v1714 = vrot.slane %v1689, %v1713
        %v1715 = vlaneseq
        %v1716 = vshrl.u32 %v1715, 7
        %v1717 = vsub.s32 %v260, %v1716
        %v1718 = vrot.slane %v1692, %v1717
        %v1719 = vlaneseq
        %v1720 = vshrl.u32 %v1719, 7
        %v1721 = vsub.s32 %v260, %v1720
        %v1722 = vrot.slane %v1695, %v1721
        %v1723 = vlaneseq
        %v1724 = vshrl.u32 %v1723, 7
        %v1725 = vsub.s32 %v260, %v1724
        %v1726 = vrot.slane %v1698, %v1725
        %v1727 = vlaneseq
        %v1728 = vshrl.u32 %v1727, 7
        %v1729 = vsub.s32 %v260, %v1728
        %v1730 = vrot.slane %v1701, %v1729
        %v1731 = vlaneseq
        %v1732 = vshrl.u32 %v1731, 7
        %v1733 = vsub.s32 %v260, %v1732
        %v1734 = vrot.slane %v1704, %v1733
        %v1735 = vlaneseq
        %v1736 = vshrl.u32 %v1735, 7
        %v1737 = vsub.s32 %v260, %v1736
        %v1738 = vrot.slane %v1707, %v1737
        %v1739 = vlaneseq
        %v1740 = vshrl.u32 %v1739, 7
        %v1741 = vsub.s32 %v260, %v1740
        %v1742 = vrot.slane %v1710, %v1741
        %v1743 = vsel %vm556, %v1714, %v1714
        %v1744 = vsel %vm558, %v1714, %v1743
        %v1745 = vsel %vm560, %v1714, %v1744
        %v1746 = vsel %vm562, %v1714, %v1745
        %v1747 = vsel %vm564, %v1714, %v1746
        %v1748 = vsel %vm566, %v1714, %v1747
        %v1749 = vsel %vm556, %v1718, %v1718
        %v1750 = vsel %vm558, %v1718, %v1749
        %v1751 = vsel %vm560, %v1718, %v1750
        %v1752 = vsel %vm562, %v1718, %v1751
        %v1753 = vsel %vm564, %v1718, %v1752
        %v1754 = vsel %vm566, %v1718, %v1753
        %v1755 = vsel %vm556, %v1722, %v1722
        %v1756 = vsel %vm558, %v1722, %v1755
        %v1757 = vsel %vm560, %v1722, %v1756
        %v1758 = vsel %vm562, %v1722, %v1757
        %v1759 = vsel %vm564, %v1722, %v1758
        %v1760 = vsel %vm566, %v1722, %v1759
        %v1761 = vsel %vm556, %v1726, %v1726
        %v1762 = vsel %vm558, %v1726, %v1761
        %v1763 = vsel %vm560, %v1726, %v1762
        %v1764 = vsel %vm562, %v1726, %v1763
        %v1765 = vsel %vm564, %v1726, %v1764
        %v1766 = vsel %vm566, %v1726, %v1765
        %v1767 = vsel %vm556, %v1730, %v1730
        %v1768 = vsel %vm558, %v1730, %v1767
        %v1769 = vsel %vm560, %v1730, %v1768
        %v1770 = vsel %vm562, %v1730, %v1769
        %v1771 = vsel %vm564, %v1730, %v1770
        %v1772 = vsel %vm566, %v1730, %v1771
        %v1773 = vsel %vm556, %v1734, %v1734
        %v1774 = vsel %vm558, %v1734, %v1773
        %v1775 = vsel %vm560, %v1734, %v1774
        %v1776 = vsel %vm562, %v1734, %v1775
        %v1777 = vsel %vm564, %v1734, %v1776
        %v1778 = vsel %vm566, %v1734, %v1777
        %v1779 = vsel %vm556, %v1738, %v1738
        %v1780 = vsel %vm558, %v1738, %v1779
        %v1781 = vsel %vm560, %v1738, %v1780
        %v1782 = vsel %vm562, %v1738, %v1781
        %v1783 = vsel %vm564, %v1738, %v1782
        %v1784 = vsel %vm566, %v1738, %v1783
        %v1785 = vsel %vm556, %v1742, %v1742
        %v1786 = vsel %vm558, %v1742, %v1785
        %v1787 = vsel %vm560, %v1742, %v1786
        %v1788 = vsel %vm562, %v1742, %v1787
        %v1789 = vsel %vm564, %v1742, %v1788
        %v1790 = vsel %vm566, %v1742, %v1789
        %v1799 = vadd.f32 %v253, %v1748
        %v1800 = vadd.f32 %v253, %v1754
        %v1801 = vadd.f32 %v253, %v1760
        %v1802 = vadd.f32 %v253, %v1766
        %v1803 = vadd.f32 %v253, %v1772
        %v1804 = vadd.f32 %v253, %v1778
        %v1805 = vadd.f32 %v253, %v1784
        %v1806 = vadd.f32 %v253, %v1790
        %v1807 = vsel %vm361, %v1799, -inf
        %1808 = vmax.xlane.f32.xlu0 %v1807
        %v1809 = vpop.xlane.xlu0 %1808
        %v1810 = vsel %vm361, %v1800, -inf
        %1811 = vmax.xlane.f32.xlu0 %v1810
        %v1812 = vpop.xlane.xlu0 %1811
        %v1813 = vsel %vm361, %v1801, -inf
        %1814 = vmax.xlane.f32.xlu0 %v1813
        %v1815 = vpop.xlane.xlu0 %1814
        %v1816 = vsel %vm361, %v1802, -inf
        %1817 = vmax.xlane.f32.xlu0 %v1816
        %v1818 = vpop.xlane.xlu0 %1817
        %v1819 = vsel %vm361, %v1803, -inf
        %1820 = vmax.xlane.f32.xlu0 %v1819
        %v1821 = vpop.xlane.xlu0 %1820
        %v1822 = vsel %vm361, %v1804, -inf
        %1823 = vmax.xlane.f32.xlu0 %v1822
        %v1824 = vpop.xlane.xlu0 %1823
        %v1825 = vsel %vm361, %v1805, -inf
        %1826 = vmax.xlane.f32.xlu0 %v1825
        %v1827 = vpop.xlane.xlu0 %1826
        %v1828 = vsel %vm361, %v1806, -inf
        %1829 = vmax.xlane.f32.xlu0 %v1828
        %v1830 = vpop.xlane.xlu0 %1829
        %vm1831 = vcmp.eq.f32.partialorder %v1799, %v1809
        %vm1832 = vcmp.eq.f32.partialorder %v1800, %v1812
        %vm1833 = vcmp.eq.f32.partialorder %v1801, %v1815
        %vm1834 = vcmp.eq.f32.partialorder %v1802, %v1818
        %vm1835 = vcmp.eq.f32.partialorder %v1803, %v1821
        %vm1836 = vcmp.eq.f32.partialorder %v1804, %v1824
        %vm1837 = vcmp.eq.f32.partialorder %v1805, %v1827
        %vm1838 = vcmp.eq.f32.partialorder %v1806, %v1830
        %v1839 = vsel %vm1831, %v260, 8
        %v1840 = vsel %vm1832, %v260, 8
        %v1841 = vsel %vm1833, %v260, 8
        %v1842 = vsel %vm1834, %v260, 8
        %v1843 = vsel %vm1835, %v260, 8
        %v1844 = vsel %vm1836, %v260, 8
        %v1845 = vsel %vm1837, %v260, 8
        %v1846 = vsel %vm1838, %v260, 8
        %v1847 = vsel %vm361, %v1839, 2147483647
        %v1848 = vand.u32 %v1847, 65535
        %v1849 = vshra.s32 %v1847, 16
        %v1850 = vcvt.s32.f32 %v1848
        %v1851 = vcvt.s32.f32 %v1849
        %1852 = vmin.xlane.f32.xlu0 %v1851
        %v1853 = vpop.xlane.xlu0 %1852
        %vm1854 = vcmp.eq.f32.partialorder %v1851, %v1853
        %v1855 = vsel %vm1854, %v1850, inf
        %1856 = vmin.xlane.f32.xlu0 %v1855
        %v1857 = vpop.xlane.xlu0 %1856
        %v1858 = vcvt.f32.s32 %v1857
        %v1859 = vcvt.f32.s32 %v1853
        %v1860 = vshll.u32 %v1859, 16
        %v1861 = vadd.s32 %v1860, %v1858
        %v1862 = vsel %vm361, %v1840, 2147483647
        %v1863 = vand.u32 %v1862, 65535
        %v1864 = vshra.s32 %v1862, 16
        %v1865 = vcvt.s32.f32 %v1863
        %v1866 = vcvt.s32.f32 %v1864
        %1867 = vmin.xlane.f32.xlu0 %v1866
        %v1868 = vpop.xlane.xlu0 %1867
        %vm1869 = vcmp.eq.f32.partialorder %v1866, %v1868
        %v1870 = vsel %vm1869, %v1865, inf
        %1871 = vmin.xlane.f32.xlu0 %v1870
        %v1872 = vpop.xlane.xlu0 %1871
        %v1873 = vcvt.f32.s32 %v1872
        %v1874 = vcvt.f32.s32 %v1868
        %v1875 = vshll.u32 %v1874, 16
        %v1876 = vadd.s32 %v1875, %v1873
        %v1877 = vsel %vm361, %v1841, 2147483647
        %v1878 = vand.u32 %v1877, 65535
        %v1879 = vshra.s32 %v1877, 16
        %v1880 = vcvt.s32.f32 %v1878
        %v1881 = vcvt.s32.f32 %v1879
        %1882 = vmin.xlane.f32.xlu0 %v1881
        %v1883 = vpop.xlane.xlu0 %1882
        %vm1884 = vcmp.eq.f32.partialorder %v1881, %v1883
        %v1885 = vsel %vm1884, %v1880, inf
        %1886 = vmin.xlane.f32.xlu0 %v1885
        %v1887 = vpop.xlane.xlu0 %1886
        %v1888 = vcvt.f32.s32 %v1887
        %v1889 = vcvt.f32.s32 %v1883
        %v1890 = vshll.u32 %v1889, 16
        %v1891 = vadd.s32 %v1890, %v1888
        %v1892 = vsel %vm361, %v1842, 2147483647
        %v1893 = vand.u32 %v1892, 65535
        %v1894 = vshra.s32 %v1892, 16
        %v1895 = vcvt.s32.f32 %v1893
        %v1896 = vcvt.s32.f32 %v1894
        %1897 = vmin.xlane.f32.xlu0 %v1896
        %v1898 = vpop.xlane.xlu0 %1897
        %vm1899 = vcmp.eq.f32.partialorder %v1896, %v1898
        %v1900 = vsel %vm1899, %v1895, inf
        %1901 = vmin.xlane.f32.xlu0 %v1900
        %v1902 = vpop.xlane.xlu0 %1901
        %v1903 = vcvt.f32.s32 %v1902
        %v1904 = vcvt.f32.s32 %v1898
        %v1905 = vshll.u32 %v1904, 16
        %v1906 = vadd.s32 %v1905, %v1903
        %v1907 = vsel %vm361, %v1843, 2147483647
        %v1908 = vand.u32 %v1907, 65535
        %v1909 = vshra.s32 %v1907, 16
        %v1910 = vcvt.s32.f32 %v1908
        %v1911 = vcvt.s32.f32 %v1909
        %1912 = vmin.xlane.f32.xlu0 %v1911
        %v1913 = vpop.xlane.xlu0 %1912
        %vm1914 = vcmp.eq.f32.partialorder %v1911, %v1913
        %v1915 = vsel %vm1914, %v1910, inf
        %1916 = vmin.xlane.f32.xlu0 %v1915
        %v1917 = vpop.xlane.xlu0 %1916
        %v1918 = vcvt.f32.s32 %v1917
        %v1919 = vcvt.f32.s32 %v1913
        %v1920 = vshll.u32 %v1919, 16
        %v1921 = vadd.s32 %v1920, %v1918
        %v1922 = vsel %vm361, %v1844, 2147483647
        %v1923 = vand.u32 %v1922, 65535
        %v1924 = vshra.s32 %v1922, 16
        %v1925 = vcvt.s32.f32 %v1923
        %v1926 = vcvt.s32.f32 %v1924
        %1927 = vmin.xlane.f32.xlu0 %v1926
        %v1928 = vpop.xlane.xlu0 %1927
        %vm1929 = vcmp.eq.f32.partialorder %v1926, %v1928
        %v1930 = vsel %vm1929, %v1925, inf
        %1931 = vmin.xlane.f32.xlu0 %v1930
        %v1932 = vpop.xlane.xlu0 %1931
        %v1933 = vcvt.f32.s32 %v1932
        %v1934 = vcvt.f32.s32 %v1928
        %v1935 = vshll.u32 %v1934, 16
        %v1936 = vadd.s32 %v1935, %v1933
        %v1937 = vsel %vm361, %v1845, 2147483647
        %v1938 = vand.u32 %v1937, 65535
        %v1939 = vshra.s32 %v1937, 16
        %v1940 = vcvt.s32.f32 %v1938
        %v1941 = vcvt.s32.f32 %v1939
        %1942 = vmin.xlane.f32.xlu0 %v1941
        %v1943 = vpop.xlane.xlu0 %1942
        %vm1944 = vcmp.eq.f32.partialorder %v1941, %v1943
        %v1945 = vsel %vm1944, %v1940, inf
        %1946 = vmin.xlane.f32.xlu0 %v1945
        %v1947 = vpop.xlane.xlu0 %1946
        %v1948 = vcvt.f32.s32 %v1947
        %v1949 = vcvt.f32.s32 %v1943
        %v1950 = vshll.u32 %v1949, 16
        %v1951 = vadd.s32 %v1950, %v1948
        %v1952 = vsel %vm361, %v1846, 2147483647
        %v1953 = vand.u32 %v1952, 65535
        %v1954 = vshra.s32 %v1952, 16
        %v1955 = vcvt.s32.f32 %v1953
        %v1956 = vcvt.s32.f32 %v1954
        %1957 = vmin.xlane.f32.xlu0 %v1956
        %v1958 = vpop.xlane.xlu0 %1957
        %vm1959 = vcmp.eq.f32.partialorder %v1956, %v1958
        %v1960 = vsel %vm1959, %v1955, inf
        %1961 = vmin.xlane.f32.xlu0 %v1960
        %v1962 = vpop.xlane.xlu0 %1961
        %v1963 = vcvt.f32.s32 %v1962
        %v1964 = vcvt.f32.s32 %v1958
        %v1965 = vshll.u32 %v1964, 16
        %v1966 = vadd.s32 %v1965, %v1963
        %v1967 = vlaneseq
        %v1968 = vshrl.u32 %v1967, 7
        %v1969 = vsub.s32 %v260, %v1968
        %v1970 = vrot.slane %v1861, %v1969
        %v1971 = vlaneseq
        %v1972 = vshrl.u32 %v1971, 7
        %v1973 = vsub.s32 %v260, %v1972
        %v1974 = vrot.slane %v1876, %v1973
        %v1975 = vlaneseq
        %v1976 = vshrl.u32 %v1975, 7
        %v1977 = vsub.s32 %v260, %v1976
        %v1978 = vrot.slane %v1891, %v1977
        %v1979 = vlaneseq
        %v1980 = vshrl.u32 %v1979, 7
        %v1981 = vsub.s32 %v260, %v1980
        %v1982 = vrot.slane %v1906, %v1981
        %v1983 = vlaneseq
        %v1984 = vshrl.u32 %v1983, 7
        %v1985 = vsub.s32 %v260, %v1984
        %v1986 = vrot.slane %v1921, %v1985
        %v1987 = vlaneseq
        %v1988 = vshrl.u32 %v1987, 7
        %v1989 = vsub.s32 %v260, %v1988
        %v1990 = vrot.slane %v1936, %v1989
        %v1991 = vlaneseq
        %v1992 = vshrl.u32 %v1991, 7
        %v1993 = vsub.s32 %v260, %v1992
        %v1994 = vrot.slane %v1951, %v1993
        %v1995 = vlaneseq
        %v1996 = vshrl.u32 %v1995, 7
        %v1997 = vsub.s32 %v260, %v1996
        %v1998 = vrot.slane %v1966, %v1997
        %v1999 = vsel %vm554, %v1974, %v1970
        %v2000 = vsel %vm556, %v1978, %v1999
        %v2001 = vsel %vm558, %v1982, %v2000
        %v2002 = vsel %vm560, %v1986, %v2001
        %v2003 = vsel %vm562, %v1990, %v2002
        %v2004 = vsel %vm564, %v1994, %v2003
        %v2005 = vsel %vm566, %v1998, %v2004
        %s2006 = scalar_lea.vmem [#allocation2], 32
        %2007 = vst.msk [vmem:[%s2006] sm:$0xff] %vm361, %v2005
        %s2008 = scalar_lea.vmem %s215, 32 [#allocation3]
        %v2009 = vld [vmem:[%s2008] sm:$0xff]
        %v2011 = vsel %vm578, %v2009, 0
        %2013 = vmatprep.subr.mxu0 0.0
        %2014 = vmatpush1.msra.mxu0 %v254
        %2015 = vmatprep.subr.mxu0 0.0
        %2016 = vmatpush1.msra.mxu0 %v255
        %2017 = vmatprep.subr.mxu0 0.0
        %2018 = vmatpush1.msra.mxu0 %v256
        %2019 = vmatprep.subr.mxu0 0.0
        %2020 = vmatpush1.msra.mxu0 %v257
        %2021 = vmatprep.subr.mxu0 0.0
        %2022 = vmatpush1.msra.mxu0 0.0
        %2023 = vmatprep.subr.mxu0 0.0
        %2024 = vmatpush1.msra.mxu0 0.0
        %2025 = vmatprep.subr.mxu0 0.0
        %2026 = vmatpush1.msra.mxu0 0.0
        %2027 = vmatprep.subr.mxu0 0.0
        %2028 = vmatpush1.msra.mxu0 0.0
        %2029 = vmatprep.subr.mxu0 0.0
        %2030 = vmatpush1.msra.mxu0 0.0
        %2031 = vmatprep.subr.mxu0 0.0
        %2032 = vmatpush1.msra.mxu0 0.0
        %2033 = vmatprep.subr.mxu0 0.0
        %2034 = vmatpush1.msra.mxu0 0.0
        %2035 = vmatprep.subr.mxu0 0.0
        %2036 = vmatpush1.msra.mxu0 0.0
        %2037 = vmatprep.subr.mxu0 0.0
        %2038 = vmatpush1.msra.mxu0 0.0
        %2039 = vmatprep.subr.mxu0 0.0
        %2040 = vmatpush1.msra.mxu0 0.0
        %2041 = vmatprep.subr.mxu0 0.0
        %2042 = vmatpush1.msra.mxu0 0.0
        %2043 = vmatprep.subr.mxu0 0.0
        %2044 = vmatpush1.msra.mxu0 0.0
        %2045 = vmatprep.subr.mxu0 0.0
        %2046 = vmatpush1.msra.mxu0 0.0
        %2047 = vmatprep.subr.mxu0 0.0
        %2048 = vmatpush1.msra.mxu0 0.0
        %2049 = vmatprep.subr.mxu0 0.0
        %2050 = vmatpush1.msra.mxu0 0.0
        %2051 = vmatprep.subr.mxu0 0.0
        %2052 = vmatpush1.msra.mxu0 0.0
        %2053 = vmatprep.subr.mxu0 0.0
        %2054 = vmatpush1.msra.mxu0 0.0
        %2055 = vmatprep.subr.mxu0 0.0
        %2056 = vmatpush1.msra.mxu0 0.0
        %2057 = vmatprep.subr.mxu0 0.0
        %2058 = vmatpush1.msra.mxu0 0.0
        %2059 = vmatprep.subr.mxu0 0.0
        %2060 = vmatpush1.msra.mxu0 0.0
        %2061 = vmatprep.subr.mxu0 0.0
        %2062 = vmatpush1.msra.mxu0 0.0
        %2063 = vmatprep.subr.mxu0 0.0
        %2064 = vmatpush1.msra.mxu0 0.0
        %2065 = vmatprep.subr.mxu0 0.0
        %2066 = vmatpush1.msra.mxu0 0.0
        %2067 = vmatprep.subr.mxu0 0.0
        %2068 = vmatpush1.msra.mxu0 0.0
        %2069 = vmatprep.subr.mxu0 0.0
        %2070 = vmatpush1.msra.mxu0 0.0
        %2071 = vmatprep.subr.mxu0 0.0
        %2072 = vmatpush1.msra.mxu0 0.0
        %2073 = vmatprep.subr.mxu0 0.0
        %2074 = vmatpush1.msra.mxu0 0.0
        %2075 = vmatprep.subr.mxu0 0.0
        %2076 = vmatpush1.msra.mxu0 0.0
        %2077 = vmatprep.mubr.f32.mxu0 0.0
        %2078 = vmatmul.mubr.f32.gmra.mrb[0].mxu0 %v2011
        %v2079 = vpop.f32.mrb[0].mxu0
        %v2080 = vadd.f32 %v576, %v2079
        %v2081 = vpop.f32.mrb[0].mxu0
        %2082 = vdwg.mxu0
        %v2084 = vlaneseq
        %v2085 = vshrl.u32 %v2084, 7
        %v2086 = vsub.s32 0, %v2085
        %v2087 = vrot.slane %v2080, %v2086
        %2089 = vbcast.lane.b32.xlu0 %v2087, 256
        %v2090 = vpop.permute.xlu0 %2089
        %v2091 = vlaneseq
        %v2092 = vshrl.u32 %v2091, 7
        %v2093 = vsub.s32 1, %v2092
        %v2094 = vrot.slane %v2080, %v2093
        %2096 = vbcast.lane.b32.xlu0 %v2094, 256
        %v2097 = vpop.permute.xlu0 %2096
        %v2098 = vlaneseq
        %v2099 = vshrl.u32 %v2098, 7
        %v2100 = vsub.s32 2, %v2099
        %v2101 = vrot.slane %v2080, %v2100
        %2103 = vbcast.lane.b32.xlu0 %v2101, 256
        %v2104 = vpop.permute.xlu0 %2103
        %v2105 = vlaneseq
        %v2106 = vshrl.u32 %v2105, 7
        %v2107 = vsub.s32 3, %v2106
        %v2108 = vrot.slane %v2080, %v2107
        %2110 = vbcast.lane.b32.xlu0 %v2108, 256
        %v2111 = vpop.permute.xlu0 %2110
        %v2112 = vlaneseq
        %v2113 = vshrl.u32 %v2112, 7
        %v2114 = vsub.s32 4, %v2113
        %v2115 = vrot.slane %v2080, %v2114
        %2117 = vbcast.lane.b32.xlu0 %v2115, 256
        %v2118 = vpop.permute.xlu0 %2117
        %v2119 = vlaneseq
        %v2120 = vshrl.u32 %v2119, 7
        %v2121 = vsub.s32 5, %v2120
        %v2122 = vrot.slane %v2080, %v2121
        %2124 = vbcast.lane.b32.xlu0 %v2122, 256
        %v2125 = vpop.permute.xlu0 %2124
        %v2126 = vlaneseq
        %v2127 = vshrl.u32 %v2126, 7
        %v2128 = vsub.s32 6, %v2127
        %v2129 = vrot.slane %v2080, %v2128
        %2131 = vbcast.lane.b32.xlu0 %v2129, 256
        %v2132 = vpop.permute.xlu0 %2131
        %v2133 = vlaneseq
        %v2134 = vshrl.u32 %v2133, 7
        %v2135 = vsub.s32 7, %v2134
        %v2136 = vrot.slane %v2080, %v2135
        %2138 = vbcast.lane.b32.xlu0 %v2136, 256
        %v2139 = vpop.permute.xlu0 %2138
        %v2148 = vadd.f32 %v1809, %v2090
        %v2149 = vadd.f32 %v1812, %v2097
        %v2150 = vadd.f32 %v1815, %v2104
        %v2151 = vadd.f32 %v1818, %v2111
        %v2152 = vadd.f32 %v1821, %v2118
        %v2153 = vadd.f32 %v1824, %v2125
        %v2154 = vadd.f32 %v1827, %v2132
        %v2155 = vadd.f32 %v1830, %v2139
        %2164 = vset.pattern.permute.xlu0 0
        %2165 = vperm.xlu0 %2164, %v2148
        %v2166 = vpop.permute.xlu0 %2165
        %2167 = vset.pattern.permute.xlu0 0
        %2168 = vperm.xlu0 %2167, %v2149
        %v2169 = vpop.permute.xlu0 %2168
        %2170 = vset.pattern.permute.xlu0 0
        %2171 = vperm.xlu0 %2170, %v2150
        %v2172 = vpop.permute.xlu0 %2171
        %2173 = vset.pattern.permute.xlu0 0
        %2174 = vperm.xlu0 %2173, %v2151
        %v2175 = vpop.permute.xlu0 %2174
        %2176 = vset.pattern.permute.xlu0 0
        %2177 = vperm.xlu0 %2176, %v2152
        %v2178 = vpop.permute.xlu0 %2177
        %2179 = vset.pattern.permute.xlu0 0
        %2180 = vperm.xlu0 %2179, %v2153
        %v2181 = vpop.permute.xlu0 %2180
        %2182 = vset.pattern.permute.xlu0 0
        %2183 = vperm.xlu0 %2182, %v2154
        %v2184 = vpop.permute.xlu0 %2183
        %2185 = vset.pattern.permute.xlu0 0
        %2186 = vperm.xlu0 %2185, %v2155
        %v2187 = vpop.permute.xlu0 %2186
        %v2188 = vlaneseq
        %v2189 = vshrl.u32 %v2188, 7
        %v2190 = vsub.s32 %v260, %v2189
        %v2191 = vrot.slane %v2166, %v2190
        %v2192 = vlaneseq
        %v2193 = vshrl.u32 %v2192, 7
        %v2194 = vsub.s32 %v260, %v2193
        %v2195 = vrot.slane %v2169, %v2194
        %v2196 = vlaneseq
        %v2197 = vshrl.u32 %v2196, 7
        %v2198 = vsub.s32 %v260, %v2197
        %v2199 = vrot.slane %v2172, %v2198
        %v2200 = vlaneseq
        %v2201 = vshrl.u32 %v2200, 7
        %v2202 = vsub.s32 %v260, %v2201
        %v2203 = vrot.slane %v2175, %v2202
        %v2204 = vlaneseq
        %v2205 = vshrl.u32 %v2204, 7
        %v2206 = vsub.s32 %v260, %v2205
        %v2207 = vrot.slane %v2178, %v2206
        %v2208 = vlaneseq
        %v2209 = vshrl.u32 %v2208, 7
        %v2210 = vsub.s32 %v260, %v2209
        %v2211 = vrot.slane %v2181, %v2210
        %v2212 = vlaneseq
        %v2213 = vshrl.u32 %v2212, 7
        %v2214 = vsub.s32 %v260, %v2213
        %v2215 = vrot.slane %v2184, %v2214
        %v2216 = vlaneseq
        %v2217 = vshrl.u32 %v2216, 7
        %v2218 = vsub.s32 %v260, %v2217
        %v2219 = vrot.slane %v2187, %v2218
        %v2220 = vsel %vm556, %v2191, %v2191
        %v2221 = vsel %vm558, %v2191, %v2220
        %v2222 = vsel %vm560, %v2191, %v2221
        %v2223 = vsel %vm562, %v2191, %v2222
        %v2224 = vsel %vm564, %v2191, %v2223
        %v2225 = vsel %vm566, %v2191, %v2224
        %v2226 = vsel %vm556, %v2195, %v2195
        %v2227 = vsel %vm558, %v2195, %v2226
        %v2228 = vsel %vm560, %v2195, %v2227
        %v2229 = vsel %vm562, %v2195, %v2228
        %v2230 = vsel %vm564, %v2195, %v2229
        %v2231 = vsel %vm566, %v2195, %v2230
        %v2232 = vsel %vm556, %v2199, %v2199
        %v2233 = vsel %vm558, %v2199, %v2232
        %v2234 = vsel %vm560, %v2199, %v2233
        %v2235 = vsel %vm562, %v2199, %v2234
        %v2236 = vsel %vm564, %v2199, %v2235
        %v2237 = vsel %vm566, %v2199, %v2236
        %v2238 = vsel %vm556, %v2203, %v2203
        %v2239 = vsel %vm558, %v2203, %v2238
        %v2240 = vsel %vm560, %v2203, %v2239
        %v2241 = vsel %vm562, %v2203, %v2240
        %v2242 = vsel %vm564, %v2203, %v2241
        %v2243 = vsel %vm566, %v2203, %v2242
        %v2244 = vsel %vm556, %v2207, %v2207
        %v2245 = vsel %vm558, %v2207, %v2244
        %v2246 = vsel %vm560, %v2207, %v2245
        %v2247 = vsel %vm562, %v2207, %v2246
        %v2248 = vsel %vm564, %v2207, %v2247
        %v2249 = vsel %vm566, %v2207, %v2248
        %v2250 = vsel %vm556, %v2211, %v2211
        %v2251 = vsel %vm558, %v2211, %v2250
        %v2252 = vsel %vm560, %v2211, %v2251
        %v2253 = vsel %vm562, %v2211, %v2252
        %v2254 = vsel %vm564, %v2211, %v2253
        %v2255 = vsel %vm566, %v2211, %v2254
        %v2256 = vsel %vm556, %v2215, %v2215
        %v2257 = vsel %vm558, %v2215, %v2256
        %v2258 = vsel %vm560, %v2215, %v2257
        %v2259 = vsel %vm562, %v2215, %v2258
        %v2260 = vsel %vm564, %v2215, %v2259
        %v2261 = vsel %vm566, %v2215, %v2260
        %v2262 = vsel %vm556, %v2219, %v2219
        %v2263 = vsel %vm558, %v2219, %v2262
        %v2264 = vsel %vm560, %v2219, %v2263
        %v2265 = vsel %vm562, %v2219, %v2264
        %v2266 = vsel %vm564, %v2219, %v2265
        %v2267 = vsel %vm566, %v2219, %v2266
        %v2276 = vadd.f32 %v253, %v2225
        %v2277 = vadd.f32 %v253, %v2231
        %v2278 = vadd.f32 %v253, %v2237
        %v2279 = vadd.f32 %v253, %v2243
        %v2280 = vadd.f32 %v253, %v2249
        %v2281 = vadd.f32 %v253, %v2255
        %v2282 = vadd.f32 %v253, %v2261
        %v2283 = vadd.f32 %v253, %v2267
        %v2284 = vsel %vm361, %v2276, -inf
        %2285 = vmax.xlane.f32.xlu0 %v2284
        %v2286 = vpop.xlane.xlu0 %2285
        %v2287 = vsel %vm361, %v2277, -inf
        %2288 = vmax.xlane.f32.xlu0 %v2287
        %v2289 = vpop.xlane.xlu0 %2288
        %v2290 = vsel %vm361, %v2278, -inf
        %2291 = vmax.xlane.f32.xlu0 %v2290
        %v2292 = vpop.xlane.xlu0 %2291
        %v2293 = vsel %vm361, %v2279, -inf
        %2294 = vmax.xlane.f32.xlu0 %v2293
        %v2295 = vpop.xlane.xlu0 %2294
        %v2296 = vsel %vm361, %v2280, -inf
        %2297 = vmax.xlane.f32.xlu0 %v2296
        %v2298 = vpop.xlane.xlu0 %2297
        %v2299 = vsel %vm361, %v2281, -inf
        %2300 = vmax.xlane.f32.xlu0 %v2299
        %v2301 = vpop.xlane.xlu0 %2300
        %v2302 = vsel %vm361, %v2282, -inf
        %2303 = vmax.xlane.f32.xlu0 %v2302
        %v2304 = vpop.xlane.xlu0 %2303
        %v2305 = vsel %vm361, %v2283, -inf
        %2306 = vmax.xlane.f32.xlu0 %v2305
        %v2307 = vpop.xlane.xlu0 %2306
        %vm2308 = vcmp.eq.f32.partialorder %v2276, %v2286
        %vm2309 = vcmp.eq.f32.partialorder %v2277, %v2289
        %vm2310 = vcmp.eq.f32.partialorder %v2278, %v2292
        %vm2311 = vcmp.eq.f32.partialorder %v2279, %v2295
        %vm2312 = vcmp.eq.f32.partialorder %v2280, %v2298
        %vm2313 = vcmp.eq.f32.partialorder %v2281, %v2301
        %vm2314 = vcmp.eq.f32.partialorder %v2282, %v2304
        %vm2315 = vcmp.eq.f32.partialorder %v2283, %v2307
        %v2316 = vsel %vm2308, %v260, 8
        %v2317 = vsel %vm2309, %v260, 8
        %v2318 = vsel %vm2310, %v260, 8
        %v2319 = vsel %vm2311, %v260, 8
        %v2320 = vsel %vm2312, %v260, 8
        %v2321 = vsel %vm2313, %v260, 8
        %v2322 = vsel %vm2314, %v260, 8
        %v2323 = vsel %vm2315, %v260, 8
        %v2324 = vsel %vm361, %v2316, 2147483647
        %v2325 = vand.u32 %v2324, 65535
        %v2326 = vshra.s32 %v2324, 16
        %v2327 = vcvt.s32.f32 %v2325
        %v2328 = vcvt.s32.f32 %v2326
        %2329 = vmin.xlane.f32.xlu0 %v2328
        %v2330 = vpop.xlane.xlu0 %2329
        %vm2331 = vcmp.eq.f32.partialorder %v2328, %v2330
        %v2332 = vsel %vm2331, %v2327, inf
        %2333 = vmin.xlane.f32.xlu0 %v2332
        %v2334 = vpop.xlane.xlu0 %2333
        %v2335 = vcvt.f32.s32 %v2334
        %v2336 = vcvt.f32.s32 %v2330
        %v2337 = vshll.u32 %v2336, 16
        %v2338 = vadd.s32 %v2337, %v2335
        %v2339 = vsel %vm361, %v2317, 2147483647
        %v2340 = vand.u32 %v2339, 65535
        %v2341 = vshra.s32 %v2339, 16
        %v2342 = vcvt.s32.f32 %v2340
        %v2343 = vcvt.s32.f32 %v2341
        %2344 = vmin.xlane.f32.xlu0 %v2343
        %v2345 = vpop.xlane.xlu0 %2344
        %vm2346 = vcmp.eq.f32.partialorder %v2343, %v2345
        %v2347 = vsel %vm2346, %v2342, inf
        %2348 = vmin.xlane.f32.xlu0 %v2347
        %v2349 = vpop.xlane.xlu0 %2348
        %v2350 = vcvt.f32.s32 %v2349
        %v2351 = vcvt.f32.s32 %v2345
        %v2352 = vshll.u32 %v2351, 16
        %v2353 = vadd.s32 %v2352, %v2350
        %v2354 = vsel %vm361, %v2318, 2147483647
        %v2355 = vand.u32 %v2354, 65535
        %v2356 = vshra.s32 %v2354, 16
        %v2357 = vcvt.s32.f32 %v2355
        %v2358 = vcvt.s32.f32 %v2356
        %2359 = vmin.xlane.f32.xlu0 %v2358
        %v2360 = vpop.xlane.xlu0 %2359
        %vm2361 = vcmp.eq.f32.partialorder %v2358, %v2360
        %v2362 = vsel %vm2361, %v2357, inf
        %2363 = vmin.xlane.f32.xlu0 %v2362
        %v2364 = vpop.xlane.xlu0 %2363
        %v2365 = vcvt.f32.s32 %v2364
        %v2366 = vcvt.f32.s32 %v2360
        %v2367 = vshll.u32 %v2366, 16
        %v2368 = vadd.s32 %v2367, %v2365
        %v2369 = vsel %vm361, %v2319, 2147483647
        %v2370 = vand.u32 %v2369, 65535
        %v2371 = vshra.s32 %v2369, 16
        %v2372 = vcvt.s32.f32 %v2370
        %v2373 = vcvt.s32.f32 %v2371
        %2374 = vmin.xlane.f32.xlu0 %v2373
        %v2375 = vpop.xlane.xlu0 %2374
        %vm2376 = vcmp.eq.f32.partialorder %v2373, %v2375
        %v2377 = vsel %vm2376, %v2372, inf
        %2378 = vmin.xlane.f32.xlu0 %v2377
        %v2379 = vpop.xlane.xlu0 %2378
        %v2380 = vcvt.f32.s32 %v2379
        %v2381 = vcvt.f32.s32 %v2375
        %v2382 = vshll.u32 %v2381, 16
        %v2383 = vadd.s32 %v2382, %v2380
        %v2384 = vsel %vm361, %v2320, 2147483647
        %v2385 = vand.u32 %v2384, 65535
        %v2386 = vshra.s32 %v2384, 16
        %v2387 = vcvt.s32.f32 %v2385
        %v2388 = vcvt.s32.f32 %v2386
        %2389 = vmin.xlane.f32.xlu0 %v2388
        %v2390 = vpop.xlane.xlu0 %2389
        %vm2391 = vcmp.eq.f32.partialorder %v2388, %v2390
        %v2392 = vsel %vm2391, %v2387, inf
        %2393 = vmin.xlane.f32.xlu0 %v2392
        %v2394 = vpop.xlane.xlu0 %2393
        %v2395 = vcvt.f32.s32 %v2394
        %v2396 = vcvt.f32.s32 %v2390
        %v2397 = vshll.u32 %v2396, 16
        %v2398 = vadd.s32 %v2397, %v2395
        %v2399 = vsel %vm361, %v2321, 2147483647
        %v2400 = vand.u32 %v2399, 65535
        %v2401 = vshra.s32 %v2399, 16
        %v2402 = vcvt.s32.f32 %v2400
        %v2403 = vcvt.s32.f32 %v2401
        %2404 = vmin.xlane.f32.xlu0 %v2403
        %v2405 = vpop.xlane.xlu0 %2404
        %vm2406 = vcmp.eq.f32.partialorder %v2403, %v2405
        %v2407 = vsel %vm2406, %v2402, inf
        %2408 = vmin.xlane.f32.xlu0 %v2407
        %v2409 = vpop.xlane.xlu0 %2408
        %v2410 = vcvt.f32.s32 %v2409
        %v2411 = vcvt.f32.s32 %v2405
        %v2412 = vshll.u32 %v2411, 16
        %v2413 = vadd.s32 %v2412, %v2410
        %v2414 = vsel %vm361, %v2322, 2147483647
        %v2415 = vand.u32 %v2414, 65535
        %v2416 = vshra.s32 %v2414, 16
        %v2417 = vcvt.s32.f32 %v2415
        %v2418 = vcvt.s32.f32 %v2416
        %2419 = vmin.xlane.f32.xlu0 %v2418
        %v2420 = vpop.xlane.xlu0 %2419
        %vm2421 = vcmp.eq.f32.partialorder %v2418, %v2420
        %v2422 = vsel %vm2421, %v2417, inf
        %2423 = vmin.xlane.f32.xlu0 %v2422
        %v2424 = vpop.xlane.xlu0 %2423
        %v2425 = vcvt.f32.s32 %v2424
        %v2426 = vcvt.f32.s32 %v2420
        %v2427 = vshll.u32 %v2426, 16
        %v2428 = vadd.s32 %v2427, %v2425
        %v2429 = vsel %vm361, %v2323, 2147483647
        %v2430 = vand.u32 %v2429, 65535
        %v2431 = vshra.s32 %v2429, 16
        %v2432 = vcvt.s32.f32 %v2430
        %v2433 = vcvt.s32.f32 %v2431
        %2434 = vmin.xlane.f32.xlu0 %v2433
        %v2435 = vpop.xlane.xlu0 %2434
        %vm2436 = vcmp.eq.f32.partialorder %v2433, %v2435
        %v2437 = vsel %vm2436, %v2432, inf
        %2438 = vmin.xlane.f32.xlu0 %v2437
        %v2439 = vpop.xlane.xlu0 %2438
        %v2440 = vcvt.f32.s32 %v2439
        %v2441 = vcvt.f32.s32 %v2435
        %v2442 = vshll.u32 %v2441, 16
        %v2443 = vadd.s32 %v2442, %v2440
        %v2444 = vlaneseq
        %v2445 = vshrl.u32 %v2444, 7
        %v2446 = vsub.s32 %v260, %v2445
        %v2447 = vrot.slane %v2338, %v2446
        %v2448 = vlaneseq
        %v2449 = vshrl.u32 %v2448, 7
        %v2450 = vsub.s32 %v260, %v2449
        %v2451 = vrot.slane %v2353, %v2450
        %v2452 = vlaneseq
        %v2453 = vshrl.u32 %v2452, 7
        %v2454 = vsub.s32 %v260, %v2453
        %v2455 = vrot.slane %v2368, %v2454
        %v2456 = vlaneseq
        %v2457 = vshrl.u32 %v2456, 7
        %v2458 = vsub.s32 %v260, %v2457
        %v2459 = vrot.slane %v2383, %v2458
        %v2460 = vlaneseq
        %v2461 = vshrl.u32 %v2460, 7
        %v2462 = vsub.s32 %v260, %v2461
        %v2463 = vrot.slane %v2398, %v2462
        %v2464 = vlaneseq
        %v2465 = vshrl.u32 %v2464, 7
        %v2466 = vsub.s32 %v260, %v2465
        %v2467 = vrot.slane %v2413, %v2466
        %v2468 = vlaneseq
        %v2469 = vshrl.u32 %v2468, 7
        %v2470 = vsub.s32 %v260, %v2469
        %v2471 = vrot.slane %v2428, %v2470
        %v2472 = vlaneseq
        %v2473 = vshrl.u32 %v2472, 7
        %v2474 = vsub.s32 %v260, %v2473
        %v2475 = vrot.slane %v2443, %v2474
        %v2476 = vsel %vm554, %v2451, %v2447
        %v2477 = vsel %vm556, %v2455, %v2476
        %v2478 = vsel %vm558, %v2459, %v2477
        %v2479 = vsel %vm560, %v2463, %v2478
        %v2480 = vsel %vm562, %v2467, %v2479
        %v2481 = vsel %vm564, %v2471, %v2480
        %v2482 = vsel %vm566, %v2475, %v2481
        %s2483 = scalar_lea.vmem [#allocation2], 40
        %2484 = vst.msk [vmem:[%s2483] sm:$0xff] %vm361, %v2482
        %s2485 = scalar_lea.vmem %s215, 40 [#allocation3]
        %v2486 = vld [vmem:[%s2485] sm:$0xff]
        %v2488 = vsel %vm578, %v2486, 0
        %2490 = vmatprep.subr.mxu0 0.0
        %2491 = vmatpush1.msra.mxu0 %v254
        %2492 = vmatprep.subr.mxu0 0.0
        %2493 = vmatpush1.msra.mxu0 %v255
        %2494 = vmatprep.subr.mxu0 0.0
        %2495 = vmatpush1.msra.mxu0 %v256
        %2496 = vmatprep.subr.mxu0 0.0
        %2497 = vmatpush1.msra.mxu0 %v257
        %2498 = vmatprep.subr.mxu0 0.0
        %2499 = vmatpush1.msra.mxu0 0.0
        %2500 = vmatprep.subr.mxu0 0.0
        %2501 = vmatpush1.msra.mxu0 0.0
        %2502 = vmatprep.subr.mxu0 0.0
        %2503 = vmatpush1.msra.mxu0 0.0
        %2504 = vmatprep.subr.mxu0 0.0
        %2505 = vmatpush1.msra.mxu0 0.0
        %2506 = vmatprep.subr.mxu0 0.0
        %2507 = vmatpush1.msra.mxu0 0.0
        %2508 = vmatprep.subr.mxu0 0.0
        %2509 = vmatpush1.msra.mxu0 0.0
        %2510 = vmatprep.subr.mxu0 0.0
        %2511 = vmatpush1.msra.mxu0 0.0
        %2512 = vmatprep.subr.mxu0 0.0
        %2513 = vmatpush1.msra.mxu0 0.0
        %2514 = vmatprep.subr.mxu0 0.0
        %2515 = vmatpush1.msra.mxu0 0.0
        %2516 = vmatprep.subr.mxu0 0.0
        %2517 = vmatpush1.msra.mxu0 0.0
        %2518 = vmatprep.subr.mxu0 0.0
        %2519 = vmatpush1.msra.mxu0 0.0
        %2520 = vmatprep.subr.mxu0 0.0
        %2521 = vmatpush1.msra.mxu0 0.0
        %2522 = vmatprep.subr.mxu0 0.0
        %2523 = vmatpush1.msra.mxu0 0.0
        %2524 = vmatprep.subr.mxu0 0.0
        %2525 = vmatpush1.msra.mxu0 0.0
        %2526 = vmatprep.subr.mxu0 0.0
        %2527 = vmatpush1.msra.mxu0 0.0
        %2528 = vmatprep.subr.mxu0 0.0
        %2529 = vmatpush1.msra.mxu0 0.0
        %2530 = vmatprep.subr.mxu0 0.0
        %2531 = vmatpush1.msra.mxu0 0.0
        %2532 = vmatprep.subr.mxu0 0.0
        %2533 = vmatpush1.msra.mxu0 0.0
        %2534 = vmatprep.subr.mxu0 0.0
        %2535 = vmatpush1.msra.mxu0 0.0
        %2536 = vmatprep.subr.mxu0 0.0
        %2537 = vmatpush1.msra.mxu0 0.0
        %2538 = vmatprep.subr.mxu0 0.0
        %2539 = vmatpush1.msra.mxu0 0.0
        %2540 = vmatprep.subr.mxu0 0.0
        %2541 = vmatpush1.msra.mxu0 0.0
        %2542 = vmatprep.subr.mxu0 0.0
        %2543 = vmatpush1.msra.mxu0 0.0
        %2544 = vmatprep.subr.mxu0 0.0
        %2545 = vmatpush1.msra.mxu0 0.0
        %2546 = vmatprep.subr.mxu0 0.0
        %2547 = vmatpush1.msra.mxu0 0.0
        %2548 = vmatprep.subr.mxu0 0.0
        %2549 = vmatpush1.msra.mxu0 0.0
        %2550 = vmatprep.subr.mxu0 0.0
        %2551 = vmatpush1.msra.mxu0 0.0
        %2552 = vmatprep.subr.mxu0 0.0
        %2553 = vmatpush1.msra.mxu0 0.0
        %2554 = vmatprep.mubr.f32.mxu0 0.0
        %2555 = vmatmul.mubr.f32.gmra.mrb[0].mxu0 %v2488
        %v2556 = vpop.f32.mrb[0].mxu0
        %v2557 = vadd.f32 %v576, %v2556
        %v2558 = vpop.f32.mrb[0].mxu0
        %2559 = vdwg.mxu0
        %v2561 = vlaneseq
        %v2562 = vshrl.u32 %v2561, 7
        %v2563 = vsub.s32 0, %v2562
        %v2564 = vrot.slane %v2557, %v2563
        %2566 = vbcast.lane.b32.xlu0 %v2564, 256
        %v2567 = vpop.permute.xlu0 %2566
        %v2568 = vlaneseq
        %v2569 = vshrl.u32 %v2568, 7
        %v2570 = vsub.s32 1, %v2569
        %v2571 = vrot.slane %v2557, %v2570
        %2573 = vbcast.lane.b32.xlu0 %v2571, 256
        %v2574 = vpop.permute.xlu0 %2573
        %v2575 = vlaneseq
        %v2576 = vshrl.u32 %v2575, 7
        %v2577 = vsub.s32 2, %v2576
        %v2578 = vrot.slane %v2557, %v2577
        %2580 = vbcast.lane.b32.xlu0 %v2578, 256
        %v2581 = vpop.permute.xlu0 %2580
        %v2582 = vlaneseq
        %v2583 = vshrl.u32 %v2582, 7
        %v2584 = vsub.s32 3, %v2583
        %v2585 = vrot.slane %v2557, %v2584
        %2587 = vbcast.lane.b32.xlu0 %v2585, 256
        %v2588 = vpop.permute.xlu0 %2587
        %v2589 = vlaneseq
        %v2590 = vshrl.u32 %v2589, 7
        %v2591 = vsub.s32 4, %v2590
        %v2592 = vrot.slane %v2557, %v2591
        %2594 = vbcast.lane.b32.xlu0 %v2592, 256
        %v2595 = vpop.permute.xlu0 %2594
        %v2596 = vlaneseq
        %v2597 = vshrl.u32 %v2596, 7
        %v2598 = vsub.s32 5, %v2597
        %v2599 = vrot.slane %v2557, %v2598
        %2601 = vbcast.lane.b32.xlu0 %v2599, 256
        %v2602 = vpop.permute.xlu0 %2601
        %v2603 = vlaneseq
        %v2604 = vshrl.u32 %v2603, 7
        %v2605 = vsub.s32 6, %v2604
        %v2606 = vrot.slane %v2557, %v2605
        %2608 = vbcast.lane.b32.xlu0 %v2606, 256
        %v2609 = vpop.permute.xlu0 %2608
        %v2610 = vlaneseq
        %v2611 = vshrl.u32 %v2610, 7
        %v2612 = vsub.s32 7, %v2611
        %v2613 = vrot.slane %v2557, %v2612
        %2615 = vbcast.lane.b32.xlu0 %v2613, 256
        %v2616 = vpop.permute.xlu0 %2615
        %v2625 = vadd.f32 %v2286, %v2567
        %v2626 = vadd.f32 %v2289, %v2574
        %v2627 = vadd.f32 %v2292, %v2581
        %v2628 = vadd.f32 %v2295, %v2588
        %v2629 = vadd.f32 %v2298, %v2595
        %v2630 = vadd.f32 %v2301, %v2602
        %v2631 = vadd.f32 %v2304, %v2609
        %v2632 = vadd.f32 %v2307, %v2616
        %2641 = vset.pattern.permute.xlu0 0
        %2642 = vperm.xlu0 %2641, %v2625
        %v2643 = vpop.permute.xlu0 %2642
        %2644 = vset.pattern.permute.xlu0 0
        %2645 = vperm.xlu0 %2644, %v2626
        %v2646 = vpop.permute.xlu0 %2645
        %2647 = vset.pattern.permute.xlu0 0
        %2648 = vperm.xlu0 %2647, %v2627
        %v2649 = vpop.permute.xlu0 %2648
        %2650 = vset.pattern.permute.xlu0 0
        %2651 = vperm.xlu0 %2650, %v2628
        %v2652 = vpop.permute.xlu0 %2651
        %2653 = vset.pattern.permute.xlu0 0
        %2654 = vperm.xlu0 %2653, %v2629
        %v2655 = vpop.permute.xlu0 %2654
        %2656 = vset.pattern.permute.xlu0 0
        %2657 = vperm.xlu0 %2656, %v2630
        %v2658 = vpop.permute.xlu0 %2657
        %2659 = vset.pattern.permute.xlu0 0
        %2660 = vperm.xlu0 %2659, %v2631
        %v2661 = vpop.permute.xlu0 %2660
        %2662 = vset.pattern.permute.xlu0 0
        %2663 = vperm.xlu0 %2662, %v2632
        %v2664 = vpop.permute.xlu0 %2663
        %v2665 = vlaneseq
        %v2666 = vshrl.u32 %v2665, 7
        %v2667 = vsub.s32 %v260, %v2666
        %v2668 = vrot.slane %v2643, %v2667
        %v2669 = vlaneseq
        %v2670 = vshrl.u32 %v2669, 7
        %v2671 = vsub.s32 %v260, %v2670
        %v2672 = vrot.slane %v2646, %v2671
        %v2673 = vlaneseq
        %v2674 = vshrl.u32 %v2673, 7
        %v2675 = vsub.s32 %v260, %v2674
        %v2676 = vrot.slane %v2649, %v2675
        %v2677 = vlaneseq
        %v2678 = vshrl.u32 %v2677, 7
        %v2679 = vsub.s32 %v260, %v2678
        %v2680 = vrot.slane %v2652, %v2679
        %v2681 = vlaneseq
        %v2682 = vshrl.u32 %v2681, 7
        %v2683 = vsub.s32 %v260, %v2682
        %v2684 = vrot.slane %v2655, %v2683
        %v2685 = vlaneseq
        %v2686 = vshrl.u32 %v2685, 7
        %v2687 = vsub.s32 %v260, %v2686
        %v2688 = vrot.slane %v2658, %v2687
        %v2689 = vlaneseq
        %v2690 = vshrl.u32 %v2689, 7
        %v2691 = vsub.s32 %v260, %v2690
        %v2692 = vrot.slane %v2661, %v2691
        %v2693 = vlaneseq
        %v2694 = vshrl.u32 %v2693, 7
        %v2695 = vsub.s32 %v260, %v2694
        %v2696 = vrot.slane %v2664, %v2695
        %v2697 = vsel %vm556, %v2668, %v2668
        %v2698 = vsel %vm558, %v2668, %v2697
        %v2699 = vsel %vm560, %v2668, %v2698
        %v2700 = vsel %vm562, %v2668, %v2699
        %v2701 = vsel %vm564, %v2668, %v2700
        %v2702 = vsel %vm566, %v2668, %v2701
        %v2703 = vsel %vm556, %v2672, %v2672
        %v2704 = vsel %vm558, %v2672, %v2703
        %v2705 = vsel %vm560, %v2672, %v2704
        %v2706 = vsel %vm562, %v2672, %v2705
        %v2707 = vsel %vm564, %v2672, %v2706
        %v2708 = vsel %vm566, %v2672, %v2707
        %v2709 = vsel %vm556, %v2676, %v2676
        %v2710 = vsel %vm558, %v2676, %v2709
        %v2711 = vsel %vm560, %v2676, %v2710
        %v2712 = vsel %vm562, %v2676, %v2711
        %v2713 = vsel %vm564, %v2676, %v2712
        %v2714 = vsel %vm566, %v2676, %v2713
        %v2715 = vsel %vm556, %v2680, %v2680
        %v2716 = vsel %vm558, %v2680, %v2715
        %v2717 = vsel %vm560, %v2680, %v2716
        %v2718 = vsel %vm562, %v2680, %v2717
        %v2719 = vsel %vm564, %v2680, %v2718
        %v2720 = vsel %vm566, %v2680, %v2719
        %v2721 = vsel %vm556, %v2684, %v2684
        %v2722 = vsel %vm558, %v2684, %v2721
        %v2723 = vsel %vm560, %v2684, %v2722
        %v2724 = vsel %vm562, %v2684, %v2723
        %v2725 = vsel %vm564, %v2684, %v2724
        %v2726 = vsel %vm566, %v2684, %v2725
        %v2727 = vsel %vm556, %v2688, %v2688
        %v2728 = vsel %vm558, %v2688, %v2727
        %v2729 = vsel %vm560, %v2688, %v2728
        %v2730 = vsel %vm562, %v2688, %v2729
        %v2731 = vsel %vm564, %v2688, %v2730
        %v2732 = vsel %vm566, %v2688, %v2731
        %v2733 = vsel %vm556, %v2692, %v2692
        %v2734 = vsel %vm558, %v2692, %v2733
        %v2735 = vsel %vm560, %v2692, %v2734
        %v2736 = vsel %vm562, %v2692, %v2735
        %v2737 = vsel %vm564, %v2692, %v2736
        %v2738 = vsel %vm566, %v2692, %v2737
        %v2739 = vsel %vm556, %v2696, %v2696
        %v2740 = vsel %vm558, %v2696, %v2739
        %v2741 = vsel %vm560, %v2696, %v2740
        %v2742 = vsel %vm562, %v2696, %v2741
        %v2743 = vsel %vm564, %v2696, %v2742
        %v2744 = vsel %vm566, %v2696, %v2743
        %v2753 = vadd.f32 %v253, %v2702
        %v2754 = vadd.f32 %v253, %v2708
        %v2755 = vadd.f32 %v253, %v2714
        %v2756 = vadd.f32 %v253, %v2720
        %v2757 = vadd.f32 %v253, %v2726
        %v2758 = vadd.f32 %v253, %v2732
        %v2759 = vadd.f32 %v253, %v2738
        %v2760 = vadd.f32 %v253, %v2744
        %v2761 = vsel %vm361, %v2753, -inf
        %2762 = vmax.xlane.f32.xlu0 %v2761
        %v2763 = vpop.xlane.xlu0 %2762
        %v2764 = vsel %vm361, %v2754, -inf
        %2765 = vmax.xlane.f32.xlu0 %v2764
        %v2766 = vpop.xlane.xlu0 %2765
        %v2767 = vsel %vm361, %v2755, -inf
        %2768 = vmax.xlane.f32.xlu0 %v2767
        %v2769 = vpop.xlane.xlu0 %2768
        %v2770 = vsel %vm361, %v2756, -inf
        %2771 = vmax.xlane.f32.xlu0 %v2770
        %v2772 = vpop.xlane.xlu0 %2771
        %v2773 = vsel %vm361, %v2757, -inf
        %2774 = vmax.xlane.f32.xlu0 %v2773
        %v2775 = vpop.xlane.xlu0 %2774
        %v2776 = vsel %vm361, %v2758, -inf
        %2777 = vmax.xlane.f32.xlu0 %v2776
        %v2778 = vpop.xlane.xlu0 %2777
        %v2779 = vsel %vm361, %v2759, -inf
        %2780 = vmax.xlane.f32.xlu0 %v2779
        %v2781 = vpop.xlane.xlu0 %2780
        %v2782 = vsel %vm361, %v2760, -inf
        %2783 = vmax.xlane.f32.xlu0 %v2782
        %v2784 = vpop.xlane.xlu0 %2783
        %vm2785 = vcmp.eq.f32.partialorder %v2753, %v2763
        %vm2786 = vcmp.eq.f32.partialorder %v2754, %v2766
        %vm2787 = vcmp.eq.f32.partialorder %v2755, %v2769
        %vm2788 = vcmp.eq.f32.partialorder %v2756, %v2772
        %vm2789 = vcmp.eq.f32.partialorder %v2757, %v2775
        %vm2790 = vcmp.eq.f32.partialorder %v2758, %v2778
        %vm2791 = vcmp.eq.f32.partialorder %v2759, %v2781
        %vm2792 = vcmp.eq.f32.partialorder %v2760, %v2784
        %v2793 = vsel %vm2785, %v260, 8
        %v2794 = vsel %vm2786, %v260, 8
        %v2795 = vsel %vm2787, %v260, 8
        %v2796 = vsel %vm2788, %v260, 8
        %v2797 = vsel %vm2789, %v260, 8
        %v2798 = vsel %vm2790, %v260, 8
        %v2799 = vsel %vm2791, %v260, 8
        %v2800 = vsel %vm2792, %v260, 8
        %v2801 = vsel %vm361, %v2793, 2147483647
        %v2802 = vand.u32 %v2801, 65535
        %v2803 = vshra.s32 %v2801, 16
        %v2804 = vcvt.s32.f32 %v2802
        %v2805 = vcvt.s32.f32 %v2803
        %2806 = vmin.xlane.f32.xlu0 %v2805
        %v2807 = vpop.xlane.xlu0 %2806
        %vm2808 = vcmp.eq.f32.partialorder %v2805, %v2807
        %v2809 = vsel %vm2808, %v2804, inf
        %2810 = vmin.xlane.f32.xlu0 %v2809
        %v2811 = vpop.xlane.xlu0 %2810
        %v2812 = vcvt.f32.s32 %v2811
        %v2813 = vcvt.f32.s32 %v2807
        %v2814 = vshll.u32 %v2813, 16
        %v2815 = vadd.s32 %v2814, %v2812
        %v2816 = vsel %vm361, %v2794, 2147483647
        %v2817 = vand.u32 %v2816, 65535
        %v2818 = vshra.s32 %v2816, 16
        %v2819 = vcvt.s32.f32 %v2817
        %v2820 = vcvt.s32.f32 %v2818
        %2821 = vmin.xlane.f32.xlu0 %v2820
        %v2822 = vpop.xlane.xlu0 %2821
        %vm2823 = vcmp.eq.f32.partialorder %v2820, %v2822
        %v2824 = vsel %vm2823, %v2819, inf
        %2825 = vmin.xlane.f32.xlu0 %v2824
        %v2826 = vpop.xlane.xlu0 %2825
        %v2827 = vcvt.f32.s32 %v2826
        %v2828 = vcvt.f32.s32 %v2822
        %v2829 = vshll.u32 %v2828, 16
        %v2830 = vadd.s32 %v2829, %v2827
        %v2831 = vsel %vm361, %v2795, 2147483647
        %v2832 = vand.u32 %v2831, 65535
        %v2833 = vshra.s32 %v2831, 16
        %v2834 = vcvt.s32.f32 %v2832
        %v2835 = vcvt.s32.f32 %v2833
        %2836 = vmin.xlane.f32.xlu0 %v2835
        %v2837 = vpop.xlane.xlu0 %2836
        %vm2838 = vcmp.eq.f32.partialorder %v2835, %v2837
        %v2839 = vsel %vm2838, %v2834, inf
        %2840 = vmin.xlane.f32.xlu0 %v2839
        %v2841 = vpop.xlane.xlu0 %2840
        %v2842 = vcvt.f32.s32 %v2841
        %v2843 = vcvt.f32.s32 %v2837
        %v2844 = vshll.u32 %v2843, 16
        %v2845 = vadd.s32 %v2844, %v2842
        %v2846 = vsel %vm361, %v2796, 2147483647
        %v2847 = vand.u32 %v2846, 65535
        %v2848 = vshra.s32 %v2846, 16
        %v2849 = vcvt.s32.f32 %v2847
        %v2850 = vcvt.s32.f32 %v2848
        %2851 = vmin.xlane.f32.xlu0 %v2850
        %v2852 = vpop.xlane.xlu0 %2851
        %vm2853 = vcmp.eq.f32.partialorder %v2850, %v2852
        %v2854 = vsel %vm2853, %v2849, inf
        %2855 = vmin.xlane.f32.xlu0 %v2854
        %v2856 = vpop.xlane.xlu0 %2855
        %v2857 = vcvt.f32.s32 %v2856
        %v2858 = vcvt.f32.s32 %v2852
        %v2859 = vshll.u32 %v2858, 16
        %v2860 = vadd.s32 %v2859, %v2857
        %v2861 = vsel %vm361, %v2797, 2147483647
        %v2862 = vand.u32 %v2861, 65535
        %v2863 = vshra.s32 %v2861, 16
        %v2864 = vcvt.s32.f32 %v2862
        %v2865 = vcvt.s32.f32 %v2863
        %2866 = vmin.xlane.f32.xlu0 %v2865
        %v2867 = vpop.xlane.xlu0 %2866
        %vm2868 = vcmp.eq.f32.partialorder %v2865, %v2867
        %v2869 = vsel %vm2868, %v2864, inf
        %2870 = vmin.xlane.f32.xlu0 %v2869
        %v2871 = vpop.xlane.xlu0 %2870
        %v2872 = vcvt.f32.s32 %v2871
        %v2873 = vcvt.f32.s32 %v2867
        %v2874 = vshll.u32 %v2873, 16
        %v2875 = vadd.s32 %v2874, %v2872
        %v2876 = vsel %vm361, %v2798, 2147483647
        %v2877 = vand.u32 %v2876, 65535
        %v2878 = vshra.s32 %v2876, 16
        %v2879 = vcvt.s32.f32 %v2877
        %v2880 = vcvt.s32.f32 %v2878
        %2881 = vmin.xlane.f32.xlu0 %v2880
        %v2882 = vpop.xlane.xlu0 %2881
        %vm2883 = vcmp.eq.f32.partialorder %v2880, %v2882
        %v2884 = vsel %vm2883, %v2879, inf
        %2885 = vmin.xlane.f32.xlu0 %v2884
        %v2886 = vpop.xlane.xlu0 %2885
        %v2887 = vcvt.f32.s32 %v2886
        %v2888 = vcvt.f32.s32 %v2882
        %v2889 = vshll.u32 %v2888, 16
        %v2890 = vadd.s32 %v2889, %v2887
        %v2891 = vsel %vm361, %v2799, 2147483647
        %v2892 = vand.u32 %v2891, 65535
        %v2893 = vshra.s32 %v2891, 16
        %v2894 = vcvt.s32.f32 %v2892
        %v2895 = vcvt.s32.f32 %v2893
        %2896 = vmin.xlane.f32.xlu0 %v2895
        %v2897 = vpop.xlane.xlu0 %2896
        %vm2898 = vcmp.eq.f32.partialorder %v2895, %v2897
        %v2899 = vsel %vm2898, %v2894, inf
        %2900 = vmin.xlane.f32.xlu0 %v2899
        %v2901 = vpop.xlane.xlu0 %2900
        %v2902 = vcvt.f32.s32 %v2901
        %v2903 = vcvt.f32.s32 %v2897
        %v2904 = vshll.u32 %v2903, 16
        %v2905 = vadd.s32 %v2904, %v2902
        %v2906 = vsel %vm361, %v2800, 2147483647
        %v2907 = vand.u32 %v2906, 65535
        %v2908 = vshra.s32 %v2906, 16
        %v2909 = vcvt.s32.f32 %v2907
        %v2910 = vcvt.s32.f32 %v2908
        %2911 = vmin.xlane.f32.xlu0 %v2910
        %v2912 = vpop.xlane.xlu0 %2911
        %vm2913 = vcmp.eq.f32.partialorder %v2910, %v2912
        %v2914 = vsel %vm2913, %v2909, inf
        %2915 = vmin.xlane.f32.xlu0 %v2914
        %v2916 = vpop.xlane.xlu0 %2915
        %v2917 = vcvt.f32.s32 %v2916
        %v2918 = vcvt.f32.s32 %v2912
        %v2919 = vshll.u32 %v2918, 16
        %v2920 = vadd.s32 %v2919, %v2917
        %v2921 = vlaneseq
        %v2922 = vshrl.u32 %v2921, 7
        %v2923 = vsub.s32 %v260, %v2922
        %v2924 = vrot.slane %v2815, %v2923
        %v2925 = vlaneseq
        %v2926 = vshrl.u32 %v2925, 7
        %v2927 = vsub.s32 %v260, %v2926
        %v2928 = vrot.slane %v2830, %v2927
        %v2929 = vlaneseq
        %v2930 = vshrl.u32 %v2929, 7
        %v2931 = vsub.s32 %v260, %v2930
        %v2932 = vrot.slane %v2845, %v2931
        %v2933 = vlaneseq
        %v2934 = vshrl.u32 %v2933, 7
        %v2935 = vsub.s32 %v260, %v2934
        %v2936 = vrot.slane %v2860, %v2935
        %v2937 = vlaneseq
        %v2938 = vshrl.u32 %v2937, 7
        %v2939 = vsub.s32 %v260, %v2938
        %v2940 = vrot.slane %v2875, %v2939
        %v2941 = vlaneseq
        %v2942 = vshrl.u32 %v2941, 7
        %v2943 = vsub.s32 %v260, %v2942
        %v2944 = vrot.slane %v2890, %v2943
        %v2945 = vlaneseq
        %v2946 = vshrl.u32 %v2945, 7
        %v2947 = vsub.s32 %v260, %v2946
        %v2948 = vrot.slane %v2905, %v2947
        %v2949 = vlaneseq
        %v2950 = vshrl.u32 %v2949, 7
        %v2951 = vsub.s32 %v260, %v2950
        %v2952 = vrot.slane %v2920, %v2951
        %v2953 = vsel %vm554, %v2928, %v2924
        %v2954 = vsel %vm556, %v2932, %v2953
        %v2955 = vsel %vm558, %v2936, %v2954
        %v2956 = vsel %vm560, %v2940, %v2955
        %v2957 = vsel %vm562, %v2944, %v2956
        %v2958 = vsel %vm564, %v2948, %v2957
        %v2959 = vsel %vm566, %v2952, %v2958
        %s2960 = scalar_lea.vmem [#allocation2], 48
        %2961 = vst.msk [vmem:[%s2960] sm:$0xff] %vm361, %v2959
        %s2962 = scalar_lea.vmem %s215, 48 [#allocation3]
        %v2963 = vld [vmem:[%s2962] sm:$0xff]
        %v2965 = vsel %vm578, %v2963, 0
        %2967 = vmatprep.subr.mxu0 0.0
        %2968 = vmatpush1.msra.mxu0 %v254
        %2969 = vmatprep.subr.mxu0 0.0
        %2970 = vmatpush1.msra.mxu0 %v255
        %2971 = vmatprep.subr.mxu0 0.0
        %2972 = vmatpush1.msra.mxu0 %v256
        %2973 = vmatprep.subr.mxu0 0.0
        %2974 = vmatpush1.msra.mxu0 %v257
        %2975 = vmatprep.subr.mxu0 0.0
        %2976 = vmatpush1.msra.mxu0 0.0
        %2977 = vmatprep.subr.mxu0 0.0
        %2978 = vmatpush1.msra.mxu0 0.0
        %2979 = vmatprep.subr.mxu0 0.0
        %2980 = vmatpush1.msra.mxu0 0.0
        %2981 = vmatprep.subr.mxu0 0.0
        %2982 = vmatpush1.msra.mxu0 0.0
        %2983 = vmatprep.subr.mxu0 0.0
        %2984 = vmatpush1.msra.mxu0 0.0
        %2985 = vmatprep.subr.mxu0 0.0
        %2986 = vmatpush1.msra.mxu0 0.0
        %2987 = vmatprep.subr.mxu0 0.0
        %2988 = vmatpush1.msra.mxu0 0.0
        %2989 = vmatprep.subr.mxu0 0.0
        %2990 = vmatpush1.msra.mxu0 0.0
        %2991 = vmatprep.subr.mxu0 0.0
        %2992 = vmatpush1.msra.mxu0 0.0
        %2993 = vmatprep.subr.mxu0 0.0
        %2994 = vmatpush1.msra.mxu0 0.0
        %2995 = vmatprep.subr.mxu0 0.0
        %2996 = vmatpush1.msra.mxu0 0.0
        %2997 = vmatprep.subr.mxu0 0.0
        %2998 = vmatpush1.msra.mxu0 0.0
        %2999 = vmatprep.subr.mxu0 0.0
        %3000 = vmatpush1.msra.mxu0 0.0
        %3001 = vmatprep.subr.mxu0 0.0
        %3002 = vmatpush1.msra.mxu0 0.0
        %3003 = vmatprep.subr.mxu0 0.0
        %3004 = vmatpush1.msra.mxu0 0.0
        %3005 = vmatprep.subr.mxu0 0.0
        %3006 = vmatpush1.msra.mxu0 0.0
        %3007 = vmatprep.subr.mxu0 0.0
        %3008 = vmatpush1.msra.mxu0 0.0
        %3009 = vmatprep.subr.mxu0 0.0
        %3010 = vmatpush1.msra.mxu0 0.0
        %3011 = vmatprep.subr.mxu0 0.0
        %3012 = vmatpush1.msra.mxu0 0.0
        %3013 = vmatprep.subr.mxu0 0.0
        %3014 = vmatpush1.msra.mxu0 0.0
        %3015 = vmatprep.subr.mxu0 0.0
        %3016 = vmatpush1.msra.mxu0 0.0
        %3017 = vmatprep.subr.mxu0 0.0
        %3018 = vmatpush1.msra.mxu0 0.0
        %3019 = vmatprep.subr.mxu0 0.0
        %3020 = vmatpush1.msra.mxu0 0.0
        %3021 = vmatprep.subr.mxu0 0.0
        %3022 = vmatpush1.msra.mxu0 0.0
        %3023 = vmatprep.subr.mxu0 0.0
        %3024 = vmatpush1.msra.mxu0 0.0
        %3025 = vmatprep.subr.mxu0 0.0
        %3026 = vmatpush1.msra.mxu0 0.0
        %3027 = vmatprep.subr.mxu0 0.0
        %3028 = vmatpush1.msra.mxu0 0.0
        %3029 = vmatprep.subr.mxu0 0.0
        %3030 = vmatpush1.msra.mxu0 0.0
        %3031 = vmatprep.mubr.f32.mxu0 0.0
        %3032 = vmatmul.mubr.f32.gmra.mrb[0].mxu0 %v2965
        %v3033 = vpop.f32.mrb[0].mxu0
        %v3034 = vadd.f32 %v576, %v3033
        %v3035 = vpop.f32.mrb[0].mxu0
        %3036 = vdwg.mxu0
        %v3038 = vlaneseq
        %v3039 = vshrl.u32 %v3038, 7
        %v3040 = vsub.s32 0, %v3039
        %v3041 = vrot.slane %v3034, %v3040
        %3043 = vbcast.lane.b32.xlu0 %v3041, 256
        %v3044 = vpop.permute.xlu0 %3043
        %v3045 = vlaneseq
        %v3046 = vshrl.u32 %v3045, 7
        %v3047 = vsub.s32 1, %v3046
        %v3048 = vrot.slane %v3034, %v3047
        %3050 = vbcast.lane.b32.xlu0 %v3048, 256
        %v3051 = vpop.permute.xlu0 %3050
        %v3052 = vlaneseq
        %v3053 = vshrl.u32 %v3052, 7
        %v3054 = vsub.s32 2, %v3053
        %v3055 = vrot.slane %v3034, %v3054
        %3057 = vbcast.lane.b32.xlu0 %v3055, 256
        %v3058 = vpop.permute.xlu0 %3057
        %v3059 = vlaneseq
        %v3060 = vshrl.u32 %v3059, 7
        %v3061 = vsub.s32 3, %v3060
        %v3062 = vrot.slane %v3034, %v3061
        %3064 = vbcast.lane.b32.xlu0 %v3062, 256
        %v3065 = vpop.permute.xlu0 %3064
        %v3066 = vlaneseq
        %v3067 = vshrl.u32 %v3066, 7
        %v3068 = vsub.s32 4, %v3067
        %v3069 = vrot.slane %v3034, %v3068
        %3071 = vbcast.lane.b32.xlu0 %v3069, 256
        %v3072 = vpop.permute.xlu0 %3071
        %v3073 = vlaneseq
        %v3074 = vshrl.u32 %v3073, 7
        %v3075 = vsub.s32 5, %v3074
        %v3076 = vrot.slane %v3034, %v3075
        %3078 = vbcast.lane.b32.xlu0 %v3076, 256
        %v3079 = vpop.permute.xlu0 %3078
        %v3080 = vlaneseq
        %v3081 = vshrl.u32 %v3080, 7
        %v3082 = vsub.s32 6, %v3081
        %v3083 = vrot.slane %v3034, %v3082
        %3085 = vbcast.lane.b32.xlu0 %v3083, 256
        %v3086 = vpop.permute.xlu0 %3085
        %v3087 = vlaneseq
        %v3088 = vshrl.u32 %v3087, 7
        %v3089 = vsub.s32 7, %v3088
        %v3090 = vrot.slane %v3034, %v3089
        %3092 = vbcast.lane.b32.xlu0 %v3090, 256
        %v3093 = vpop.permute.xlu0 %3092
        %v3102 = vadd.f32 %v2763, %v3044
        %v3103 = vadd.f32 %v2766, %v3051
        %v3104 = vadd.f32 %v2769, %v3058
        %v3105 = vadd.f32 %v2772, %v3065
        %v3106 = vadd.f32 %v2775, %v3072
        %v3107 = vadd.f32 %v2778, %v3079
        %v3108 = vadd.f32 %v2781, %v3086
        %v3109 = vadd.f32 %v2784, %v3093
        %3118 = vset.pattern.permute.xlu0 0
        %3119 = vperm.xlu0 %3118, %v3102
        %v3120 = vpop.permute.xlu0 %3119
        %3121 = vset.pattern.permute.xlu0 0
        %3122 = vperm.xlu0 %3121, %v3103
        %v3123 = vpop.permute.xlu0 %3122
        %3124 = vset.pattern.permute.xlu0 0
        %3125 = vperm.xlu0 %3124, %v3104
        %v3126 = vpop.permute.xlu0 %3125
        %3127 = vset.pattern.permute.xlu0 0
        %3128 = vperm.xlu0 %3127, %v3105
        %v3129 = vpop.permute.xlu0 %3128
        %3130 = vset.pattern.permute.xlu0 0
        %3131 = vperm.xlu0 %3130, %v3106
        %v3132 = vpop.permute.xlu0 %3131
        %3133 = vset.pattern.permute.xlu0 0
        %3134 = vperm.xlu0 %3133, %v3107
        %v3135 = vpop.permute.xlu0 %3134
        %3136 = vset.pattern.permute.xlu0 0
        %3137 = vperm.xlu0 %3136, %v3108
        %v3138 = vpop.permute.xlu0 %3137
        %3139 = vset.pattern.permute.xlu0 0
        %3140 = vperm.xlu0 %3139, %v3109
        %v3141 = vpop.permute.xlu0 %3140
        %v3142 = vlaneseq
        %v3143 = vshrl.u32 %v3142, 7
        %v3144 = vsub.s32 %v260, %v3143
        %v3145 = vrot.slane %v3120, %v3144
        %v3146 = vlaneseq
        %v3147 = vshrl.u32 %v3146, 7
        %v3148 = vsub.s32 %v260, %v3147
        %v3149 = vrot.slane %v3123, %v3148
        %v3150 = vlaneseq
        %v3151 = vshrl.u32 %v3150, 7
        %v3152 = vsub.s32 %v260, %v3151
        %v3153 = vrot.slane %v3126, %v3152
        %v3154 = vlaneseq
        %v3155 = vshrl.u32 %v3154, 7
        %v3156 = vsub.s32 %v260, %v3155
        %v3157 = vrot.slane %v3129, %v3156
        %v3158 = vlaneseq
        %v3159 = vshrl.u32 %v3158, 7
        %v3160 = vsub.s32 %v260, %v3159
        %v3161 = vrot.slane %v3132, %v3160
        %v3162 = vlaneseq
        %v3163 = vshrl.u32 %v3162, 7
        %v3164 = vsub.s32 %v260, %v3163
        %v3165 = vrot.slane %v3135, %v3164
        %v3166 = vlaneseq
        %v3167 = vshrl.u32 %v3166, 7
        %v3168 = vsub.s32 %v260, %v3167
        %v3169 = vrot.slane %v3138, %v3168
        %v3170 = vlaneseq
        %v3171 = vshrl.u32 %v3170, 7
        %v3172 = vsub.s32 %v260, %v3171
        %v3173 = vrot.slane %v3141, %v3172
        %v3174 = vsel %vm556, %v3145, %v3145
        %v3175 = vsel %vm558, %v3145, %v3174
        %v3176 = vsel %vm560, %v3145, %v3175
        %v3177 = vsel %vm562, %v3145, %v3176
        %v3178 = vsel %vm564, %v3145, %v3177
        %v3179 = vsel %vm566, %v3145, %v3178
        %v3180 = vsel %vm556, %v3149, %v3149
        %v3181 = vsel %vm558, %v3149, %v3180
        %v3182 = vsel %vm560, %v3149, %v3181
        %v3183 = vsel %vm562, %v3149, %v3182
        %v3184 = vsel %vm564, %v3149, %v3183
        %v3185 = vsel %vm566, %v3149, %v3184
        %v3186 = vsel %vm556, %v3153, %v3153
        %v3187 = vsel %vm558, %v3153, %v3186
        %v3188 = vsel %vm560, %v3153, %v3187
        %v3189 = vsel %vm562, %v3153, %v3188
        %v3190 = vsel %vm564, %v3153, %v3189
        %v3191 = vsel %vm566, %v3153, %v3190
        %v3192 = vsel %vm556, %v3157, %v3157
        %v3193 = vsel %vm558, %v3157, %v3192
        %v3194 = vsel %vm560, %v3157, %v3193
        %v3195 = vsel %vm562, %v3157, %v3194
        %v3196 = vsel %vm564, %v3157, %v3195
        %v3197 = vsel %vm566, %v3157, %v3196
        %v3198 = vsel %vm556, %v3161, %v3161
        %v3199 = vsel %vm558, %v3161, %v3198
        %v3200 = vsel %vm560, %v3161, %v3199
        %v3201 = vsel %vm562, %v3161, %v3200
        %v3202 = vsel %vm564, %v3161, %v3201
        %v3203 = vsel %vm566, %v3161, %v3202
        %v3204 = vsel %vm556, %v3165, %v3165
        %v3205 = vsel %vm558, %v3165, %v3204
        %v3206 = vsel %vm560, %v3165, %v3205
        %v3207 = vsel %vm562, %v3165, %v3206
        %v3208 = vsel %vm564, %v3165, %v3207
        %v3209 = vsel %vm566, %v3165, %v3208
        %v3210 = vsel %vm556, %v3169, %v3169
        %v3211 = vsel %vm558, %v3169, %v3210
        %v3212 = vsel %vm560, %v3169, %v3211
        %v3213 = vsel %vm562, %v3169, %v3212
        %v3214 = vsel %vm564, %v3169, %v3213
        %v3215 = vsel %vm566, %v3169, %v3214
        %v3216 = vsel %vm556, %v3173, %v3173
        %v3217 = vsel %vm558, %v3173, %v3216
        %v3218 = vsel %vm560, %v3173, %v3217
        %v3219 = vsel %vm562, %v3173, %v3218
        %v3220 = vsel %vm564, %v3173, %v3219
        %v3221 = vsel %vm566, %v3173, %v3220
        %v3230 = vadd.f32 %v253, %v3179
        %v3231 = vadd.f32 %v253, %v3185
        %v3232 = vadd.f32 %v253, %v3191
        %v3233 = vadd.f32 %v253, %v3197
        %v3234 = vadd.f32 %v253, %v3203
        %v3235 = vadd.f32 %v253, %v3209
        %v3236 = vadd.f32 %v253, %v3215
        %v3237 = vadd.f32 %v253, %v3221
        %v3238 = vsel %vm361, %v3230, -inf
        %3239 = vmax.xlane.f32.xlu0 %v3238
        %v3240 = vpop.xlane.xlu0 %3239
        %v3241 = vsel %vm361, %v3231, -inf
        %3242 = vmax.xlane.f32.xlu0 %v3241
        %v3243 = vpop.xlane.xlu0 %3242
        %v3244 = vsel %vm361, %v3232, -inf
        %3245 = vmax.xlane.f32.xlu0 %v3244
        %v3246 = vpop.xlane.xlu0 %3245
        %v3247 = vsel %vm361, %v3233, -inf
        %3248 = vmax.xlane.f32.xlu0 %v3247
        %v3249 = vpop.xlane.xlu0 %3248
        %v3250 = vsel %vm361, %v3234, -inf
        %3251 = vmax.xlane.f32.xlu0 %v3250
        %v3252 = vpop.xlane.xlu0 %3251
        %v3253 = vsel %vm361, %v3235, -inf
        %3254 = vmax.xlane.f32.xlu0 %v3253
        %v3255 = vpop.xlane.xlu0 %3254
        %v3256 = vsel %vm361, %v3236, -inf
        %3257 = vmax.xlane.f32.xlu0 %v3256
        %v3258 = vpop.xlane.xlu0 %3257
        %v3259 = vsel %vm361, %v3237, -inf
        %3260 = vmax.xlane.f32.xlu0 %v3259
        %v3261 = vpop.xlane.xlu0 %3260
        %vm3262 = vcmp.eq.f32.partialorder %v3230, %v3240
        %vm3263 = vcmp.eq.f32.partialorder %v3231, %v3243
        %vm3264 = vcmp.eq.f32.partialorder %v3232, %v3246
        %vm3265 = vcmp.eq.f32.partialorder %v3233, %v3249
        %vm3266 = vcmp.eq.f32.partialorder %v3234, %v3252
        %vm3267 = vcmp.eq.f32.partialorder %v3235, %v3255
        %vm3268 = vcmp.eq.f32.partialorder %v3236, %v3258
        %vm3269 = vcmp.eq.f32.partialorder %v3237, %v3261
        %v3270 = vsel %vm3262, %v260, 8
        %v3271 = vsel %vm3263, %v260, 8
        %v3272 = vsel %vm3264, %v260, 8
        %v3273 = vsel %vm3265, %v260, 8
        %v3274 = vsel %vm3266, %v260, 8
        %v3275 = vsel %vm3267, %v260, 8
        %v3276 = vsel %vm3268, %v260, 8
        %v3277 = vsel %vm3269, %v260, 8
        %v3278 = vsel %vm361, %v3270, 2147483647
        %v3279 = vand.u32 %v3278, 65535
        %v3280 = vshra.s32 %v3278, 16
        %v3281 = vcvt.s32.f32 %v3279
        %v3282 = vcvt.s32.f32 %v3280
        %3283 = vmin.xlane.f32.xlu0 %v3282
        %v3284 = vpop.xlane.xlu0 %3283
        %vm3285 = vcmp.eq.f32.partialorder %v3282, %v3284
        %v3286 = vsel %vm3285, %v3281, inf
        %3287 = vmin.xlane.f32.xlu0 %v3286
        %v3288 = vpop.xlane.xlu0 %3287
        %v3289 = vcvt.f32.s32 %v3288
        %v3290 = vcvt.f32.s32 %v3284
        %v3291 = vshll.u32 %v3290, 16
        %v3292 = vadd.s32 %v3291, %v3289
        %v3293 = vsel %vm361, %v3271, 2147483647
        %v3294 = vand.u32 %v3293, 65535
        %v3295 = vshra.s32 %v3293, 16
        %v3296 = vcvt.s32.f32 %v3294
        %v3297 = vcvt.s32.f32 %v3295
        %3298 = vmin.xlane.f32.xlu0 %v3297
        %v3299 = vpop.xlane.xlu0 %3298
        %vm3300 = vcmp.eq.f32.partialorder %v3297, %v3299
        %v3301 = vsel %vm3300, %v3296, inf
        %3302 = vmin.xlane.f32.xlu0 %v3301
        %v3303 = vpop.xlane.xlu0 %3302
        %v3304 = vcvt.f32.s32 %v3303
        %v3305 = vcvt.f32.s32 %v3299
        %v3306 = vshll.u32 %v3305, 16
        %v3307 = vadd.s32 %v3306, %v3304
        %v3308 = vsel %vm361, %v3272, 2147483647
        %v3309 = vand.u32 %v3308, 65535
        %v3310 = vshra.s32 %v3308, 16
        %v3311 = vcvt.s32.f32 %v3309
        %v3312 = vcvt.s32.f32 %v3310
        %3313 = vmin.xlane.f32.xlu0 %v3312
        %v3314 = vpop.xlane.xlu0 %3313
        %vm3315 = vcmp.eq.f32.partialorder %v3312, %v3314
        %v3316 = vsel %vm3315, %v3311, inf
        %3317 = vmin.xlane.f32.xlu0 %v3316
        %v3318 = vpop.xlane.xlu0 %3317
        %v3319 = vcvt.f32.s32 %v3318
        %v3320 = vcvt.f32.s32 %v3314
        %v3321 = vshll.u32 %v3320, 16
        %v3322 = vadd.s32 %v3321, %v3319
        %v3323 = vsel %vm361, %v3273, 2147483647
        %v3324 = vand.u32 %v3323, 65535
        %v3325 = vshra.s32 %v3323, 16
        %v3326 = vcvt.s32.f32 %v3324
        %v3327 = vcvt.s32.f32 %v3325
        %3328 = vmin.xlane.f32.xlu0 %v3327
        %v3329 = vpop.xlane.xlu0 %3328
        %vm3330 = vcmp.eq.f32.partialorder %v3327, %v3329
        %v3331 = vsel %vm3330, %v3326, inf
        %3332 = vmin.xlane.f32.xlu0 %v3331
        %v3333 = vpop.xlane.xlu0 %3332
        %v3334 = vcvt.f32.s32 %v3333
        %v3335 = vcvt.f32.s32 %v3329
        %v3336 = vshll.u32 %v3335, 16
        %v3337 = vadd.s32 %v3336, %v3334
        %v3338 = vsel %vm361, %v3274, 2147483647
        %v3339 = vand.u32 %v3338, 65535
        %v3340 = vshra.s32 %v3338, 16
        %v3341 = vcvt.s32.f32 %v3339
        %v3342 = vcvt.s32.f32 %v3340
        %3343 = vmin.xlane.f32.xlu0 %v3342
        %v3344 = vpop.xlane.xlu0 %3343
        %vm3345 = vcmp.eq.f32.partialorder %v3342, %v3344
        %v3346 = vsel %vm3345, %v3341, inf
        %3347 = vmin.xlane.f32.xlu0 %v3346
        %v3348 = vpop.xlane.xlu0 %3347
        %v3349 = vcvt.f32.s32 %v3348
        %v3350 = vcvt.f32.s32 %v3344
        %v3351 = vshll.u32 %v3350, 16
        %v3352 = vadd.s32 %v3351, %v3349
        %v3353 = vsel %vm361, %v3275, 2147483647
        %v3354 = vand.u32 %v3353, 65535
        %v3355 = vshra.s32 %v3353, 16
        %v3356 = vcvt.s32.f32 %v3354
        %v3357 = vcvt.s32.f32 %v3355
        %3358 = vmin.xlane.f32.xlu0 %v3357
        %v3359 = vpop.xlane.xlu0 %3358
        %vm3360 = vcmp.eq.f32.partialorder %v3357, %v3359
        %v3361 = vsel %vm3360, %v3356, inf
        %3362 = vmin.xlane.f32.xlu0 %v3361
        %v3363 = vpop.xlane.xlu0 %3362
        %v3364 = vcvt.f32.s32 %v3363
        %v3365 = vcvt.f32.s32 %v3359
        %v3366 = vshll.u32 %v3365, 16
        %v3367 = vadd.s32 %v3366, %v3364
        %v3368 = vsel %vm361, %v3276, 2147483647
        %v3369 = vand.u32 %v3368, 65535
        %v3370 = vshra.s32 %v3368, 16
        %v3371 = vcvt.s32.f32 %v3369
        %v3372 = vcvt.s32.f32 %v3370
        %3373 = vmin.xlane.f32.xlu0 %v3372
        %v3374 = vpop.xlane.xlu0 %3373
        %vm3375 = vcmp.eq.f32.partialorder %v3372, %v3374
        %v3376 = vsel %vm3375, %v3371, inf
        %3377 = vmin.xlane.f32.xlu0 %v3376
        %v3378 = vpop.xlane.xlu0 %3377
        %v3379 = vcvt.f32.s32 %v3378
        %v3380 = vcvt.f32.s32 %v3374
        %v3381 = vshll.u32 %v3380, 16
        %v3382 = vadd.s32 %v3381, %v3379
        %v3383 = vsel %vm361, %v3277, 2147483647
        %v3384 = vand.u32 %v3383, 65535
        %v3385 = vshra.s32 %v3383, 16
        %v3386 = vcvt.s32.f32 %v3384
        %v3387 = vcvt.s32.f32 %v3385
        %3388 = vmin.xlane.f32.xlu0 %v3387
        %v3389 = vpop.xlane.xlu0 %3388
        %vm3390 = vcmp.eq.f32.partialorder %v3387, %v3389
        %v3391 = vsel %vm3390, %v3386, inf
        %3392 = vmin.xlane.f32.xlu0 %v3391
        %v3393 = vpop.xlane.xlu0 %3392
        %v3394 = vcvt.f32.s32 %v3393
        %v3395 = vcvt.f32.s32 %v3389
        %v3396 = vshll.u32 %v3395, 16
        %v3397 = vadd.s32 %v3396, %v3394
        %v3398 = vlaneseq
        %v3399 = vshrl.u32 %v3398, 7
        %v3400 = vsub.s32 %v260, %v3399
        %v3401 = vrot.slane %v3292, %v3400
        %v3402 = vlaneseq
        %v3403 = vshrl.u32 %v3402, 7
        %v3404 = vsub.s32 %v260, %v3403
        %v3405 = vrot.slane %v3307, %v3404
        %v3406 = vlaneseq
        %v3407 = vshrl.u32 %v3406, 7
        %v3408 = vsub.s32 %v260, %v3407
        %v3409 = vrot.slane %v3322, %v3408
        %v3410 = vlaneseq
        %v3411 = vshrl.u32 %v3410, 7
        %v3412 = vsub.s32 %v260, %v3411
        %v3413 = vrot.slane %v3337, %v3412
        %v3414 = vlaneseq
        %v3415 = vshrl.u32 %v3414, 7
        %v3416 = vsub.s32 %v260, %v3415
        %v3417 = vrot.slane %v3352, %v3416
        %v3418 = vlaneseq
        %v3419 = vshrl.u32 %v3418, 7
        %v3420 = vsub.s32 %v260, %v3419
        %v3421 = vrot.slane %v3367, %v3420
        %v3422 = vlaneseq
        %v3423 = vshrl.u32 %v3422, 7
        %v3424 = vsub.s32 %v260, %v3423
        %v3425 = vrot.slane %v3382, %v3424
        %v3426 = vlaneseq
        %v3427 = vshrl.u32 %v3426, 7
        %v3428 = vsub.s32 %v260, %v3427
        %v3429 = vrot.slane %v3397, %v3428
        %v3430 = vsel %vm554, %v3405, %v3401
        %v3431 = vsel %vm556, %v3409, %v3430
        %v3432 = vsel %vm558, %v3413, %v3431
        %v3433 = vsel %vm560, %v3417, %v3432
        %v3434 = vsel %vm562, %v3421, %v3433
        %v3435 = vsel %vm564, %v3425, %v3434
        %v3436 = vsel %vm566, %v3429, %v3435
        %s3437 = scalar_lea.vmem [#allocation2], 56
        %3438 = vst.msk [vmem:[%s3437] sm:$0xff] %vm361, %v3436
        %s3439 = scalar_lea.vmem %s215, 56 [#allocation3]
        %v3440 = vld [vmem:[%s3439] sm:$0xff]
        %v3442 = vsel %vm578, %v3440, 0
        %3444 = vmatprep.subr.mxu0 0.0
        %3445 = vmatpush1.msra.mxu0 %v254
        %3446 = vmatprep.subr.mxu0 0.0
        %3447 = vmatpush1.msra.mxu0 %v255
        %3448 = vmatprep.subr.mxu0 0.0
        %3449 = vmatpush1.msra.mxu0 %v256
        %3450 = vmatprep.subr.mxu0 0.0
        %3451 = vmatpush1.msra.mxu0 %v257
        %3452 = vmatprep.subr.mxu0 0.0
        %3453 = vmatpush1.msra.mxu0 0.0
        %3454 = vmatprep.subr.mxu0 0.0
        %3455 = vmatpush1.msra.mxu0 0.0
        %3456 = vmatprep.subr.mxu0 0.0
        %3457 = vmatpush1.msra.mxu0 0.0
        %3458 = vmatprep.subr.mxu0 0.0
        %3459 = vmatpush1.msra.mxu0 0.0
        %3460 = vmatprep.subr.mxu0 0.0
        %3461 = vmatpush1.msra.mxu0 0.0
        %3462 = vmatprep.subr.mxu0 0.0
        %3463 = vmatpush1.msra.mxu0 0.0
        %3464 = vmatprep.subr.mxu0 0.0
        %3465 = vmatpush1.msra.mxu0 0.0
        %3466 = vmatprep.subr.mxu0 0.0
        %3467 = vmatpush1.msra.mxu0 0.0
        %3468 = vmatprep.subr.mxu0 0.0
        %3469 = vmatpush1.msra.mxu0 0.0
        %3470 = vmatprep.subr.mxu0 0.0
        %3471 = vmatpush1.msra.mxu0 0.0
        %3472 = vmatprep.subr.mxu0 0.0
        %3473 = vmatpush1.msra.mxu0 0.0
        %3474 = vmatprep.subr.mxu0 0.0
        %3475 = vmatpush1.msra.mxu0 0.0
        %3476 = vmatprep.subr.mxu0 0.0
        %3477 = vmatpush1.msra.mxu0 0.0
        %3478 = vmatprep.subr.mxu0 0.0
        %3479 = vmatpush1.msra.mxu0 0.0
        %3480 = vmatprep.subr.mxu0 0.0
        %3481 = vmatpush1.msra.mxu0 0.0
        %3482 = vmatprep.subr.mxu0 0.0
        %3483 = vmatpush1.msra.mxu0 0.0
        %3484 = vmatprep.subr.mxu0 0.0
        %3485 = vmatpush1.msra.mxu0 0.0
        %3486 = vmatprep.subr.mxu0 0.0
        %3487 = vmatpush1.msra.mxu0 0.0
        %3488 = vmatprep.subr.mxu0 0.0
        %3489 = vmatpush1.msra.mxu0 0.0
        %3490 = vmatprep.subr.mxu0 0.0
        %3491 = vmatpush1.msra.mxu0 0.0
        %3492 = vmatprep.subr.mxu0 0.0
        %3493 = vmatpush1.msra.mxu0 0.0
        %3494 = vmatprep.subr.mxu0 0.0
        %3495 = vmatpush1.msra.mxu0 0.0
        %3496 = vmatprep.subr.mxu0 0.0
        %3497 = vmatpush1.msra.mxu0 0.0
        %3498 = vmatprep.subr.mxu0 0.0
        %3499 = vmatpush1.msra.mxu0 0.0
        %3500 = vmatprep.subr.mxu0 0.0
        %3501 = vmatpush1.msra.mxu0 0.0
        %3502 = vmatprep.subr.mxu0 0.0
        %3503 = vmatpush1.msra.mxu0 0.0
        %3504 = vmatprep.subr.mxu0 0.0
        %3505 = vmatpush1.msra.mxu0 0.0
        %3506 = vmatprep.subr.mxu0 0.0
        %3507 = vmatpush1.msra.mxu0 0.0
        %3508 = vmatprep.mubr.f32.mxu0 0.0
        %3509 = vmatmul.mubr.f32.gmra.mrb[0].mxu0 %v3442
        %v3510 = vpop.f32.mrb[0].mxu0
        %v3511 = vadd.f32 %v576, %v3510
        %v3512 = vpop.f32.mrb[0].mxu0
        %3513 = vdwg.mxu0
        %v3515 = vlaneseq
        %v3516 = vshrl.u32 %v3515, 7
        %v3517 = vsub.s32 0, %v3516
        %v3518 = vrot.slane %v3511, %v3517
        %3520 = vbcast.lane.b32.xlu0 %v3518, 256
        %v3521 = vpop.permute.xlu0 %3520
        %v3522 = vlaneseq
        %v3523 = vshrl.u32 %v3522, 7
        %v3524 = vsub.s32 1, %v3523
        %v3525 = vrot.slane %v3511, %v3524
        %3527 = vbcast.lane.b32.xlu0 %v3525, 256
        %v3528 = vpop.permute.xlu0 %3527
        %v3529 = vlaneseq
        %v3530 = vshrl.u32 %v3529, 7
        %v3531 = vsub.s32 2, %v3530
        %v3532 = vrot.slane %v3511, %v3531
        %3534 = vbcast.lane.b32.xlu0 %v3532, 256
        %v3535 = vpop.permute.xlu0 %3534
        %v3536 = vlaneseq
        %v3537 = vshrl.u32 %v3536, 7
        %v3538 = vsub.s32 3, %v3537
        %v3539 = vrot.slane %v3511, %v3538
        %3541 = vbcast.lane.b32.xlu0 %v3539, 256
        %v3542 = vpop.permute.xlu0 %3541
        %v3543 = vlaneseq
        %v3544 = vshrl.u32 %v3543, 7
        %v3545 = vsub.s32 4, %v3544
        %v3546 = vrot.slane %v3511, %v3545
        %3548 = vbcast.lane.b32.xlu0 %v3546, 256
        %v3549 = vpop.permute.xlu0 %3548
        %v3550 = vlaneseq
        %v3551 = vshrl.u32 %v3550, 7
        %v3552 = vsub.s32 5, %v3551
        %v3553 = vrot.slane %v3511, %v3552
        %3555 = vbcast.lane.b32.xlu0 %v3553, 256
        %v3556 = vpop.permute.xlu0 %3555
        %v3557 = vlaneseq
        %v3558 = vshrl.u32 %v3557, 7
        %v3559 = vsub.s32 6, %v3558
        %v3560 = vrot.slane %v3511, %v3559
        %3562 = vbcast.lane.b32.xlu0 %v3560, 256
        %v3563 = vpop.permute.xlu0 %3562
        %v3564 = vlaneseq
        %v3565 = vshrl.u32 %v3564, 7
        %v3566 = vsub.s32 7, %v3565
        %v3567 = vrot.slane %v3511, %v3566
        %3569 = vbcast.lane.b32.xlu0 %v3567, 256
        %v3570 = vpop.permute.xlu0 %3569
        %v3579 = vadd.f32 %v3240, %v3521
        %v3580 = vadd.f32 %v3243, %v3528
        %v3581 = vadd.f32 %v3246, %v3535
        %v3582 = vadd.f32 %v3249, %v3542
        %v3583 = vadd.f32 %v3252, %v3549
        %v3584 = vadd.f32 %v3255, %v3556
        %v3585 = vadd.f32 %v3258, %v3563
        %v3586 = vadd.f32 %v3261, %v3570
        %3595 = vset.pattern.permute.xlu0 0
        %3596 = vperm.xlu0 %3595, %v3579
        %v3597 = vpop.permute.xlu0 %3596
        %3598 = vset.pattern.permute.xlu0 0
        %3599 = vperm.xlu0 %3598, %v3580
        %v3600 = vpop.permute.xlu0 %3599
        %3601 = vset.pattern.permute.xlu0 0
        %3602 = vperm.xlu0 %3601, %v3581
        %v3603 = vpop.permute.xlu0 %3602
        %3604 = vset.pattern.permute.xlu0 0
        %3605 = vperm.xlu0 %3604, %v3582
        %v3606 = vpop.permute.xlu0 %3605
        %3607 = vset.pattern.permute.xlu0 0
        %3608 = vperm.xlu0 %3607, %v3583
        %v3609 = vpop.permute.xlu0 %3608
        %3610 = vset.pattern.permute.xlu0 0
        %3611 = vperm.xlu0 %3610, %v3584
        %v3612 = vpop.permute.xlu0 %3611
        %3613 = vset.pattern.permute.xlu0 0
        %3614 = vperm.xlu0 %3613, %v3585
        %v3615 = vpop.permute.xlu0 %3614
        %3616 = vset.pattern.permute.xlu0 0
        %3617 = vperm.xlu0 %3616, %v3586
        %v3618 = vpop.permute.xlu0 %3617
        %v3619 = vlaneseq
        %v3620 = vshrl.u32 %v3619, 7
        %v3621 = vsub.s32 %v260, %v3620
        %v3622 = vrot.slane %v3597, %v3621
        %v3623 = vlaneseq
        %v3624 = vshrl.u32 %v3623, 7
        %v3625 = vsub.s32 %v260, %v3624
        %v3626 = vrot.slane %v3600, %v3625
        %v3627 = vlaneseq
        %v3628 = vshrl.u32 %v3627, 7
        %v3629 = vsub.s32 %v260, %v3628
        %v3630 = vrot.slane %v3603, %v3629
        %v3631 = vlaneseq
        %v3632 = vshrl.u32 %v3631, 7
        %v3633 = vsub.s32 %v260, %v3632
        %v3634 = vrot.slane %v3606, %v3633
        %v3635 = vlaneseq
        %v3636 = vshrl.u32 %v3635, 7
        %v3637 = vsub.s32 %v260, %v3636
        %v3638 = vrot.slane %v3609, %v3637
        %v3639 = vlaneseq
        %v3640 = vshrl.u32 %v3639, 7
        %v3641 = vsub.s32 %v260, %v3640
        %v3642 = vrot.slane %v3612, %v3641
        %v3643 = vlaneseq
        %v3644 = vshrl.u32 %v3643, 7
        %v3645 = vsub.s32 %v260, %v3644
        %v3646 = vrot.slane %v3615, %v3645
        %v3647 = vlaneseq
        %v3648 = vshrl.u32 %v3647, 7
        %v3649 = vsub.s32 %v260, %v3648
        %v3650 = vrot.slane %v3618, %v3649
        %v3651 = vsel %vm554, %v3626, %v3622
        %v3652 = vsel %vm556, %v3630, %v3651
        %v3653 = vsel %vm558, %v3634, %v3652
        %v3654 = vsel %vm560, %v3638, %v3653
        %v3655 = vsel %vm562, %v3642, %v3654
        %v3656 = vsel %vm564, %v3646, %v3655
        %v3657 = vsel %vm566, %v3650, %v3656
        %v3659 = vsel %vm361, %v3657, -inf
        %3660 = vmax.xlane.f32.xlu0 %v3659
        %v3661 = vpop.xlane.xlu0 %3660
        %v3663 = vlaneseq
        %v3664 = vshrl.u32 %v3663, 7
        %v3665 = vsub.s32 0, %v3664
        %v3666 = vrot.slane %v3661, %v3665
        %v3667 = vlaneseq
        %v3668 = vshrl.u32 %v3667, 7
        %v3669 = vsub.s32 1, %v3668
        %v3670 = vrot.slane %v3661, %v3669
        %v3671 = vlaneseq
        %v3672 = vshrl.u32 %v3671, 7
        %v3673 = vsub.s32 2, %v3672
        %v3674 = vrot.slane %v3661, %v3673
        %v3675 = vlaneseq
        %v3676 = vshrl.u32 %v3675, 7
        %v3677 = vsub.s32 3, %v3676
        %v3678 = vrot.slane %v3661, %v3677
        %v3679 = vlaneseq
        %v3680 = vshrl.u32 %v3679, 7
        %v3681 = vsub.s32 4, %v3680
        %v3682 = vrot.slane %v3661, %v3681
        %v3683 = vlaneseq
        %v3684 = vshrl.u32 %v3683, 7
        %v3685 = vsub.s32 5, %v3684
        %v3686 = vrot.slane %v3661, %v3685
        %v3687 = vlaneseq
        %v3688 = vshrl.u32 %v3687, 7
        %v3689 = vsub.s32 6, %v3688
        %v3690 = vrot.slane %v3661, %v3689
        %v3691 = vlaneseq
        %v3692 = vshrl.u32 %v3691, 7
        %v3693 = vsub.s32 7, %v3692
        %v3694 = vrot.slane %v3661, %v3693
        %vm3703 = vcmp.eq.f32.partialorder %v3579, %v3666
        %vm3704 = vcmp.eq.f32.partialorder %v3580, %v3670
        %vm3705 = vcmp.eq.f32.partialorder %v3581, %v3674
        %vm3706 = vcmp.eq.f32.partialorder %v3582, %v3678
        %vm3707 = vcmp.eq.f32.partialorder %v3583, %v3682
        %vm3708 = vcmp.eq.f32.partialorder %v3584, %v3686
        %vm3709 = vcmp.eq.f32.partialorder %v3585, %v3690
        %vm3710 = vcmp.eq.f32.partialorder %v3586, %v3694
        %3712 = vbcast.lane.b32.xlu0 %v260, 256
        %v3713 = vpop.permute.xlu0 %3712
        %v3714 = vsel %vm3703, %v3713, 8
        %v3715 = vsel %vm3704, %v3713, 8
        %v3716 = vsel %vm3705, %v3713, 8
        %v3717 = vsel %vm3706, %v3713, 8
        %v3718 = vsel %vm3707, %v3713, 8
        %v3719 = vsel %vm3708, %v3713, 8
        %v3720 = vsel %vm3709, %v3713, 8
        %v3721 = vsel %vm3710, %v3713, 8
        %3722 = vset.pattern.permute.xlu0 0
        %3723 = vperm.xlu0 %3722, %v3714
        %v3724 = vpop.permute.xlu0 %3723
        %3725 = vset.pattern.permute.xlu0 0
        %3726 = vperm.xlu0 %3725, %v3715
        %v3727 = vpop.permute.xlu0 %3726
        %3728 = vset.pattern.permute.xlu0 0
        %3729 = vperm.xlu0 %3728, %v3716
        %v3730 = vpop.permute.xlu0 %3729
        %3731 = vset.pattern.permute.xlu0 0
        %3732 = vperm.xlu0 %3731, %v3717
        %v3733 = vpop.permute.xlu0 %3732
        %3734 = vset.pattern.permute.xlu0 0
        %3735 = vperm.xlu0 %3734, %v3718
        %v3736 = vpop.permute.xlu0 %3735
        %3737 = vset.pattern.permute.xlu0 0
        %3738 = vperm.xlu0 %3737, %v3719
        %v3739 = vpop.permute.xlu0 %3738
        %3740 = vset.pattern.permute.xlu0 0
        %3741 = vperm.xlu0 %3740, %v3720
        %v3742 = vpop.permute.xlu0 %3741
        %3743 = vset.pattern.permute.xlu0 0
        %3744 = vperm.xlu0 %3743, %v3721
        %v3745 = vpop.permute.xlu0 %3744
        %v3746 = vlaneseq
        %v3747 = vshrl.u32 %v3746, 7
        %v3748 = vsub.s32 %v260, %v3747
        %v3749 = vrot.slane %v3724, %v3748
        %v3750 = vlaneseq
        %v3751 = vshrl.u32 %v3750, 7
        %v3752 = vsub.s32 %v260, %v3751
        %v3753 = vrot.slane %v3727, %v3752
        %v3754 = vlaneseq
        %v3755 = vshrl.u32 %v3754, 7
        %v3756 = vsub.s32 %v260, %v3755
        %v3757 = vrot.slane %v3730, %v3756
        %v3758 = vlaneseq
        %v3759 = vshrl.u32 %v3758, 7
        %v3760 = vsub.s32 %v260, %v3759
        %v3761 = vrot.slane %v3733, %v3760
        %v3762 = vlaneseq
        %v3763 = vshrl.u32 %v3762, 7
        %v3764 = vsub.s32 %v260, %v3763
        %v3765 = vrot.slane %v3736, %v3764
        %v3766 = vlaneseq
        %v3767 = vshrl.u32 %v3766, 7
        %v3768 = vsub.s32 %v260, %v3767
        %v3769 = vrot.slane %v3739, %v3768
        %v3770 = vlaneseq
        %v3771 = vshrl.u32 %v3770, 7
        %v3772 = vsub.s32 %v260, %v3771
        %v3773 = vrot.slane %v3742, %v3772
        %v3774 = vlaneseq
        %v3775 = vshrl.u32 %v3774, 7
        %v3776 = vsub.s32 %v260, %v3775
        %v3777 = vrot.slane %v3745, %v3776
        %v3778 = vsel %vm554, %v3753, %v3749
        %v3779 = vsel %vm556, %v3757, %v3778
        %v3780 = vsel %vm558, %v3761, %v3779
        %v3781 = vsel %vm560, %v3765, %v3780
        %v3782 = vsel %vm562, %v3769, %v3781
        %v3783 = vsel %vm564, %v3773, %v3782
        %v3784 = vsel %vm566, %v3777, %v3783
        %v3785 = vsel %vm361, %v3784, 2147483647
        %v3786 = vand.u32 %v3785, 65535
        %v3787 = vshra.s32 %v3785, 16
        %v3788 = vcvt.s32.f32 %v3786
        %v3789 = vcvt.s32.f32 %v3787
        %3790 = vmin.xlane.f32.xlu0 %v3789
        %v3791 = vpop.xlane.xlu0 %3790
        %vm3792 = vcmp.eq.f32.partialorder %v3789, %v3791
        %v3793 = vsel %vm3792, %v3788, inf
        %3794 = vmin.xlane.f32.xlu0 %v3793
        %v3795 = vpop.xlane.xlu0 %3794
        %v3796 = vcvt.f32.s32 %v3795
        %v3797 = vcvt.f32.s32 %v3791
        %v3798 = vshll.u32 %v3797, 16
        %v3799 = vadd.s32 %v3798, %v3796
        %vm3800 = vcmask 7168
        %3801 = vst.msk [vmem:[%s248] sm:$0xff] %vm3800, %v3661
        %vm3802 = vcmp.eq.s32.totalorder %v260, 7
        %v3803 = vsel %vm3802, %v3799, 0
        %v3804 = vld [vmem:[%s3437] sm:$0xff]
        %vm3805 = vcmp.eq.s32.totalorder %v260, %v3799
        %v3806 = vsel %vm3805, %v3804, 0
        %v3807 = vsel %vm361, %v3806, 0
        %v3808 = vand.u32 %v3807, 65535
        %v3809 = vshrl.u32 %v3807, 16
        %v3810 = vcvt.s32.f32 %v3808
        %v3811 = vcvt.s32.f32 %v3809
        %3812 = vadd.xlane.f32.xlu0 %v3810
        %v3813 = vpop.xlane.xlu0 %3812
        %3814 = vadd.xlane.f32.xlu0 %v3811
        %v3815 = vpop.xlane.xlu0 %3814
        %v3816 = vcvt.f32.s32 %v3813
        %v3817 = vcvt.f32.s32 %v3815
        %v3818 = vshll.u32 %v3817, 16
        %v3819 = vadd.s32 %v3818, %v3816
        %v3820 = vsel %vm261, %v3819, %v3803
        %v3821 = vld [vmem:[%s2960] sm:$0xff]
        %vm3822 = vcmp.eq.s32.totalorder %v260, %v3819
        %v3823 = vsel %vm3822, %v3821, 0
        %v3824 = vsel %vm361, %v3823, 0
        %v3825 = vand.u32 %v3824, 65535
        %v3826 = vshrl.u32 %v3824, 16
        %v3827 = vcvt.s32.f32 %v3825
        %v3828 = vcvt.s32.f32 %v3826
        %3829 = vadd.xlane.f32.xlu0 %v3827
        %v3830 = vpop.xlane.xlu0 %3829
        %3831 = vadd.xlane.f32.xlu0 %v3828
        %v3832 = vpop.xlane.xlu0 %3831
        %v3833 = vcvt.f32.s32 %v3830
        %v3834 = vcvt.f32.s32 %v3832
        %v3835 = vshll.u32 %v3834, 16
        %v3836 = vadd.s32 %v3835, %v3833
        %vm3837 = vcmp.eq.s32.totalorder %v260, 5
        %v3838 = vsel %vm3837, %v3836, %v3820
        %v3839 = vld [vmem:[%s2483] sm:$0xff]
        %vm3840 = vcmp.eq.s32.totalorder %v260, %v3836
        %v3841 = vsel %vm3840, %v3839, 0
        %v3842 = vsel %vm361, %v3841, 0
        %v3843 = vand.u32 %v3842, 65535
        %v3844 = vshrl.u32 %v3842, 16
        %v3845 = vcvt.s32.f32 %v3843
        %v3846 = vcvt.s32.f32 %v3844
        %3847 = vadd.xlane.f32.xlu0 %v3845
        %v3848 = vpop.xlane.xlu0 %3847
        %3849 = vadd.xlane.f32.xlu0 %v3846
        %v3850 = vpop.xlane.xlu0 %3849
        %v3851 = vcvt.f32.s32 %v3848
        %v3852 = vcvt.f32.s32 %v3850
        %v3853 = vshll.u32 %v3852, 16
        %v3854 = vadd.s32 %v3853, %v3851
        %vm3855 = vcmp.eq.s32.totalorder %v260, 4
        %v3856 = vsel %vm3855, %v3854, %v3838
        %v3857 = vld [vmem:[%s2006] sm:$0xff]
        %vm3858 = vcmp.eq.s32.totalorder %v260, %v3854
        %v3859 = vsel %vm3858, %v3857, 0
        %v3860 = vsel %vm361, %v3859, 0
        %v3861 = vand.u32 %v3860, 65535
        %v3862 = vshrl.u32 %v3860, 16
        %v3863 = vcvt.s32.f32 %v3861
        %v3864 = vcvt.s32.f32 %v3862
        %3865 = vadd.xlane.f32.xlu0 %v3863
        %v3866 = vpop.xlane.xlu0 %3865
        %3867 = vadd.xlane.f32.xlu0 %v3864
        %v3868 = vpop.xlane.xlu0 %3867
        %v3869 = vcvt.f32.s32 %v3866
        %v3870 = vcvt.f32.s32 %v3868
        %v3871 = vshll.u32 %v3870, 16
        %v3872 = vadd.s32 %v3871, %v3869
        %vm3873 = vcmp.eq.s32.totalorder %v260, 3
        %v3874 = vsel %vm3873, %v3872, %v3856
        %v3875 = vld [vmem:[%s1529] sm:$0xff]
        %vm3876 = vcmp.eq.s32.totalorder %v260, %v3872
        %v3877 = vsel %vm3876, %v3875, 0
        %v3878 = vsel %vm361, %v3877, 0
        %v3879 = vand.u32 %v3878, 65535
        %v3880 = vshrl.u32 %v3878, 16
        %v3881 = vcvt.s32.f32 %v3879
        %v3882 = vcvt.s32.f32 %v3880
        %3883 = vadd.xlane.f32.xlu0 %v3881
        %v3884 = vpop.xlane.xlu0 %3883
        %3885 = vadd.xlane.f32.xlu0 %v3882
        %v3886 = vpop.xlane.xlu0 %3885
        %v3887 = vcvt.f32.s32 %v3884
        %v3888 = vcvt.f32.s32 %v3886
        %v3889 = vshll.u32 %v3888, 16
        %v3890 = vadd.s32 %v3889, %v3887
        %vm3891 = vcmp.eq.s32.totalorder %v260, 2
        %v3892 = vsel %vm3891, %v3890, %v3874
        %v3893 = vld [vmem:[%s1052] sm:$0xff]
        %vm3894 = vcmp.eq.s32.totalorder %v260, %v3890
        %v3895 = vsel %vm3894, %v3893, 0
        %v3896 = vsel %vm361, %v3895, 0
        %v3897 = vand.u32 %v3896, 65535
        %v3898 = vshrl.u32 %v3896, 16
        %v3899 = vcvt.s32.f32 %v3897
        %v3900 = vcvt.s32.f32 %v3898
        %3901 = vadd.xlane.f32.xlu0 %v3899
        %v3902 = vpop.xlane.xlu0 %3901
        %3903 = vadd.xlane.f32.xlu0 %v3900
        %v3904 = vpop.xlane.xlu0 %3903
        %v3905 = vcvt.f32.s32 %v3902
        %v3906 = vcvt.f32.s32 %v3904
        %v3907 = vshll.u32 %v3906, 16
        %v3908 = vadd.s32 %v3907, %v3905
        %vm3909 = vcmp.eq.s32.totalorder %v260, 1
        %v3910 = vsel %vm3909, %v3908, %v3892
        %v3911 = vld [vmem:[%s568] sm:$0xff]
        %vm3912 = vcmp.eq.s32.totalorder %v260, %v3908
        %v3913 = vsel %vm3912, %v3911, 0
        %v3914 = vsel %vm361, %v3913, 0
        %v3915 = vand.u32 %v3914, 65535
        %v3916 = vshrl.u32 %v3914, 16
        %v3917 = vcvt.s32.f32 %v3915
        %v3918 = vcvt.s32.f32 %v3916
        %3919 = vadd.xlane.f32.xlu0 %v3917
        %v3920 = vpop.xlane.xlu0 %3919
        %3921 = vadd.xlane.f32.xlu0 %v3918
        %v3922 = vpop.xlane.xlu0 %3921
        %v3923 = vcvt.f32.s32 %v3920
        %v3924 = vcvt.f32.s32 %v3922
        %v3925 = vshll.u32 %v3924, 16
        %v3926 = vadd.s32 %v3925, %v3923
        %vm3927 = vcmp.eq.s32.totalorder %v260, 0
        %v3928 = vsel %vm3927, %v3926, %v3910
        %3929 = vst.msk [vmem:[%s252] sm:$0xff] %vm361, %v3928
        %p3930 = scmp.lt.s32.totalorder %s20, 1
        %s3931 = scalar_select %p3930, %s20, 1
        %s3932 = smul.addr %s3931, 8
        %s3933 = scalar_lea.vmem %s4, %s3932
        %p3934 = scmp.lt.s32.totalorder %s20, 1
        %s3935 = scalar_select %p3934, %s20, 1
        %s3936 = smul.addr %s3935, 8
        %s3937 = scalar_lea.vmem %s5, %s3936
        // Predicated region
        $region41: #{tpu_custom_call.1} parent=35 // pred_check
          %p3938 = pneg %p127
        $region42: #{tpu_custom_call.1} parent=35 // pred_check_branch
          %3940 = sbr.rel (%p3938) target = $region44
        $region43: #{tpu_custom_call.1} parent=35 // pred_region
          _
        $region44: #{tpu_custom_call.1} parent=35 // pred_fallthru
          _
        // Predicated region
        $region45: #{tpu_custom_call.1} parent=35 // pred_check
          %p3941 = pneg %p153
        $region46: #{tpu_custom_call.1} parent=35 // pred_check_branch
          %3943 = sbr.rel (%p3941) target = $region48
        $region47: #{tpu_custom_call.1} parent=35 // pred_region
          _
        $region48: #{tpu_custom_call.1} parent=35 // pred_fallthru
          _
      $region36: #{tpu_custom_call.1} parent=5 // pred_fallthru
        _
      %p3944 = scmp.le.s32.totalorder 2, %s15
      // Predicated region
      $region49: #{tpu_custom_call.1} parent=5 // pred_check
        %p3945 = pneg %p3944
      $region50: #{tpu_custom_call.1} parent=5 // pred_check_branch
        %3947 = sbr.rel (%p3945) target = $region52
      $region51: #{tpu_custom_call.1} parent=5 // pred_region
        %s3948 = ssub.s32 %s15, 2
        // Predicated region
        $region53: #{tpu_custom_call.1} parent=51 // pred_check
          %p3949 = pneg %p133
        $region54: #{tpu_custom_call.1} parent=51 // pred_check_branch
          %3951 = sbr.rel (%p3949) target = $region56
        $region55: #{tpu_custom_call.1} parent=51 // pred_region
          %p3952 = scmp.lt.s32.totalorder %s21, 1
          %s3953 = scalar_select %p3952, %s21, 1
          %s3954 = smul.addr %s3953, 8
          %s3955 = scalar_lea.vmem %s4, %s3954
        $region56: #{tpu_custom_call.1} parent=51 // pred_fallthru
          _
        // Predicated region
        $region57: #{tpu_custom_call.1} parent=51 // pred_check
          %p3956 = pneg %p159
        $region58: #{tpu_custom_call.1} parent=51 // pred_check_branch
          %3958 = sbr.rel (%p3956) target = $region60
        $region59: #{tpu_custom_call.1} parent=51 // pred_region
          %p3959 = scmp.lt.s32.totalorder %s21, 1
          %s3960 = scalar_select %p3959, %s21, 1
          %s3961 = smul.addr %s3960, 8
          %s3962 = scalar_lea.vmem %s5, %s3961
        $region60: #{tpu_custom_call.1} parent=51 // pred_fallthru
          _
      $region52: #{tpu_custom_call.1} parent=5 // pred_fallthru
        _
    $region6: #{tpu_custom_call.1} parent=1 // loop_footer
      %s19 = sadd.s32 1, %s15
    $region7: #{tpu_custom_call.1} parent=1 // loop_footer_branch
      %14 = sbr.rel target = $region3
    $region8: #{tpu_custom_call.1} parent=1 // loop_exit
      _
    %3963 = vsyncpa [#allocation4], 1
    %s3964 = scalar_lea.sflag [#allocation4], 1
    %3965 = vsyncpa %s3964, 1

</llo_original>
